<compile_context>
chip_gen: v7x
topology: tpu7x:2x2x1
jax: 0.10.0
libtpu: 0.0.40
codegen_flags: <defaults>
</compile_context>

<pallas_src>
import functools

import jax
import jax.numpy as jnp
import numpy as np
from jax import lax
from jax.experimental import pallas as pl
from jax.experimental.pallas import tpu as pltpu


def _cn_block_kernel(H, W, C, NL,
                     x_ref, wf1_ref, b1_ref, wf2_ref, b2_ref,
                     w3_ref, b3_ref, w4_ref, b4_ref, o_ref):
    """One grid step: the full block (C, NL) with NL = BT*H*W lane-dense."""
    x = x_ref[0]                                    # (C, NL) f32

    def rolled(a, off):
        # result[:, j] = a[:, (j + off) % NL]; `off` is a static Python int.
        if off % NL == 0:
            return a
        return pltpu.roll(a, shift=(-off) % NL, axis=1)

    def depthwise(inp, k, wf_ref, b_ref):
        """Depthwise k x k conv (stride 1, pad k//2) + folded BN + ReLU.

        wf_ref[ei, di] is a (C, NL) constant = per-channel tap weight
        * column-validity mask * pre-rolled row-validity mask, so all zero
        padding is handled by the masks and the math is one mul+add per tap.
        """
        r = k // 2
        # k column-shifted copies of the input: (k-1) lane rolls.
        cols = [rolled(inp, dc) for dc in range(-r, r + 1)]
        acc = None
        for ei in range(k):                         # row offset dr = ei - r
            t = cols[0] * wf_ref[ei, 0]
            for di in range(1, k):
                t = t + cols[di] * wf_ref[ei, di]
            t = rolled(t, (ei - r) * W)             # (k-1) row rolls total
            acc = t if acc is None else acc + t
        return jnp.maximum(acc + b_ref[...], 0.0)

    # stage 1: depthwise 5x5 + BN + ReLU
    y1 = depthwise(x, 5, wf1_ref, b1_ref)
    # stage 2: depthwise 3x3 + BN + ReLU
    y2 = depthwise(y1, 3, wf2_ref, b2_ref)
    # stage 3: 1x1 conv C -> 4C on the MXU (bf16 operands, f32 acc) + BN + ReLU
    y3 = jnp.maximum(
        jnp.dot(w3_ref[...], y2.astype(jnp.bfloat16),
                preferred_element_type=jnp.float32) + b3_ref[...], 0.0)
    # stage 4: 1x1 conv 4C -> C on the MXU + final BN
    y4 = (jnp.dot(w4_ref[...], y3.astype(jnp.bfloat16),
                  preferred_element_type=jnp.float32) + b4_ref[...])
    # residual add, lane-dense store (NL lanes, unmasked vst)
    o_ref[0] = y4 + x


def _fused_dw_constants(w_tap, k, H, W, BT):
    """Fused depthwise constants: (k, k, C, BT*H*W) f32.

    wf[ei, di, c, j] = tap_weight[ei*k+di, c]
                       * [0 <= col(j) + (di-r) < W]          (column validity)
                       * rolled row-validity for row offset (ei-r), pre-rolled
                         by (ei-r)*W so it can be applied *before* the
                         in-kernel row roll.
    """
    HW = H * W
    C = w_tap.shape[1]
    r = k // 2
    lane = np.arange(HW)
    col = lane % W
    row = lane // W
    taps = []
    for ei in range(k):                  # row offset dr = ei - r
        dr = ei - r
        rowmask = ((row + dr >= 0) & (row + dr < H)).astype(np.float32)
        premask = np.roll(rowmask, dr * W)          # applied before row roll
        for di in range(k):              # col offset dc = di - r
            dc = di - r
            colmask = ((col + dc >= 0) & (col + dc < W)).astype(np.float32)
            m = np.tile(premask * colmask, BT)      # (BT*HW,) periodic in HW
            taps.append(w_tap[ei * k + di][:, None] * m[None, :])   # (C, NL)
    return jnp.stack(taps).reshape(k, k, C, BT * HW).astype(jnp.float32)


def replacement_cn_block(x_nchw, params, *, batch_tile=None):
    """x_nchw: (B, C, H, W) float32. Returns (B, C, H, W) float32."""
    B, C, H, W = x_nchw.shape
    HW = H * W
    BT = B if batch_tile is None else batch_tile
    assert B % BT == 0
    G = B // BT
    NL = BT * HW
    C4 = params["w3t"].shape[0]

    # Lane-dense layout with batch folded onto lanes: (G, C, BT*HW),
    # lane index j = bt*HW + h*W + w.  Single HBM-level transpose per call.
    x = (x_nchw.astype(jnp.float32)
         .reshape(G, BT, C, HW).transpose(0, 2, 1, 3).reshape(G, C, NL))

    wf1 = _fused_dw_constants(params["w1"], 5, H, W, BT)   # (5,5,C,NL)
    wf2 = _fused_dw_constants(params["w2"], 3, H, W, BT)   # (3,3,C,NL)

    kernel = functools.partial(_cn_block_kernel, H, W, C, NL)
    c2 = lambda g: (0, 0)
    c4 = lambda g: (0, 0, 0, 0)

    out = pl.pallas_call(
        kernel,
        out_shape=jax.ShapeDtypeStruct((G, C, NL), jnp.float32),
        grid=(G,),
        in_specs=[
            pl.BlockSpec((1, C, NL), lambda g: (g, 0, 0)),   # x block
            pl.BlockSpec((5, 5, C, NL), c4),                 # fused dw5x5 consts
            pl.BlockSpec((C, 1), c2),                        # b1
            pl.BlockSpec((3, 3, C, NL), c4),                 # fused dw3x3 consts
            pl.BlockSpec((C, 1), c2),                        # b2
            pl.BlockSpec((C4, C), c2),                       # w3t (bf16)
            pl.BlockSpec((C4, 1), c2),                       # b3
            pl.BlockSpec((C, C4), c2),                       # w4t (bf16)
            pl.BlockSpec((C, 1), c2),                        # b4
        ],
        out_specs=pl.BlockSpec((1, C, NL), lambda g: (g, 0, 0)),
        compiler_params=pltpu.CompilerParams(
            dimension_semantics=("parallel",)),
    )(x, wf1, params["b1"], wf2, params["b2"],
      params["w3t_bf16"], params["b3"], params["w4t_bf16"], params["b4"])

    return (out.reshape(G, C, BT, HW).transpose(0, 2, 1, 3)
            .reshape(B, C, H, W))


# --------------------------------------------------------------------------
# Deterministic parameter construction (mirrors the PyTorch module's shapes)
# with inference-mode BatchNorm folded into scales / biases.
# --------------------------------------------------------------------------
def make_params(key, dim):
    eps = 1e-5
    C4 = 4 * dim
    ks = jax.random.split(key, 24)
    i = iter(range(24))

    def nrm(k, shape, scale=0.1):
        return scale * jax.random.normal(k, shape, jnp.float32)

    def bn(kg, kb, km, kv, c):
        gamma = 1.0 + 0.1 * jax.random.normal(kg, (c,), jnp.float32)
        beta = 0.1 * jax.random.normal(kb, (c,), jnp.float32)
        mean = 0.1 * jax.random.normal(km, (c,), jnp.float32)
        var = 0.5 + jax.random.uniform(kv, (c,), jnp.float32)
        scale = gamma / jnp.sqrt(var + eps)
        return scale, beta, mean

    # conv1: depthwise 5x5, PyTorch weight (dim, 1, 5, 5) + BN(dim)
    w1_pt = nrm(ks[next(i)], (dim, 1, 5, 5))
    c1b = nrm(ks[next(i)], (dim,))
    s1, be1, mu1 = bn(ks[next(i)], ks[next(i)], ks[next(i)], ks[next(i)], dim)
    ref_w1 = jnp.transpose(w1_pt[:, 0], (1, 2, 0)) * s1        # (5,5,dim)
    ref_b1 = (c1b - mu1) * s1 + be1                            # (dim,)

    # conv2: depthwise 3x3, PyTorch weight (dim, 1, 3, 3) + BN(dim)
    w2_pt = nrm(ks[next(i)], (dim, 1, 3, 3))
    c2b = nrm(ks[next(i)], (dim,))
    s2, be2, mu2 = bn(ks[next(i)], ks[next(i)], ks[next(i)], ks[next(i)], dim)
    ref_w2 = jnp.transpose(w2_pt[:, 0], (1, 2, 0)) * s2        # (3,3,dim)
    ref_b2 = (c2b - mu2) * s2 + be2

    # conv3: 1x1 dim -> 4*dim, PyTorch weight (4*dim, dim, 1, 1) + BN(4*dim)
    w3_pt = nrm(ks[next(i)], (C4, dim, 1, 1))
    c3b = nrm(ks[next(i)], (C4,))
    s3, be3, mu3 = bn(ks[next(i)], ks[next(i)], ks[next(i)], ks[next(i)], C4)
    ref_w3 = w3_pt[:, :, 0, 0].T * s3[None, :]                 # (dim, 4*dim)
    ref_b3 = (c3b - mu3) * s3 + be3

    # conv4: 1x1 4*dim -> dim, PyTorch weight (dim, 4*dim, 1, 1); final BN(dim)
    w4_pt = nrm(ks[next(i)], (dim, C4, 1, 1))
    c4b = nrm(ks[next(i)], (dim,))
    s5, be5, mu5 = bn(ks[next(i)], ks[next(i)], ks[next(i)], ks[next(i)], dim)
    ref_w4 = w4_pt[:, :, 0, 0].T * s5[None, :]                 # (4*dim, dim)
    ref_b4 = (c4b - mu5) * s5 + be5

    return dict(
        # kernel layouts
        w1=np.asarray(ref_w1.reshape(25, dim)),                # (25, dim) per tap
        b1=ref_b1[:, None],                                    # (dim, 1)
        w2=np.asarray(ref_w2.reshape(9, dim)),                 # (9, dim)
        b2=ref_b2[:, None],
        w3t=ref_w3.T,                                          # (4*dim, dim) f32
        w3t_bf16=ref_w3.T.astype(jnp.bfloat16),                # MXU operand
        b3=ref_b3[:, None],                                    # (4*dim, 1)
        w4t=ref_w4.T,                                          # (dim, 4*dim)
        w4t_bf16=ref_w4.T.astype(jnp.bfloat16),
        b4=ref_b4[:, None],
        # reference layouts
        ref_w1=ref_w1, ref_b1=ref_b1, ref_w2=ref_w2, ref_b2=ref_b2,
        ref_w3=ref_w3, ref_b3=ref_b3, ref_w4=ref_w4, ref_b4=ref_b4,
    )


# --------------------------------------------------------------------------
# Pure-JAX reference (lax.conv, f32) used only as a correctness check.
# --------------------------------------------------------------------------
def reference(x_nchw, p):
    x = jnp.transpose(x_nchw, (0, 2, 3, 1))                    # NHWC
    C = x.shape[-1]
    dn = ("NHWC", "HWIO", "NHWC")
    y = lax.conv_general_dilated(x, p["ref_w1"][:, :, None, :], (1, 1), "SAME",
                                 dimension_numbers=dn, feature_group_count=C)
    y = jax.nn.relu(y + p["ref_b1"])
    y = lax.conv_general_dilated(y, p["ref_w2"][:, :, None, :], (1, 1), "SAME",
                                 dimension_numbers=dn, feature_group_count=C)
    y = jax.nn.relu(y + p["ref_b2"])
    y = jax.nn.relu(jnp.einsum("nhwc,cd->nhwd", y, p["ref_w3"]) + p["ref_b3"])
    y = jnp.einsum("nhwc,cd->nhwd", y, p["ref_w4"]) + p["ref_b4"]
    y = y + x
    return jnp.transpose(y, (0, 3, 1, 2))


if __name__ == "__main__":
    B, dim, H, W = 2, 32, 16, 16
    key = jax.random.PRNGKey(0)
    kx, kp = jax.random.split(key)
    x = jax.random.normal(kx, (B, dim, H, W), jnp.float32)     # NCHW like PyTorch
    params = make_params(kp, dim)

    out = jax.block_until_ready(replacement_cn_block(x, params))
    ref = jax.block_until_ready(reference(x, params))

    assert out.shape == (B, dim, H, W)
    # bf16 MXU operands (f32 accumulation) slightly loosen numerics vs the
    # f32 lax.conv reference; 2e-2 comfortably absorbs it.
    np.testing.assert_allclose(np.asarray(out), np.asarray(ref),
                               rtol=2e-2, atol=2e-2)
    print("KERNEL_OK")
</pallas_src>

<mosaic_0001>
module attributes {stable_mosaic.version = 11 : i64} {
  func.func @_cn_block_kernel(%arg0: i32, %arg1: memref<1x32x512xf32, #tpu.memory_space<vmem>>, %arg2: memref<5x5x32x512xf32, #tpu.memory_space<vmem>>, %arg3: memref<32x1xf32, #tpu.memory_space<vmem>>, %arg4: memref<3x3x32x512xf32, #tpu.memory_space<vmem>>, %arg5: memref<32x1xf32, #tpu.memory_space<vmem>>, %arg6: memref<128x32xbf16, #tpu.memory_space<vmem>>, %arg7: memref<128x1xf32, #tpu.memory_space<vmem>>, %arg8: memref<32x128xbf16, #tpu.memory_space<vmem>>, %arg9: memref<32x1xf32, #tpu.memory_space<vmem>>, %arg10: memref<1x32x512xf32, #tpu.memory_space<vmem>>) attributes {dimension_semantics = [#tpu.dimension_semantics<parallel>], iteration_bounds = array<i64: 1>, scalar_prefetch = 0 : i64, scratch_operands = 0 : i64, tpu.core_type = #tpu.core_type<tc>, window_params = [{transform_indices = @transform_0, window_bounds = array<i64: 1, 32, 512>}, {pipeline_mode = #tpu.pipeline_mode<synchronous>, transform_indices = @transform_1, window_bounds = array<i64: 5, 5, 32, 512>}, {pipeline_mode = #tpu.pipeline_mode<synchronous>, transform_indices = @transform_2, window_bounds = array<i64: 32, 1>}, {pipeline_mode = #tpu.pipeline_mode<synchronous>, transform_indices = @transform_3, window_bounds = array<i64: 3, 3, 32, 512>}, {pipeline_mode = #tpu.pipeline_mode<synchronous>, transform_indices = @transform_4, window_bounds = array<i64: 32, 1>}, {pipeline_mode = #tpu.pipeline_mode<synchronous>, transform_indices = @transform_5, window_bounds = array<i64: 128, 32>}, {pipeline_mode = #tpu.pipeline_mode<synchronous>, transform_indices = @transform_6, window_bounds = array<i64: 128, 1>}, {pipeline_mode = #tpu.pipeline_mode<synchronous>, transform_indices = @transform_7, window_bounds = array<i64: 32, 128>}, {pipeline_mode = #tpu.pipeline_mode<synchronous>, transform_indices = @transform_8, window_bounds = array<i64: 32, 1>}, {transform_indices = @transform_9, window_bounds = array<i64: 1, 32, 512>}]} {
    %c0 = arith.constant 0 : index
    %c0_0 = arith.constant 0 : index
    %c0_1 = arith.constant 0 : index
    %0 = vector.load %arg1[%c0, %c0_0, %c0_1] : memref<1x32x512xf32, #tpu.memory_space<vmem>>, vector<1x32x512xf32>
    %1 = vector.shape_cast %0 : vector<1x32x512xf32> to vector<32x512xf32>
    %c2_i32 = arith.constant 2 : i32
    %2 = tpu.dynamic_rotate %1 by %c2_i32 dim 1 : vector<32x512xf32>, i32 -> vector<32x512xf32>
    %c1_i32 = arith.constant 1 : i32
    %3 = tpu.dynamic_rotate %1 by %c1_i32 dim 1 : vector<32x512xf32>, i32 -> vector<32x512xf32>
    %c511_i32 = arith.constant 511 : i32
    %4 = tpu.dynamic_rotate %1 by %c511_i32 dim 1 : vector<32x512xf32>, i32 -> vector<32x512xf32>
    %c510_i32 = arith.constant 510 : i32
    %5 = tpu.dynamic_rotate %1 by %c510_i32 dim 1 : vector<32x512xf32>, i32 -> vector<32x512xf32>
    %c0_2 = arith.constant 0 : index
    %c0_3 = arith.constant 0 : index
    %c0_4 = arith.constant 0 : index
    %c0_5 = arith.constant 0 : index
    %6 = vector.load %arg2[%c0_2, %c0_3, %c0_4, %c0_5] : memref<5x5x32x512xf32, #tpu.memory_space<vmem>>, vector<1x1x32x512xf32>
    %7 = vector.shape_cast %6 : vector<1x1x32x512xf32> to vector<32x512xf32>
    %8 = arith.mulf %2, %7 : vector<32x512xf32>
    %c0_6 = arith.constant 0 : index
    %c1 = arith.constant 1 : index
    %c0_7 = arith.constant 0 : index
    %c0_8 = arith.constant 0 : index
    %9 = vector.load %arg2[%c0_6, %c1, %c0_7, %c0_8] : memref<5x5x32x512xf32, #tpu.memory_space<vmem>>, vector<1x1x32x512xf32>
    %10 = vector.shape_cast %9 : vector<1x1x32x512xf32> to vector<32x512xf32>
    %11 = arith.mulf %3, %10 : vector<32x512xf32>
    %12 = arith.addf %8, %11 : vector<32x512xf32>
    %c0_9 = arith.constant 0 : index
    %c2 = arith.constant 2 : index
    %c0_10 = arith.constant 0 : index
    %c0_11 = arith.constant 0 : index
    %13 = vector.load %arg2[%c0_9, %c2, %c0_10, %c0_11] : memref<5x5x32x512xf32, #tpu.memory_space<vmem>>, vector<1x1x32x512xf32>
    %14 = vector.shape_cast %13 : vector<1x1x32x512xf32> to vector<32x512xf32>
    %15 = arith.mulf %1, %14 : vector<32x512xf32>
    %16 = arith.addf %12, %15 : vector<32x512xf32>
    %c0_12 = arith.constant 0 : index
    %c3 = arith.constant 3 : index
    %c0_13 = arith.constant 0 : index
    %c0_14 = arith.constant 0 : index
    %17 = vector.load %arg2[%c0_12, %c3, %c0_13, %c0_14] : memref<5x5x32x512xf32, #tpu.memory_space<vmem>>, vector<1x1x32x512xf32>
    %18 = vector.shape_cast %17 : vector<1x1x32x512xf32> to vector<32x512xf32>
    %19 = arith.mulf %4, %18 : vector<32x512xf32>
    %20 = arith.addf %16, %19 : vector<32x512xf32>
    %c0_15 = arith.constant 0 : index
    %c4 = arith.constant 4 : index
    %c0_16 = arith.constant 0 : index
    %c0_17 = arith.constant 0 : index
    %21 = vector.load %arg2[%c0_15, %c4, %c0_16, %c0_17] : memref<5x5x32x512xf32, #tpu.memory_space<vmem>>, vector<1x1x32x512xf32>
    %22 = vector.shape_cast %21 : vector<1x1x32x512xf32> to vector<32x512xf32>
    %23 = arith.mulf %5, %22 : vector<32x512xf32>
    %24 = arith.addf %20, %23 : vector<32x512xf32>
    %c32_i32 = arith.constant 32 : i32
    %25 = tpu.dynamic_rotate %24 by %c32_i32 dim 1 : vector<32x512xf32>, i32 -> vector<32x512xf32>
    %c1_18 = arith.constant 1 : index
    %c0_19 = arith.constant 0 : index
    %c0_20 = arith.constant 0 : index
    %c0_21 = arith.constant 0 : index
    %26 = vector.load %arg2[%c1_18, %c0_19, %c0_20, %c0_21] : memref<5x5x32x512xf32, #tpu.memory_space<vmem>>, vector<1x1x32x512xf32>
    %27 = vector.shape_cast %26 : vector<1x1x32x512xf32> to vector<32x512xf32>
    %28 = arith.mulf %2, %27 : vector<32x512xf32>
    %c1_22 = arith.constant 1 : index
    %c1_23 = arith.constant 1 : index
    %c0_24 = arith.constant 0 : index
    %c0_25 = arith.constant 0 : index
    %29 = vector.load %arg2[%c1_22, %c1_23, %c0_24, %c0_25] : memref<5x5x32x512xf32, #tpu.memory_space<vmem>>, vector<1x1x32x512xf32>
    %30 = vector.shape_cast %29 : vector<1x1x32x512xf32> to vector<32x512xf32>
    %31 = arith.mulf %3, %30 : vector<32x512xf32>
    %32 = arith.addf %28, %31 : vector<32x512xf32>
    %c1_26 = arith.constant 1 : index
    %c2_27 = arith.constant 2 : index
    %c0_28 = arith.constant 0 : index
    %c0_29 = arith.constant 0 : index
    %33 = vector.load %arg2[%c1_26, %c2_27, %c0_28, %c0_29] : memref<5x5x32x512xf32, #tpu.memory_space<vmem>>, vector<1x1x32x512xf32>
    %34 = vector.shape_cast %33 : vector<1x1x32x512xf32> to vector<32x512xf32>
    %35 = arith.mulf %1, %34 : vector<32x512xf32>
    %36 = arith.addf %32, %35 : vector<32x512xf32>
    %c1_30 = arith.constant 1 : index
    %c3_31 = arith.constant 3 : index
    %c0_32 = arith.constant 0 : index
    %c0_33 = arith.constant 0 : index
    %37 = vector.load %arg2[%c1_30, %c3_31, %c0_32, %c0_33] : memref<5x5x32x512xf32, #tpu.memory_space<vmem>>, vector<1x1x32x512xf32>
    %38 = vector.shape_cast %37 : vector<1x1x32x512xf32> to vector<32x512xf32>
    %39 = arith.mulf %4, %38 : vector<32x512xf32>
    %40 = arith.addf %36, %39 : vector<32x512xf32>
    %c1_34 = arith.constant 1 : index
    %c4_35 = arith.constant 4 : index
    %c0_36 = arith.constant 0 : index
    %c0_37 = arith.constant 0 : index
    %41 = vector.load %arg2[%c1_34, %c4_35, %c0_36, %c0_37] : memref<5x5x32x512xf32, #tpu.memory_space<vmem>>, vector<1x1x32x512xf32>
    %42 = vector.shape_cast %41 : vector<1x1x32x512xf32> to vector<32x512xf32>
    %43 = arith.mulf %5, %42 : vector<32x512xf32>
    %44 = arith.addf %40, %43 : vector<32x512xf32>
    %c16_i32 = arith.constant 16 : i32
    %45 = tpu.dynamic_rotate %44 by %c16_i32 dim 1 : vector<32x512xf32>, i32 -> vector<32x512xf32>
    %46 = arith.addf %25, %45 : vector<32x512xf32>
    %c2_38 = arith.constant 2 : index
    %c0_39 = arith.constant 0 : index
    %c0_40 = arith.constant 0 : index
    %c0_41 = arith.constant 0 : index
    %47 = vector.load %arg2[%c2_38, %c0_39, %c0_40, %c0_41] : memref<5x5x32x512xf32, #tpu.memory_space<vmem>>, vector<1x1x32x512xf32>
    %48 = vector.shape_cast %47 : vector<1x1x32x512xf32> to vector<32x512xf32>
    %49 = arith.mulf %2, %48 : vector<32x512xf32>
    %c2_42 = arith.constant 2 : index
    %c1_43 = arith.constant 1 : index
    %c0_44 = arith.constant 0 : index
    %c0_45 = arith.constant 0 : index
    %50 = vector.load %arg2[%c2_42, %c1_43, %c0_44, %c0_45] : memref<5x5x32x512xf32, #tpu.memory_space<vmem>>, vector<1x1x32x512xf32>
    %51 = vector.shape_cast %50 : vector<1x1x32x512xf32> to vector<32x512xf32>
    %52 = arith.mulf %3, %51 : vector<32x512xf32>
    %53 = arith.addf %49, %52 : vector<32x512xf32>
    %c2_46 = arith.constant 2 : index
    %c2_47 = arith.constant 2 : index
    %c0_48 = arith.constant 0 : index
    %c0_49 = arith.constant 0 : index
    %54 = vector.load %arg2[%c2_46, %c2_47, %c0_48, %c0_49] : memref<5x5x32x512xf32, #tpu.memory_space<vmem>>, vector<1x1x32x512xf32>
    %55 = vector.shape_cast %54 : vector<1x1x32x512xf32> to vector<32x512xf32>
    %56 = arith.mulf %1, %55 : vector<32x512xf32>
    %57 = arith.addf %53, %56 : vector<32x512xf32>
    %c2_50 = arith.constant 2 : index
    %c3_51 = arith.constant 3 : index
    %c0_52 = arith.constant 0 : index
    %c0_53 = arith.constant 0 : index
    %58 = vector.load %arg2[%c2_50, %c3_51, %c0_52, %c0_53] : memref<5x5x32x512xf32, #tpu.memory_space<vmem>>, vector<1x1x32x512xf32>
    %59 = vector.shape_cast %58 : vector<1x1x32x512xf32> to vector<32x512xf32>
    %60 = arith.mulf %4, %59 : vector<32x512xf32>
    %61 = arith.addf %57, %60 : vector<32x512xf32>
    %c2_54 = arith.constant 2 : index
    %c4_55 = arith.constant 4 : index
    %c0_56 = arith.constant 0 : index
    %c0_57 = arith.constant 0 : index
    %62 = vector.load %arg2[%c2_54, %c4_55, %c0_56, %c0_57] : memref<5x5x32x512xf32, #tpu.memory_space<vmem>>, vector<1x1x32x512xf32>
    %63 = vector.shape_cast %62 : vector<1x1x32x512xf32> to vector<32x512xf32>
    %64 = arith.mulf %5, %63 : vector<32x512xf32>
    %65 = arith.addf %61, %64 : vector<32x512xf32>
    %66 = arith.addf %46, %65 : vector<32x512xf32>
    %c3_58 = arith.constant 3 : index
    %c0_59 = arith.constant 0 : index
    %c0_60 = arith.constant 0 : index
    %c0_61 = arith.constant 0 : index
    %67 = vector.load %arg2[%c3_58, %c0_59, %c0_60, %c0_61] : memref<5x5x32x512xf32, #tpu.memory_space<vmem>>, vector<1x1x32x512xf32>
    %68 = vector.shape_cast %67 : vector<1x1x32x512xf32> to vector<32x512xf32>
    %69 = arith.mulf %2, %68 : vector<32x512xf32>
    %c3_62 = arith.constant 3 : index
    %c1_63 = arith.constant 1 : index
    %c0_64 = arith.constant 0 : index
    %c0_65 = arith.constant 0 : index
    %70 = vector.load %arg2[%c3_62, %c1_63, %c0_64, %c0_65] : memref<5x5x32x512xf32, #tpu.memory_space<vmem>>, vector<1x1x32x512xf32>
    %71 = vector.shape_cast %70 : vector<1x1x32x512xf32> to vector<32x512xf32>
    %72 = arith.mulf %3, %71 : vector<32x512xf32>
    %73 = arith.addf %69, %72 : vector<32x512xf32>
    %c3_66 = arith.constant 3 : index
    %c2_67 = arith.constant 2 : index
    %c0_68 = arith.constant 0 : index
    %c0_69 = arith.constant 0 : index
    %74 = vector.load %arg2[%c3_66, %c2_67, %c0_68, %c0_69] : memref<5x5x32x512xf32, #tpu.memory_space<vmem>>, vector<1x1x32x512xf32>
    %75 = vector.shape_cast %74 : vector<1x1x32x512xf32> to vector<32x512xf32>
    %76 = arith.mulf %1, %75 : vector<32x512xf32>
    %77 = arith.addf %73, %76 : vector<32x512xf32>
    %c3_70 = arith.constant 3 : index
    %c3_71 = arith.constant 3 : index
    %c0_72 = arith.constant 0 : index
    %c0_73 = arith.constant 0 : index
    %78 = vector.load %arg2[%c3_70, %c3_71, %c0_72, %c0_73] : memref<5x5x32x512xf32, #tpu.memory_space<vmem>>, vector<1x1x32x512xf32>
    %79 = vector.shape_cast %78 : vector<1x1x32x512xf32> to vector<32x512xf32>
    %80 = arith.mulf %4, %79 : vector<32x512xf32>
    %81 = arith.addf %77, %80 : vector<32x512xf32>
    %c3_74 = arith.constant 3 : index
    %c4_75 = arith.constant 4 : index
    %c0_76 = arith.constant 0 : index
    %c0_77 = arith.constant 0 : index
    %82 = vector.load %arg2[%c3_74, %c4_75, %c0_76, %c0_77] : memref<5x5x32x512xf32, #tpu.memory_space<vmem>>, vector<1x1x32x512xf32>
    %83 = vector.shape_cast %82 : vector<1x1x32x512xf32> to vector<32x512xf32>
    %84 = arith.mulf %5, %83 : vector<32x512xf32>
    %85 = arith.addf %81, %84 : vector<32x512xf32>
    %c496_i32 = arith.constant 496 : i32
    %86 = tpu.dynamic_rotate %85 by %c496_i32 dim 1 : vector<32x512xf32>, i32 -> vector<32x512xf32>
    %87 = arith.addf %66, %86 : vector<32x512xf32>
    %c4_78 = arith.constant 4 : index
    %c0_79 = arith.constant 0 : index
    %c0_80 = arith.constant 0 : index
    %c0_81 = arith.constant 0 : index
    %88 = vector.load %arg2[%c4_78, %c0_79, %c0_80, %c0_81] : memref<5x5x32x512xf32, #tpu.memory_space<vmem>>, vector<1x1x32x512xf32>
    %89 = vector.shape_cast %88 : vector<1x1x32x512xf32> to vector<32x512xf32>
    %90 = arith.mulf %2, %89 : vector<32x512xf32>
    %c4_82 = arith.constant 4 : index
    %c1_83 = arith.constant 1 : index
    %c0_84 = arith.constant 0 : index
    %c0_85 = arith.constant 0 : index
    %91 = vector.load %arg2[%c4_82, %c1_83, %c0_84, %c0_85] : memref<5x5x32x512xf32, #tpu.memory_space<vmem>>, vector<1x1x32x512xf32>
    %92 = vector.shape_cast %91 : vector<1x1x32x512xf32> to vector<32x512xf32>
    %93 = arith.mulf %3, %92 : vector<32x512xf32>
    %94 = arith.addf %90, %93 : vector<32x512xf32>
    %c4_86 = arith.constant 4 : index
    %c2_87 = arith.constant 2 : index
    %c0_88 = arith.constant 0 : index
    %c0_89 = arith.constant 0 : index
    %95 = vector.load %arg2[%c4_86, %c2_87, %c0_88, %c0_89] : memref<5x5x32x512xf32, #tpu.memory_space<vmem>>, vector<1x1x32x512xf32>
    %96 = vector.shape_cast %95 : vector<1x1x32x512xf32> to vector<32x512xf32>
    %97 = arith.mulf %1, %96 : vector<32x512xf32>
    %98 = arith.addf %94, %97 : vector<32x512xf32>
    %c4_90 = arith.constant 4 : index
    %c3_91 = arith.constant 3 : index
    %c0_92 = arith.constant 0 : index
    %c0_93 = arith.constant 0 : index
    %99 = vector.load %arg2[%c4_90, %c3_91, %c0_92, %c0_93] : memref<5x5x32x512xf32, #tpu.memory_space<vmem>>, vector<1x1x32x512xf32>
    %100 = vector.shape_cast %99 : vector<1x1x32x512xf32> to vector<32x512xf32>
    %101 = arith.mulf %4, %100 : vector<32x512xf32>
    %102 = arith.addf %98, %101 : vector<32x512xf32>
    %c4_94 = arith.constant 4 : index
    %c4_95 = arith.constant 4 : index
    %c0_96 = arith.constant 0 : index
    %c0_97 = arith.constant 0 : index
    %103 = vector.load %arg2[%c4_94, %c4_95, %c0_96, %c0_97] : memref<5x5x32x512xf32, #tpu.memory_space<vmem>>, vector<1x1x32x512xf32>
    %104 = vector.shape_cast %103 : vector<1x1x32x512xf32> to vector<32x512xf32>
    %105 = arith.mulf %5, %104 : vector<32x512xf32>
    %106 = arith.addf %102, %105 : vector<32x512xf32>
    %c480_i32 = arith.constant 480 : i32
    %107 = tpu.dynamic_rotate %106 by %c480_i32 dim 1 : vector<32x512xf32>, i32 -> vector<32x512xf32>
    %108 = arith.addf %87, %107 : vector<32x512xf32>
    %c0_98 = arith.constant 0 : index
    %c0_99 = arith.constant 0 : index
    %109 = vector.load %arg3[%c0_98, %c0_99] : memref<32x1xf32, #tpu.memory_space<vmem>>, vector<32x1xf32>
    %110 = vector.broadcast %109 : vector<32x1xf32> to vector<32x512xf32>
    %111 = arith.addf %108, %110 : vector<32x512xf32>
    %cst = arith.constant 0.000000e+00 : f32
    %112 = vector.broadcast %cst : f32 to vector<32x512xf32>
    %113 = arith.maximumf %111, %112 : vector<32x512xf32>
    %c1_i32_100 = arith.constant 1 : i32
    %114 = tpu.dynamic_rotate %113 by %c1_i32_100 dim 1 : vector<32x512xf32>, i32 -> vector<32x512xf32>
    %c511_i32_101 = arith.constant 511 : i32
    %115 = tpu.dynamic_rotate %113 by %c511_i32_101 dim 1 : vector<32x512xf32>, i32 -> vector<32x512xf32>
    %c0_102 = arith.constant 0 : index
    %c0_103 = arith.constant 0 : index
    %c0_104 = arith.constant 0 : index
    %c0_105 = arith.constant 0 : index
    %116 = vector.load %arg4[%c0_102, %c0_103, %c0_104, %c0_105] : memref<3x3x32x512xf32, #tpu.memory_space<vmem>>, vector<1x1x32x512xf32>
    %117 = vector.shape_cast %116 : vector<1x1x32x512xf32> to vector<32x512xf32>
    %118 = arith.mulf %114, %117 : vector<32x512xf32>
    %c0_106 = arith.constant 0 : index
    %c1_107 = arith.constant 1 : index
    %c0_108 = arith.constant 0 : index
    %c0_109 = arith.constant 0 : index
    %119 = vector.load %arg4[%c0_106, %c1_107, %c0_108, %c0_109] : memref<3x3x32x512xf32, #tpu.memory_space<vmem>>, vector<1x1x32x512xf32>
    %120 = vector.shape_cast %119 : vector<1x1x32x512xf32> to vector<32x512xf32>
    %121 = arith.mulf %113, %120 : vector<32x512xf32>
    %122 = arith.addf %118, %121 : vector<32x512xf32>
    %c0_110 = arith.constant 0 : index
    %c2_111 = arith.constant 2 : index
    %c0_112 = arith.constant 0 : index
    %c0_113 = arith.constant 0 : index
    %123 = vector.load %arg4[%c0_110, %c2_111, %c0_112, %c0_113] : memref<3x3x32x512xf32, #tpu.memory_space<vmem>>, vector<1x1x32x512xf32>
    %124 = vector.shape_cast %123 : vector<1x1x32x512xf32> to vector<32x512xf32>
    %125 = arith.mulf %115, %124 : vector<32x512xf32>
    %126 = arith.addf %122, %125 : vector<32x512xf32>
    %c16_i32_114 = arith.constant 16 : i32
    %127 = tpu.dynamic_rotate %126 by %c16_i32_114 dim 1 : vector<32x512xf32>, i32 -> vector<32x512xf32>
    %c1_115 = arith.constant 1 : index
    %c0_116 = arith.constant 0 : index
    %c0_117 = arith.constant 0 : index
    %c0_118 = arith.constant 0 : index
    %128 = vector.load %arg4[%c1_115, %c0_116, %c0_117, %c0_118] : memref<3x3x32x512xf32, #tpu.memory_space<vmem>>, vector<1x1x32x512xf32>
    %129 = vector.shape_cast %128 : vector<1x1x32x512xf32> to vector<32x512xf32>
    %130 = arith.mulf %114, %129 : vector<32x512xf32>
    %c1_119 = arith.constant 1 : index
    %c1_120 = arith.constant 1 : index
    %c0_121 = arith.constant 0 : index
    %c0_122 = arith.constant 0 : index
    %131 = vector.load %arg4[%c1_119, %c1_120, %c0_121, %c0_122] : memref<3x3x32x512xf32, #tpu.memory_space<vmem>>, vector<1x1x32x512xf32>
    %132 = vector.shape_cast %131 : vector<1x1x32x512xf32> to vector<32x512xf32>
    %133 = arith.mulf %113, %132 : vector<32x512xf32>
    %134 = arith.addf %130, %133 : vector<32x512xf32>
    %c1_123 = arith.constant 1 : index
    %c2_124 = arith.constant 2 : index
    %c0_125 = arith.constant 0 : index
    %c0_126 = arith.constant 0 : index
    %135 = vector.load %arg4[%c1_123, %c2_124, %c0_125, %c0_126] : memref<3x3x32x512xf32, #tpu.memory_space<vmem>>, vector<1x1x32x512xf32>
    %136 = vector.shape_cast %135 : vector<1x1x32x512xf32> to vector<32x512xf32>
    %137 = arith.mulf %115, %136 : vector<32x512xf32>
    %138 = arith.addf %134, %137 : vector<32x512xf32>
    %139 = arith.addf %127, %138 : vector<32x512xf32>
    %c2_127 = arith.constant 2 : index
    %c0_128 = arith.constant 0 : index
    %c0_129 = arith.constant 0 : index
    %c0_130 = arith.constant 0 : index
    %140 = vector.load %arg4[%c2_127, %c0_128, %c0_129, %c0_130] : memref<3x3x32x512xf32, #tpu.memory_space<vmem>>, vector<1x1x32x512xf32>
    %141 = vector.shape_cast %140 : vector<1x1x32x512xf32> to vector<32x512xf32>
    %142 = arith.mulf %114, %141 : vector<32x512xf32>
    %c2_131 = arith.constant 2 : index
    %c1_132 = arith.constant 1 : index
    %c0_133 = arith.constant 0 : index
    %c0_134 = arith.constant 0 : index
    %143 = vector.load %arg4[%c2_131, %c1_132, %c0_133, %c0_134] : memref<3x3x32x512xf32, #tpu.memory_space<vmem>>, vector<1x1x32x512xf32>
    %144 = vector.shape_cast %143 : vector<1x1x32x512xf32> to vector<32x512xf32>
    %145 = arith.mulf %113, %144 : vector<32x512xf32>
    %146 = arith.addf %142, %145 : vector<32x512xf32>
    %c2_135 = arith.constant 2 : index
    %c2_136 = arith.constant 2 : index
    %c0_137 = arith.constant 0 : index
    %c0_138 = arith.constant 0 : index
    %147 = vector.load %arg4[%c2_135, %c2_136, %c0_137, %c0_138] : memref<3x3x32x512xf32, #tpu.memory_space<vmem>>, vector<1x1x32x512xf32>
    %148 = vector.shape_cast %147 : vector<1x1x32x512xf32> to vector<32x512xf32>
    %149 = arith.mulf %115, %148 : vector<32x512xf32>
    %150 = arith.addf %146, %149 : vector<32x512xf32>
    %c496_i32_139 = arith.constant 496 : i32
    %151 = tpu.dynamic_rotate %150 by %c496_i32_139 dim 1 : vector<32x512xf32>, i32 -> vector<32x512xf32>
    %152 = arith.addf %139, %151 : vector<32x512xf32>
    %c0_140 = arith.constant 0 : index
    %c0_141 = arith.constant 0 : index
    %153 = vector.load %arg5[%c0_140, %c0_141] : memref<32x1xf32, #tpu.memory_space<vmem>>, vector<32x1xf32>
    %154 = vector.broadcast %153 : vector<32x1xf32> to vector<32x512xf32>
    %155 = arith.addf %152, %154 : vector<32x512xf32>
    %cst_142 = arith.constant 0.000000e+00 : f32
    %156 = vector.broadcast %cst_142 : f32 to vector<32x512xf32>
    %157 = arith.maximumf %155, %156 : vector<32x512xf32>
    %c0_143 = arith.constant 0 : index
    %c0_144 = arith.constant 0 : index
    %158 = vector.load %arg6[%c0_143, %c0_144] : memref<128x32xbf16, #tpu.memory_space<vmem>>, vector<128x32xbf16>
    %159 = arith.truncf %157 : vector<32x512xf32> to vector<32x512xbf16>
    %cst_145 = arith.constant dense<0.000000e+00> : vector<128x512xf32>
    %160 = tpu.matmul %158, %159, %cst_145 {dimension_numbers = #tpu.dot_dimension_numbers<[1], [0], [0], [1], [0, 0, 1, 1], [], []>} : vector<128x32xbf16>, vector<32x512xbf16>, vector<128x512xf32> -> vector<128x512xf32>
    %c0_146 = arith.constant 0 : index
    %c0_147 = arith.constant 0 : index
    %161 = vector.load %arg7[%c0_146, %c0_147] : memref<128x1xf32, #tpu.memory_space<vmem>>, vector<128x1xf32>
    %162 = vector.broadcast %161 : vector<128x1xf32> to vector<128x512xf32>
    %163 = arith.addf %160, %162 : vector<128x512xf32>
    %cst_148 = arith.constant 0.000000e+00 : f32
    %164 = vector.broadcast %cst_148 : f32 to vector<128x512xf32>
    %165 = arith.maximumf %163, %164 : vector<128x512xf32>
    %c0_149 = arith.constant 0 : index
    %c0_150 = arith.constant 0 : index
    %166 = vector.load %arg8[%c0_149, %c0_150] : memref<32x128xbf16, #tpu.memory_space<vmem>>, vector<32x128xbf16>
    %167 = arith.truncf %165 : vector<128x512xf32> to vector<128x512xbf16>
    %cst_151 = arith.constant dense<0.000000e+00> : vector<32x512xf32>
    %168 = tpu.matmul %166, %167, %cst_151 {dimension_numbers = #tpu.dot_dimension_numbers<[1], [0], [0], [1], [0, 0, 1, 1], [], []>} : vector<32x128xbf16>, vector<128x512xbf16>, vector<32x512xf32> -> vector<32x512xf32>
    %c0_152 = arith.constant 0 : index
    %c0_153 = arith.constant 0 : index
    %169 = vector.load %arg9[%c0_152, %c0_153] : memref<32x1xf32, #tpu.memory_space<vmem>>, vector<32x1xf32>
    %170 = vector.broadcast %169 : vector<32x1xf32> to vector<32x512xf32>
    %171 = arith.addf %168, %170 : vector<32x512xf32>
    %172 = arith.addf %171, %1 : vector<32x512xf32>
    %c0_154 = arith.constant 0 : index
    %c0_155 = arith.constant 0 : index
    %c0_156 = arith.constant 0 : index
    %173 = vector.load %arg10[%c0_154, %c0_155, %c0_156] : memref<1x32x512xf32, #tpu.memory_space<vmem>>, vector<1x32x512xf32>
    %174 = vector.shape_cast %173 : vector<1x32x512xf32> to vector<32x512xf32>
    %175 = vector.shape_cast %172 : vector<32x512xf32> to vector<1x32x512xf32>
    tpu.vector_store %arg10[%c0_154, %c0_155, %c0_156], %175 {strides = array<i32>} : memref<1x32x512xf32, #tpu.memory_space<vmem>>, vector<1x32x512xf32>,
    return
  }
  func.func @transform_0(%arg0: i32) -> (i32, i32, i32) {
    %c0_i32 = arith.constant 0 : i32
    %c0_i32_0 = arith.constant 0 : i32
    %c0_i32_1 = arith.constant 0 : i32
    return %arg0, %c0_i32, %c0_i32_0 : i32, i32, i32
  }
  func.func @transform_1(%arg0: i32) -> (i32, i32, i32, i32) {
    %c0_i32 = arith.constant 0 : i32
    %c0_i32_0 = arith.constant 0 : i32
    %c0_i32_1 = arith.constant 0 : i32
    %c0_i32_2 = arith.constant 0 : i32
    %c0_i32_3 = arith.constant 0 : i32
    return %c0_i32, %c0_i32_0, %c0_i32_1, %c0_i32_2 : i32, i32, i32, i32
  }
  func.func @transform_2(%arg0: i32) -> (i32, i32) {
    %c0_i32 = arith.constant 0 : i32
    %c0_i32_0 = arith.constant 0 : i32
    %c0_i32_1 = arith.constant 0 : i32
    return %c0_i32, %c0_i32_0 : i32, i32
  }
  func.func @transform_3(%arg0: i32) -> (i32, i32, i32, i32) {
    %c0_i32 = arith.constant 0 : i32
    %c0_i32_0 = arith.constant 0 : i32
    %c0_i32_1 = arith.constant 0 : i32
    %c0_i32_2 = arith.constant 0 : i32
    %c0_i32_3 = arith.constant 0 : i32
    return %c0_i32, %c0_i32_0, %c0_i32_1, %c0_i32_2 : i32, i32, i32, i32
  }
  func.func @transform_4(%arg0: i32) -> (i32, i32) {
    %c0_i32 = arith.constant 0 : i32
    %c0_i32_0 = arith.constant 0 : i32
    %c0_i32_1 = arith.constant 0 : i32
    return %c0_i32, %c0_i32_0 : i32, i32
  }
  func.func @transform_5(%arg0: i32) -> (i32, i32) {
    %c0_i32 = arith.constant 0 : i32
    %c0_i32_0 = arith.constant 0 : i32
    %c0_i32_1 = arith.constant 0 : i32
    return %c0_i32, %c0_i32_0 : i32, i32
  }
  func.func @transform_6(%arg0: i32) -> (i32, i32) {
    %c0_i32 = arith.constant 0 : i32
    %c0_i32_0 = arith.constant 0 : i32
    %c0_i32_1 = arith.constant 0 : i32
    return %c0_i32, %c0_i32_0 : i32, i32
  }
  func.func @transform_7(%arg0: i32) -> (i32, i32) {
    %c0_i32 = arith.constant 0 : i32
    %c0_i32_0 = arith.constant 0 : i32
    %c0_i32_1 = arith.constant 0 : i32
    return %c0_i32, %c0_i32_0 : i32, i32
  }
  func.func @transform_8(%arg0: i32) -> (i32, i32) {
    %c0_i32 = arith.constant 0 : i32
    %c0_i32_0 = arith.constant 0 : i32
    %c0_i32_1 = arith.constant 0 : i32
    return %c0_i32, %c0_i32_0 : i32, i32
  }
  func.func @transform_9(%arg0: i32) -> (i32, i32, i32) {
    %c0_i32 = arith.constant 0 : i32
    %c0_i32_0 = arith.constant 0 : i32
    %c0_i32_1 = arith.constant 0 : i32
    return %arg0, %c0_i32, %c0_i32_0 : i32, i32, i32
  }
}

</mosaic_0001>

<llo_original>
// kernel: tpu_custom_call.1
$region0: #{tpu_custom_call.1}
  #allocation0 [shape = 'u32[]', space=smem, size = 0x4, offset = 0x4, fixed_abs, tag = 'smem constant byte address 0x4 - core index']
  #allocation1 [shape = 'u32[144,128]{1,0:T(1,128)}', space=vmem, size = 0x12000, scoped, tag = 'internal scratch']
  %s0 = inlined_call_operand.hbm [shape: f32[1,32,512], index: 0, kind: input, shape index: {}]
  %s1 = inlined_call_operand.hbm [shape: f32[5,5,32,512], index: 1, kind: input, shape index: {}]
  %s2 = inlined_call_operand.vmem [shape: f32[32,1], index: 2, kind: input, shape index: {}]
  %s3 = inlined_call_operand.hbm [shape: f32[3,3,32,512], index: 3, kind: input, shape index: {}]
  %s4 = inlined_call_operand.vmem [shape: f32[32,1], index: 4, kind: input, shape index: {}]
  %s5 = inlined_call_operand.vmem [shape: bf16[128,32], index: 5, kind: input, shape index: {}]
  %s6 = inlined_call_operand.vmem [shape: f32[128,1], index: 6, kind: input, shape index: {}]
  %s7 = inlined_call_operand.hbm [shape: bf16[32,128], index: 7, kind: input, shape index: {}]
  %s8 = inlined_call_operand.vmem [shape: f32[32,1], index: 8, kind: input, shape index: {}]
  %s9 = inlined_call_operand.hbm [shape: f32[1,32,512], index: 9, kind: output, shape index: {}]
  %s10 = sld [smem:[#allocation0]]
  $region62: #{tpu_custom_call.1} parent=0
    _
  %s12 = ssub.s32 1, %s10
  %s13 = scalar_select 0, %s12, %s10
  $region1: #{tpu_custom_call.1} parent=0
    #allocation2 [shape = 'u8[65536]{0}', space=vmem, size = 0x10000, scoped, tag = 'input window, operand 0, single buffered']
    #allocation3 [shape = 's32[1]{0}', space=sflag, size = 0x4, scoped, tag = 'scoped memory for tpu_custom_call.1']
    #allocation4 [shape = 's32[1]{0}', space=sflag, size = 0x4, scoped, tag = 'scoped memory for tpu_custom_call.1']
    #allocation5 [shape = 'u8[1638400]{0}', space=vmem, size = 0x190000, scoped, tag = 'input window, operand 1, single buffered']
    #allocation6 [shape = 's32[1]{0}', space=sflag, size = 0x4, scoped, tag = 'scoped memory for tpu_custom_call.1']
    #allocation7 [shape = 'u8[589824]{0}', space=vmem, size = 0x90000, scoped, tag = 'input window, operand 3, single buffered']
    #allocation8 [shape = 'u8[8192]{0}', space=vmem, size = 0x2000, scoped, tag = 'input window, operand 7, single buffered']
    #allocation9 [shape = 's32[1]{0}', space=sflag, size = 0x4, scoped, tag = 'scoped memory for tpu_custom_call.1']
    #allocation10 [shape = 'u8[65536]{0}', space=vmem, size = 0x10000, scoped, tag = 'output window, operand 0, single buffered']
    %14 = vsyncpa [#allocation3], 0
    %15 = vsyncpa [#allocation6], 0
    %16 = vsyncpa [#allocation9], 0
    %17 = vsyncpa [#allocation4], 0
    // Predicated region
    $region2: #{tpu_custom_call.1} parent=1 // pred_check
      _
    $region3: #{tpu_custom_call.1} parent=1 // pred_check_branch
      %19 = sbr.rel (0) target = $region5
    $region4: #{tpu_custom_call.1} parent=1 // pred_region
      %s21 = ssub.s32 2048, 2048
      %22 = vsyncadd [#allocation3], %s21
      %s23 = sshll.u32 [#allocation2], 4
      %s24 = int_to_ptr.vmem [resolvable:$true] %s23
      %29 = dma.hbm_to_vmem [thread:$0]  %s0, 2048, %s24, [#allocation3], 512, 512, 32
    $region5: #{tpu_custom_call.1} parent=1 // pred_fallthru
      _
    // Predicated region
    $region6: #{tpu_custom_call.1} parent=1 // pred_check
      _
    $region7: #{tpu_custom_call.1} parent=1 // pred_check_branch
      %31 = sbr.rel (0) target = $region9
    $region8: #{tpu_custom_call.1} parent=1 // pred_region
      %s33 = ssub.s32 51200, 51200
      %34 = vsyncadd [#allocation6], %s33
      %s35 = sshll.u32 [#allocation5], 4
      %s36 = int_to_ptr.vmem [resolvable:$true] %s35
      %41 = dma.hbm_to_vmem [thread:$0]  %s1, 51200, %s36, [#allocation6], 512, 512, 32
    $region9: #{tpu_custom_call.1} parent=1 // pred_fallthru
      _
    // Predicated region
    $region10: #{tpu_custom_call.1} parent=1 // pred_check
      _
    $region11: #{tpu_custom_call.1} parent=1 // pred_check_branch
      %43 = sbr.rel (0) target = $region13
    $region12: #{tpu_custom_call.1} parent=1 // pred_region
      _
    $region13: #{tpu_custom_call.1} parent=1 // pred_fallthru
      _
    // Predicated region
    $region14: #{tpu_custom_call.1} parent=1 // pred_check
      _
    $region15: #{tpu_custom_call.1} parent=1 // pred_check_branch
      %45 = sbr.rel (0) target = $region17
    $region16: #{tpu_custom_call.1} parent=1 // pred_region
      %s47 = ssub.s32 18432, 18432
      %48 = vsyncadd [#allocation6], %s47
      %s49 = sshll.u32 [#allocation7], 4
      %s50 = int_to_ptr.vmem [resolvable:$true] %s49
      %55 = dma.hbm_to_vmem [thread:$0]  %s3, 18432, %s50, [#allocation6], 512, 512, 32
    $region17: #{tpu_custom_call.1} parent=1 // pred_fallthru
      _
    // Predicated region
    $region18: #{tpu_custom_call.1} parent=1 // pred_check
      _
    $region19: #{tpu_custom_call.1} parent=1 // pred_check_branch
      %57 = sbr.rel (0) target = $region21
    $region20: #{tpu_custom_call.1} parent=1 // pred_region
      _
    $region21: #{tpu_custom_call.1} parent=1 // pred_fallthru
      _
    // Predicated region
    $region22: #{tpu_custom_call.1} parent=1 // pred_check
      _
    $region23: #{tpu_custom_call.1} parent=1 // pred_check_branch
      %59 = sbr.rel (0) target = $region25
    $region24: #{tpu_custom_call.1} parent=1 // pred_region
      _
    $region25: #{tpu_custom_call.1} parent=1 // pred_fallthru
      _
    // Predicated region
    $region26: #{tpu_custom_call.1} parent=1 // pred_check
      _
    $region27: #{tpu_custom_call.1} parent=1 // pred_check_branch
      %61 = sbr.rel (0) target = $region29
    $region28: #{tpu_custom_call.1} parent=1 // pred_region
      _
    $region29: #{tpu_custom_call.1} parent=1 // pred_fallthru
      _
    // Predicated region
    $region30: #{tpu_custom_call.1} parent=1 // pred_check
      _
    $region31: #{tpu_custom_call.1} parent=1 // pred_check_branch
      %63 = sbr.rel (0) target = $region33
    $region32: #{tpu_custom_call.1} parent=1 // pred_region
      %s65 = ssub.s32 256, 256
      %66 = vsyncadd [#allocation9], %s65
      %s67 = sshll.u32 [#allocation8], 4
      %s68 = int_to_ptr.vmem [resolvable:$true] %s67
      %73 = dma.hbm_to_vmem [thread:$0]  %s7, 256, %s68, [#allocation9], 64, 64, 4
    $region33: #{tpu_custom_call.1} parent=1 // pred_fallthru
      _
    // Predicated region
    $region34: #{tpu_custom_call.1} parent=1 // pred_check
      _
    $region35: #{tpu_custom_call.1} parent=1 // pred_check_branch
      %75 = sbr.rel (0) target = $region37
    $region36: #{tpu_custom_call.1} parent=1 // pred_region
      _
    $region37: #{tpu_custom_call.1} parent=1 // pred_fallthru
      _
    // Predicated region
    $region38: #{tpu_custom_call.1} parent=1 // pred_check
      _
    $region39: #{tpu_custom_call.1} parent=1 // pred_check_branch
      %77 = sbr.rel (0) target = $region41
    $region40: #{tpu_custom_call.1} parent=1 // pred_region
      %78 = dma.done [#allocation3], 2048
    $region41: #{tpu_custom_call.1} parent=1 // pred_fallthru
      _
    // Predicated region
    $region42: #{tpu_custom_call.1} parent=1 // pred_check
      _
    $region43: #{tpu_custom_call.1} parent=1 // pred_check_branch
      %80 = sbr.rel (0) target = $region45
    $region44: #{tpu_custom_call.1} parent=1 // pred_region
      %81 = dma.done [#allocation6], 51200
    $region45: #{tpu_custom_call.1} parent=1 // pred_fallthru
      _
    // Predicated region
    $region46: #{tpu_custom_call.1} parent=1 // pred_check
      _
    $region47: #{tpu_custom_call.1} parent=1 // pred_check_branch
      %83 = sbr.rel (0) target = $region49
    $region48: #{tpu_custom_call.1} parent=1 // pred_region
      %84 = dma.done [#allocation6], 18432
    $region49: #{tpu_custom_call.1} parent=1 // pred_fallthru
      _
    // Predicated region
    $region50: #{tpu_custom_call.1} parent=1 // pred_check
      _
    $region51: #{tpu_custom_call.1} parent=1 // pred_check_branch
      %86 = sbr.rel (0) target = $region53
    $region52: #{tpu_custom_call.1} parent=1 // pred_region
      %87 = dma.done [#allocation9], 256
    $region53: #{tpu_custom_call.1} parent=1 // pred_fallthru
      _
    %v89 = vld [vmem:[#allocation2] sm:$0xff]
    %v90 = vld [vmem:[#allocation2 + $0x8] sm:$0xff]
    %v91 = vld [vmem:[#allocation2 + $0x10] sm:$0xff]
    %v92 = vld [vmem:[#allocation2 + $0x18] sm:$0xff]
    %v93 = vld [vmem:[#allocation2 + $0x20] sm:$0xff]
    %v94 = vld [vmem:[#allocation2 + $0x28] sm:$0xff]
    %v95 = vld [vmem:[#allocation2 + $0x30] sm:$0xff]
    %v96 = vld [vmem:[#allocation2 + $0x38] sm:$0xff]
    %v97 = vld [vmem:[#allocation2 + $0x40] sm:$0xff]
    %v98 = vld [vmem:[#allocation2 + $0x48] sm:$0xff]
    %v99 = vld [vmem:[#allocation2 + $0x50] sm:$0xff]
    %v100 = vld [vmem:[#allocation2 + $0x58] sm:$0xff]
    %v101 = vld [vmem:[#allocation2 + $0x60] sm:$0xff]
    %v102 = vld [vmem:[#allocation2 + $0x68] sm:$0xff]
    %v103 = vld [vmem:[#allocation2 + $0x70] sm:$0xff]
    %v104 = vld [vmem:[#allocation2 + $0x78] sm:$0xff]
    %105 = vrot.lane.b32.xlu0 %v89, 2
    %v106 = vpop.permute.xlu0 %105
    %107 = vrot.lane.b32.xlu0 %v93, 2
    %v108 = vpop.permute.xlu0 %107
    %109 = vrot.lane.b32.xlu0 %v97, 2
    %v110 = vpop.permute.xlu0 %109
    %111 = vrot.lane.b32.xlu0 %v101, 2
    %v112 = vpop.permute.xlu0 %111
    %113 = vrot.lane.b32.xlu0 %v90, 2
    %v114 = vpop.permute.xlu0 %113
    %115 = vrot.lane.b32.xlu0 %v94, 2
    %v116 = vpop.permute.xlu0 %115
    %117 = vrot.lane.b32.xlu0 %v98, 2
    %v118 = vpop.permute.xlu0 %117
    %119 = vrot.lane.b32.xlu0 %v102, 2
    %v120 = vpop.permute.xlu0 %119
    %121 = vrot.lane.b32.xlu0 %v91, 2
    %v122 = vpop.permute.xlu0 %121
    %123 = vrot.lane.b32.xlu0 %v95, 2
    %v124 = vpop.permute.xlu0 %123
    %125 = vrot.lane.b32.xlu0 %v99, 2
    %v126 = vpop.permute.xlu0 %125
    %127 = vrot.lane.b32.xlu0 %v103, 2
    %v128 = vpop.permute.xlu0 %127
    %129 = vrot.lane.b32.xlu0 %v92, 2
    %v130 = vpop.permute.xlu0 %129
    %131 = vrot.lane.b32.xlu0 %v96, 2
    %v132 = vpop.permute.xlu0 %131
    %133 = vrot.lane.b32.xlu0 %v100, 2
    %v134 = vpop.permute.xlu0 %133
    %135 = vrot.lane.b32.xlu0 %v104, 2
    %v136 = vpop.permute.xlu0 %135
    %v137 = vlaneseq
    %v138 = vand.u32 %v137, 127
    %vm139 = vcmp.lt.s32.totalorder %v138, 2
    %v140 = vsel %vm139, %v122, %v130
    %v141 = vsel %vm139, %v124, %v132
    %v142 = vsel %vm139, %v126, %v134
    %v143 = vsel %vm139, %v128, %v136
    %v144 = vsel %vm139, %v114, %v122
    %v145 = vsel %vm139, %v116, %v124
    %v146 = vsel %vm139, %v118, %v126
    %v147 = vsel %vm139, %v120, %v128
    %v148 = vsel %vm139, %v106, %v114
    %v149 = vsel %vm139, %v108, %v116
    %v150 = vsel %vm139, %v110, %v118
    %v151 = vsel %vm139, %v112, %v120
    %v152 = vsel %vm139, %v130, %v106
    %v153 = vsel %vm139, %v132, %v108
    %v154 = vsel %vm139, %v134, %v110
    %v155 = vsel %vm139, %v136, %v112
    %156 = vrot.lane.b32.xlu0 %v89, 1
    %v157 = vpop.permute.xlu0 %156
    %158 = vrot.lane.b32.xlu0 %v93, 1
    %v159 = vpop.permute.xlu0 %158
    %160 = vrot.lane.b32.xlu0 %v97, 1
    %v161 = vpop.permute.xlu0 %160
    %162 = vrot.lane.b32.xlu0 %v101, 1
    %v163 = vpop.permute.xlu0 %162
    %164 = vrot.lane.b32.xlu0 %v90, 1
    %v165 = vpop.permute.xlu0 %164
    %166 = vrot.lane.b32.xlu0 %v94, 1
    %v167 = vpop.permute.xlu0 %166
    %168 = vrot.lane.b32.xlu0 %v98, 1
    %v169 = vpop.permute.xlu0 %168
    %170 = vrot.lane.b32.xlu0 %v102, 1
    %v171 = vpop.permute.xlu0 %170
    %172 = vrot.lane.b32.xlu0 %v91, 1
    %v173 = vpop.permute.xlu0 %172
    %174 = vrot.lane.b32.xlu0 %v95, 1
    %v175 = vpop.permute.xlu0 %174
    %176 = vrot.lane.b32.xlu0 %v99, 1
    %v177 = vpop.permute.xlu0 %176
    %178 = vrot.lane.b32.xlu0 %v103, 1
    %v179 = vpop.permute.xlu0 %178
    %180 = vrot.lane.b32.xlu0 %v92, 1
    %v181 = vpop.permute.xlu0 %180
    %182 = vrot.lane.b32.xlu0 %v96, 1
    %v183 = vpop.permute.xlu0 %182
    %184 = vrot.lane.b32.xlu0 %v100, 1
    %v185 = vpop.permute.xlu0 %184
    %186 = vrot.lane.b32.xlu0 %v104, 1
    %v187 = vpop.permute.xlu0 %186
    %vm188 = vcmp.lt.s32.totalorder %v138, 1
    %v189 = vsel %vm188, %v173, %v181
    %v190 = vsel %vm188, %v175, %v183
    %v191 = vsel %vm188, %v177, %v185
    %v192 = vsel %vm188, %v179, %v187
    %v193 = vsel %vm188, %v165, %v173
    %v194 = vsel %vm188, %v167, %v175
    %v195 = vsel %vm188, %v169, %v177
    %v196 = vsel %vm188, %v171, %v179
    %v197 = vsel %vm188, %v157, %v165
    %v198 = vsel %vm188, %v159, %v167
    %v199 = vsel %vm188, %v161, %v169
    %v200 = vsel %vm188, %v163, %v171
    %v201 = vsel %vm188, %v181, %v157
    %v202 = vsel %vm188, %v183, %v159
    %v203 = vsel %vm188, %v185, %v161
    %v204 = vsel %vm188, %v187, %v163
    %205 = vrot.lane.b32.xlu0 %v89, 127
    %v206 = vpop.permute.xlu0 %205
    %207 = vrot.lane.b32.xlu0 %v93, 127
    %v208 = vpop.permute.xlu0 %207
    %209 = vrot.lane.b32.xlu0 %v97, 127
    %v210 = vpop.permute.xlu0 %209
    %211 = vrot.lane.b32.xlu0 %v101, 127
    %v212 = vpop.permute.xlu0 %211
    %213 = vrot.lane.b32.xlu0 %v90, 127
    %v214 = vpop.permute.xlu0 %213
    %215 = vrot.lane.b32.xlu0 %v94, 127
    %v216 = vpop.permute.xlu0 %215
    %217 = vrot.lane.b32.xlu0 %v98, 127
    %v218 = vpop.permute.xlu0 %217
    %219 = vrot.lane.b32.xlu0 %v102, 127
    %v220 = vpop.permute.xlu0 %219
    %221 = vrot.lane.b32.xlu0 %v91, 127
    %v222 = vpop.permute.xlu0 %221
    %223 = vrot.lane.b32.xlu0 %v95, 127
    %v224 = vpop.permute.xlu0 %223
    %225 = vrot.lane.b32.xlu0 %v99, 127
    %v226 = vpop.permute.xlu0 %225
    %227 = vrot.lane.b32.xlu0 %v103, 127
    %v228 = vpop.permute.xlu0 %227
    %229 = vrot.lane.b32.xlu0 %v92, 127
    %v230 = vpop.permute.xlu0 %229
    %231 = vrot.lane.b32.xlu0 %v96, 127
    %v232 = vpop.permute.xlu0 %231
    %233 = vrot.lane.b32.xlu0 %v100, 127
    %v234 = vpop.permute.xlu0 %233
    %235 = vrot.lane.b32.xlu0 %v104, 127
    %v236 = vpop.permute.xlu0 %235
    %vm237 = vcmp.lt.s32.totalorder %v138, 127
    %v238 = vsel %vm237, %v222, %v230
    %v239 = vsel %vm237, %v224, %v232
    %v240 = vsel %vm237, %v226, %v234
    %v241 = vsel %vm237, %v228, %v236
    %v242 = vsel %vm237, %v214, %v222
    %v243 = vsel %vm237, %v216, %v224
    %v244 = vsel %vm237, %v218, %v226
    %v245 = vsel %vm237, %v220, %v228
    %v246 = vsel %vm237, %v206, %v214
    %v247 = vsel %vm237, %v208, %v216
    %v248 = vsel %vm237, %v210, %v218
    %v249 = vsel %vm237, %v212, %v220
    %v250 = vsel %vm237, %v230, %v206
    %v251 = vsel %vm237, %v232, %v208
    %v252 = vsel %vm237, %v234, %v210
    %v253 = vsel %vm237, %v236, %v212
    %254 = vrot.lane.b32.xlu0 %v89, 126
    %v255 = vpop.permute.xlu0 %254
    %256 = vrot.lane.b32.xlu0 %v93, 126
    %v257 = vpop.permute.xlu0 %256
    %258 = vrot.lane.b32.xlu0 %v97, 126
    %v259 = vpop.permute.xlu0 %258
    %260 = vrot.lane.b32.xlu0 %v101, 126
    %v261 = vpop.permute.xlu0 %260
    %262 = vrot.lane.b32.xlu0 %v90, 126
    %v263 = vpop.permute.xlu0 %262
    %264 = vrot.lane.b32.xlu0 %v94, 126
    %v265 = vpop.permute.xlu0 %264
    %266 = vrot.lane.b32.xlu0 %v98, 126
    %v267 = vpop.permute.xlu0 %266
    %268 = vrot.lane.b32.xlu0 %v102, 126
    %v269 = vpop.permute.xlu0 %268
    %270 = vrot.lane.b32.xlu0 %v91, 126
    %v271 = vpop.permute.xlu0 %270
    %272 = vrot.lane.b32.xlu0 %v95, 126
    %v273 = vpop.permute.xlu0 %272
    %274 = vrot.lane.b32.xlu0 %v99, 126
    %v275 = vpop.permute.xlu0 %274
    %276 = vrot.lane.b32.xlu0 %v103, 126
    %v277 = vpop.permute.xlu0 %276
    %278 = vrot.lane.b32.xlu0 %v92, 126
    %v279 = vpop.permute.xlu0 %278
    %280 = vrot.lane.b32.xlu0 %v96, 126
    %v281 = vpop.permute.xlu0 %280
    %282 = vrot.lane.b32.xlu0 %v100, 126
    %v283 = vpop.permute.xlu0 %282
    %284 = vrot.lane.b32.xlu0 %v104, 126
    %v285 = vpop.permute.xlu0 %284
    %vm286 = vcmp.lt.s32.totalorder %v138, 126
    %v287 = vsel %vm286, %v271, %v279
    %v288 = vsel %vm286, %v273, %v281
    %v289 = vsel %vm286, %v275, %v283
    %v290 = vsel %vm286, %v277, %v285
    %v291 = vsel %vm286, %v263, %v271
    %v292 = vsel %vm286, %v265, %v273
    %v293 = vsel %vm286, %v267, %v275
    %v294 = vsel %vm286, %v269, %v277
    %v295 = vsel %vm286, %v255, %v263
    %v296 = vsel %vm286, %v257, %v265
    %v297 = vsel %vm286, %v259, %v267
    %v298 = vsel %vm286, %v261, %v269
    %v299 = vsel %vm286, %v279, %v255
    %v300 = vsel %vm286, %v281, %v257
    %v301 = vsel %vm286, %v283, %v259
    %v302 = vsel %vm286, %v285, %v261
    %v303 = vld [vmem:[#allocation5] sm:$0xff]
    %v304 = vld [vmem:[#allocation5 + $0x8] sm:$0xff]
    %v305 = vld [vmem:[#allocation5 + $0x10] sm:$0xff]
    %v306 = vld [vmem:[#allocation5 + $0x18] sm:$0xff]
    %v307 = vld [vmem:[#allocation5 + $0x20] sm:$0xff]
    %v308 = vld [vmem:[#allocation5 + $0x28] sm:$0xff]
    %v309 = vld [vmem:[#allocation5 + $0x30] sm:$0xff]
    %v310 = vld [vmem:[#allocation5 + $0x38] sm:$0xff]
    %v311 = vld [vmem:[#allocation5 + $0x40] sm:$0xff]
    %v312 = vld [vmem:[#allocation5 + $0x48] sm:$0xff]
    %v313 = vld [vmem:[#allocation5 + $0x50] sm:$0xff]
    %v314 = vld [vmem:[#allocation5 + $0x58] sm:$0xff]
    %v315 = vld [vmem:[#allocation5 + $0x60] sm:$0xff]
    %v316 = vld [vmem:[#allocation5 + $0x68] sm:$0xff]
    %v317 = vld [vmem:[#allocation5 + $0x70] sm:$0xff]
    %v318 = vld [vmem:[#allocation5 + $0x78] sm:$0xff]
    %v319 = vmul.f32 %v152, %v303
    %v320 = vmul.f32 %v148, %v304
    %v321 = vmul.f32 %v144, %v305
    %v322 = vmul.f32 %v140, %v306
    %v323 = vmul.f32 %v153, %v307
    %v324 = vmul.f32 %v149, %v308
    %v325 = vmul.f32 %v145, %v309
    %v326 = vmul.f32 %v141, %v310
    %v327 = vmul.f32 %v154, %v311
    %v328 = vmul.f32 %v150, %v312
    %v329 = vmul.f32 %v146, %v313
    %v330 = vmul.f32 %v142, %v314
    %v331 = vmul.f32 %v155, %v315
    %v332 = vmul.f32 %v151, %v316
    %v333 = vmul.f32 %v147, %v317
    %v334 = vmul.f32 %v143, %v318
    %s335 = scalar_lea.vmem [#allocation5], 128
    %v336 = vld [vmem:[%s335] sm:$0xff]
    %v337 = vld [vmem:[%s335 + $0x8] sm:$0xff]
    %v338 = vld [vmem:[%s335 + $0x10] sm:$0xff]
    %v339 = vld [vmem:[%s335 + $0x18] sm:$0xff]
    %v340 = vld [vmem:[%s335 + $0x20] sm:$0xff]
    %v341 = vld [vmem:[%s335 + $0x28] sm:$0xff]
    %v342 = vld [vmem:[%s335 + $0x30] sm:$0xff]
    %v343 = vld [vmem:[%s335 + $0x38] sm:$0xff]
    %v344 = vld [vmem:[%s335 + $0x40] sm:$0xff]
    %v345 = vld [vmem:[%s335 + $0x48] sm:$0xff]
    %v346 = vld [vmem:[%s335 + $0x50] sm:$0xff]
    %v347 = vld [vmem:[%s335 + $0x58] sm:$0xff]
    %v348 = vld [vmem:[%s335 + $0x60] sm:$0xff]
    %v349 = vld [vmem:[%s335 + $0x68] sm:$0xff]
    %v350 = vld [vmem:[%s335 + $0x70] sm:$0xff]
    %v351 = vld [vmem:[%s335 + $0x78] sm:$0xff]
    %v352 = vmul.f32 %v201, %v336
    %v353 = vmul.f32 %v197, %v337
    %v354 = vmul.f32 %v193, %v338
    %v355 = vmul.f32 %v189, %v339
    %v356 = vmul.f32 %v202, %v340
    %v357 = vmul.f32 %v198, %v341
    %v358 = vmul.f32 %v194, %v342
    %v359 = vmul.f32 %v190, %v343
    %v360 = vmul.f32 %v203, %v344
    %v361 = vmul.f32 %v199, %v345
    %v362 = vmul.f32 %v195, %v346
    %v363 = vmul.f32 %v191, %v347
    %v364 = vmul.f32 %v204, %v348
    %v365 = vmul.f32 %v200, %v349
    %v366 = vmul.f32 %v196, %v350
    %v367 = vmul.f32 %v192, %v351
    %v368 = vadd.f32 %v319, %v352
    %v369 = vadd.f32 %v320, %v353
    %v370 = vadd.f32 %v321, %v354
    %v371 = vadd.f32 %v322, %v355
    %v372 = vadd.f32 %v323, %v356
    %v373 = vadd.f32 %v324, %v357
    %v374 = vadd.f32 %v325, %v358
    %v375 = vadd.f32 %v326, %v359
    %v376 = vadd.f32 %v327, %v360
    %v377 = vadd.f32 %v328, %v361
    %v378 = vadd.f32 %v329, %v362
    %v379 = vadd.f32 %v330, %v363
    %v380 = vadd.f32 %v331, %v364
    %v381 = vadd.f32 %v332, %v365
    %v382 = vadd.f32 %v333, %v366
    %v383 = vadd.f32 %v334, %v367
    %s384 = scalar_lea.vmem [#allocation5], 256
    %v385 = vld [vmem:[%s384] sm:$0xff]
    %v386 = vld [vmem:[%s384 + $0x8] sm:$0xff]
    %v387 = vld [vmem:[%s384 + $0x10] sm:$0xff]
    %v388 = vld [vmem:[%s384 + $0x18] sm:$0xff]
    %v389 = vld [vmem:[%s384 + $0x20] sm:$0xff]
    %v390 = vld [vmem:[%s384 + $0x28] sm:$0xff]
    %v391 = vld [vmem:[%s384 + $0x30] sm:$0xff]
    %v392 = vld [vmem:[%s384 + $0x38] sm:$0xff]
    %v393 = vld [vmem:[%s384 + $0x40] sm:$0xff]
    %v394 = vld [vmem:[%s384 + $0x48] sm:$0xff]
    %v395 = vld [vmem:[%s384 + $0x50] sm:$0xff]
    %v396 = vld [vmem:[%s384 + $0x58] sm:$0xff]
    %v397 = vld [vmem:[%s384 + $0x60] sm:$0xff]
    %v398 = vld [vmem:[%s384 + $0x68] sm:$0xff]
    %v399 = vld [vmem:[%s384 + $0x70] sm:$0xff]
    %v400 = vld [vmem:[%s384 + $0x78] sm:$0xff]
    %v401 = vmul.f32 %v89, %v385
    %v402 = vmul.f32 %v90, %v386
    %v403 = vmul.f32 %v91, %v387
    %v404 = vmul.f32 %v92, %v388
    %v405 = vmul.f32 %v93, %v389
    %v406 = vmul.f32 %v94, %v390
    %v407 = vmul.f32 %v95, %v391
    %v408 = vmul.f32 %v96, %v392
    %v409 = vmul.f32 %v97, %v393
    %v410 = vmul.f32 %v98, %v394
    %v411 = vmul.f32 %v99, %v395
    %v412 = vmul.f32 %v100, %v396
    %v413 = vmul.f32 %v101, %v397
    %v414 = vmul.f32 %v102, %v398
    %v415 = vmul.f32 %v103, %v399
    %v416 = vmul.f32 %v104, %v400
    %v417 = vadd.f32 %v368, %v401
    %v418 = vadd.f32 %v369, %v402
    %v419 = vadd.f32 %v370, %v403
    %v420 = vadd.f32 %v371, %v404
    %v421 = vadd.f32 %v372, %v405
    %v422 = vadd.f32 %v373, %v406
    %v423 = vadd.f32 %v374, %v407
    %v424 = vadd.f32 %v375, %v408
    %v425 = vadd.f32 %v376, %v409
    %v426 = vadd.f32 %v377, %v410
    %v427 = vadd.f32 %v378, %v411
    %v428 = vadd.f32 %v379, %v412
    %v429 = vadd.f32 %v380, %v413
    %v430 = vadd.f32 %v381, %v414
    %v431 = vadd.f32 %v382, %v415
    %v432 = vadd.f32 %v383, %v416
    %s433 = scalar_lea.vmem [#allocation5], 384
    %v434 = vld [vmem:[%s433] sm:$0xff]
    %v435 = vld [vmem:[%s433 + $0x8] sm:$0xff]
    %v436 = vld [vmem:[%s433 + $0x10] sm:$0xff]
    %v437 = vld [vmem:[%s433 + $0x18] sm:$0xff]
    %v438 = vld [vmem:[%s433 + $0x20] sm:$0xff]
    %v439 = vld [vmem:[%s433 + $0x28] sm:$0xff]
    %v440 = vld [vmem:[%s433 + $0x30] sm:$0xff]
    %v441 = vld [vmem:[%s433 + $0x38] sm:$0xff]
    %v442 = vld [vmem:[%s433 + $0x40] sm:$0xff]
    %v443 = vld [vmem:[%s433 + $0x48] sm:$0xff]
    %v444 = vld [vmem:[%s433 + $0x50] sm:$0xff]
    %v445 = vld [vmem:[%s433 + $0x58] sm:$0xff]
    %v446 = vld [vmem:[%s433 + $0x60] sm:$0xff]
    %v447 = vld [vmem:[%s433 + $0x68] sm:$0xff]
    %v448 = vld [vmem:[%s433 + $0x70] sm:$0xff]
    %v449 = vld [vmem:[%s433 + $0x78] sm:$0xff]
    %v450 = vmul.f32 %v246, %v434
    %v451 = vmul.f32 %v242, %v435
    %v452 = vmul.f32 %v238, %v436
    %v453 = vmul.f32 %v250, %v437
    %v454 = vmul.f32 %v247, %v438
    %v455 = vmul.f32 %v243, %v439
    %v456 = vmul.f32 %v239, %v440
    %v457 = vmul.f32 %v251, %v441
    %v458 = vmul.f32 %v248, %v442
    %v459 = vmul.f32 %v244, %v443
    %v460 = vmul.f32 %v240, %v444
    %v461 = vmul.f32 %v252, %v445
    %v462 = vmul.f32 %v249, %v446
    %v463 = vmul.f32 %v245, %v447
    %v464 = vmul.f32 %v241, %v448
    %v465 = vmul.f32 %v253, %v449
    %v466 = vadd.f32 %v417, %v450
    %v467 = vadd.f32 %v418, %v451
    %v468 = vadd.f32 %v419, %v452
    %v469 = vadd.f32 %v420, %v453
    %v470 = vadd.f32 %v421, %v454
    %v471 = vadd.f32 %v422, %v455
    %v472 = vadd.f32 %v423, %v456
    %v473 = vadd.f32 %v424, %v457
    %v474 = vadd.f32 %v425, %v458
    %v475 = vadd.f32 %v426, %v459
    %v476 = vadd.f32 %v427, %v460
    %v477 = vadd.f32 %v428, %v461
    %v478 = vadd.f32 %v429, %v462
    %v479 = vadd.f32 %v430, %v463
    %v480 = vadd.f32 %v431, %v464
    %v481 = vadd.f32 %v432, %v465
    %s482 = scalar_lea.vmem [#allocation5], 512
    %v483 = vld [vmem:[%s482] sm:$0xff]
    %v484 = vld [vmem:[%s482 + $0x8] sm:$0xff]
    %v485 = vld [vmem:[%s482 + $0x10] sm:$0xff]
    %v486 = vld [vmem:[%s482 + $0x18] sm:$0xff]
    %v487 = vld [vmem:[%s482 + $0x20] sm:$0xff]
    %v488 = vld [vmem:[%s482 + $0x28] sm:$0xff]
    %v489 = vld [vmem:[%s482 + $0x30] sm:$0xff]
    %v490 = vld [vmem:[%s482 + $0x38] sm:$0xff]
    %v491 = vld [vmem:[%s482 + $0x40] sm:$0xff]
    %v492 = vld [vmem:[%s482 + $0x48] sm:$0xff]
    %v493 = vld [vmem:[%s482 + $0x50] sm:$0xff]
    %v494 = vld [vmem:[%s482 + $0x58] sm:$0xff]
    %v495 = vld [vmem:[%s482 + $0x60] sm:$0xff]
    %v496 = vld [vmem:[%s482 + $0x68] sm:$0xff]
    %v497 = vld [vmem:[%s482 + $0x70] sm:$0xff]
    %v498 = vld [vmem:[%s482 + $0x78] sm:$0xff]
    %v499 = vmul.f32 %v295, %v483
    %v500 = vmul.f32 %v291, %v484
    %v501 = vmul.f32 %v287, %v485
    %v502 = vmul.f32 %v299, %v486
    %v503 = vmul.f32 %v296, %v487
    %v504 = vmul.f32 %v292, %v488
    %v505 = vmul.f32 %v288, %v489
    %v506 = vmul.f32 %v300, %v490
    %v507 = vmul.f32 %v297, %v491
    %v508 = vmul.f32 %v293, %v492
    %v509 = vmul.f32 %v289, %v493
    %v510 = vmul.f32 %v301, %v494
    %v511 = vmul.f32 %v298, %v495
    %v512 = vmul.f32 %v294, %v496
    %v513 = vmul.f32 %v290, %v497
    %v514 = vmul.f32 %v302, %v498
    %v515 = vadd.f32 %v466, %v499
    %v516 = vadd.f32 %v467, %v500
    %v517 = vadd.f32 %v468, %v501
    %v518 = vadd.f32 %v469, %v502
    %v519 = vadd.f32 %v470, %v503
    %v520 = vadd.f32 %v471, %v504
    %v521 = vadd.f32 %v472, %v505
    %v522 = vadd.f32 %v473, %v506
    %v523 = vadd.f32 %v474, %v507
    %v524 = vadd.f32 %v475, %v508
    %v525 = vadd.f32 %v476, %v509
    %v526 = vadd.f32 %v477, %v510
    %v527 = vadd.f32 %v478, %v511
    %v528 = vadd.f32 %v479, %v512
    %v529 = vadd.f32 %v480, %v513
    %v530 = vadd.f32 %v481, %v514
    %531 = vrot.lane.b32.xlu0 %v515, 32
    %v532 = vpop.permute.xlu0 %531
    %533 = vrot.lane.b32.xlu0 %v519, 32
    %v534 = vpop.permute.xlu0 %533
    %535 = vrot.lane.b32.xlu0 %v523, 32
    %v536 = vpop.permute.xlu0 %535
    %537 = vrot.lane.b32.xlu0 %v527, 32
    %v538 = vpop.permute.xlu0 %537
    %539 = vrot.lane.b32.xlu0 %v516, 32
    %v540 = vpop.permute.xlu0 %539
    %541 = vrot.lane.b32.xlu0 %v520, 32
    %v542 = vpop.permute.xlu0 %541
    %543 = vrot.lane.b32.xlu0 %v524, 32
    %v544 = vpop.permute.xlu0 %543
    %545 = vrot.lane.b32.xlu0 %v528, 32
    %v546 = vpop.permute.xlu0 %545
    %547 = vrot.lane.b32.xlu0 %v517, 32
    %v548 = vpop.permute.xlu0 %547
    %549 = vrot.lane.b32.xlu0 %v521, 32
    %v550 = vpop.permute.xlu0 %549
    %551 = vrot.lane.b32.xlu0 %v525, 32
    %v552 = vpop.permute.xlu0 %551
    %553 = vrot.lane.b32.xlu0 %v529, 32
    %v554 = vpop.permute.xlu0 %553
    %555 = vrot.lane.b32.xlu0 %v518, 32
    %v556 = vpop.permute.xlu0 %555
    %557 = vrot.lane.b32.xlu0 %v522, 32
    %v558 = vpop.permute.xlu0 %557
    %559 = vrot.lane.b32.xlu0 %v526, 32
    %v560 = vpop.permute.xlu0 %559
    %561 = vrot.lane.b32.xlu0 %v530, 32
    %v562 = vpop.permute.xlu0 %561
    %vm563 = vcmp.lt.s32.totalorder %v138, 32
    %v564 = vsel %vm563, %v548, %v556
    %v565 = vsel %vm563, %v550, %v558
    %v566 = vsel %vm563, %v552, %v560
    %v567 = vsel %vm563, %v554, %v562
    %v568 = vsel %vm563, %v540, %v548
    %v569 = vsel %vm563, %v542, %v550
    %v570 = vsel %vm563, %v544, %v552
    %v571 = vsel %vm563, %v546, %v554
    %v572 = vsel %vm563, %v532, %v540
    %v573 = vsel %vm563, %v534, %v542
    %v574 = vsel %vm563, %v536, %v544
    %v575 = vsel %vm563, %v538, %v546
    %v576 = vsel %vm563, %v556, %v532
    %v577 = vsel %vm563, %v558, %v534
    %v578 = vsel %vm563, %v560, %v536
    %v579 = vsel %vm563, %v562, %v538
    %s580 = scalar_lea.vmem [#allocation5], 640
    %v581 = vld [vmem:[%s580] sm:$0xff]
    %v582 = vld [vmem:[%s580 + $0x8] sm:$0xff]
    %v583 = vld [vmem:[%s580 + $0x10] sm:$0xff]
    %v584 = vld [vmem:[%s580 + $0x18] sm:$0xff]
    %v585 = vld [vmem:[%s580 + $0x20] sm:$0xff]
    %v586 = vld [vmem:[%s580 + $0x28] sm:$0xff]
    %v587 = vld [vmem:[%s580 + $0x30] sm:$0xff]
    %v588 = vld [vmem:[%s580 + $0x38] sm:$0xff]
    %v589 = vld [vmem:[%s580 + $0x40] sm:$0xff]
    %v590 = vld [vmem:[%s580 + $0x48] sm:$0xff]
    %v591 = vld [vmem:[%s580 + $0x50] sm:$0xff]
    %v592 = vld [vmem:[%s580 + $0x58] sm:$0xff]
    %v593 = vld [vmem:[%s580 + $0x60] sm:$0xff]
    %v594 = vld [vmem:[%s580 + $0x68] sm:$0xff]
    %v595 = vld [vmem:[%s580 + $0x70] sm:$0xff]
    %v596 = vld [vmem:[%s580 + $0x78] sm:$0xff]
    %v597 = vmul.f32 %v152, %v581
    %v598 = vmul.f32 %v148, %v582
    %v599 = vmul.f32 %v144, %v583
    %v600 = vmul.f32 %v140, %v584
    %v601 = vmul.f32 %v153, %v585
    %v602 = vmul.f32 %v149, %v586
    %v603 = vmul.f32 %v145, %v587
    %v604 = vmul.f32 %v141, %v588
    %v605 = vmul.f32 %v154, %v589
    %v606 = vmul.f32 %v150, %v590
    %v607 = vmul.f32 %v146, %v591
    %v608 = vmul.f32 %v142, %v592
    %v609 = vmul.f32 %v155, %v593
    %v610 = vmul.f32 %v151, %v594
    %v611 = vmul.f32 %v147, %v595
    %v612 = vmul.f32 %v143, %v596
    %s613 = scalar_lea.vmem [#allocation5], 768
    %v614 = vld [vmem:[%s613] sm:$0xff]
    %v615 = vld [vmem:[%s613 + $0x8] sm:$0xff]
    %v616 = vld [vmem:[%s613 + $0x10] sm:$0xff]
    %v617 = vld [vmem:[%s613 + $0x18] sm:$0xff]
    %v618 = vld [vmem:[%s613 + $0x20] sm:$0xff]
    %v619 = vld [vmem:[%s613 + $0x28] sm:$0xff]
    %v620 = vld [vmem:[%s613 + $0x30] sm:$0xff]
    %v621 = vld [vmem:[%s613 + $0x38] sm:$0xff]
    %v622 = vld [vmem:[%s613 + $0x40] sm:$0xff]
    %v623 = vld [vmem:[%s613 + $0x48] sm:$0xff]
    %v624 = vld [vmem:[%s613 + $0x50] sm:$0xff]
    %v625 = vld [vmem:[%s613 + $0x58] sm:$0xff]
    %v626 = vld [vmem:[%s613 + $0x60] sm:$0xff]
    %v627 = vld [vmem:[%s613 + $0x68] sm:$0xff]
    %v628 = vld [vmem:[%s613 + $0x70] sm:$0xff]
    %v629 = vld [vmem:[%s613 + $0x78] sm:$0xff]
    %v630 = vmul.f32 %v201, %v614
    %v631 = vmul.f32 %v197, %v615
    %v632 = vmul.f32 %v193, %v616
    %v633 = vmul.f32 %v189, %v617
    %v634 = vmul.f32 %v202, %v618
    %v635 = vmul.f32 %v198, %v619
    %v636 = vmul.f32 %v194, %v620
    %v637 = vmul.f32 %v190, %v621
    %v638 = vmul.f32 %v203, %v622
    %v639 = vmul.f32 %v199, %v623
    %v640 = vmul.f32 %v195, %v624
    %v641 = vmul.f32 %v191, %v625
    %v642 = vmul.f32 %v204, %v626
    %v643 = vmul.f32 %v200, %v627
    %v644 = vmul.f32 %v196, %v628
    %v645 = vmul.f32 %v192, %v629
    %v646 = vadd.f32 %v597, %v630
    %v647 = vadd.f32 %v598, %v631
    %v648 = vadd.f32 %v599, %v632
    %v649 = vadd.f32 %v600, %v633
    %v650 = vadd.f32 %v601, %v634
    %v651 = vadd.f32 %v602, %v635
    %v652 = vadd.f32 %v603, %v636
    %v653 = vadd.f32 %v604, %v637
    %v654 = vadd.f32 %v605, %v638
    %v655 = vadd.f32 %v606, %v639
    %v656 = vadd.f32 %v607, %v640
    %v657 = vadd.f32 %v608, %v641
    %v658 = vadd.f32 %v609, %v642
    %v659 = vadd.f32 %v610, %v643
    %v660 = vadd.f32 %v611, %v644
    %v661 = vadd.f32 %v612, %v645
    %s662 = scalar_lea.vmem [#allocation5], 896
    %v663 = vld [vmem:[%s662] sm:$0xff]
    %v664 = vld [vmem:[%s662 + $0x8] sm:$0xff]
    %v665 = vld [vmem:[%s662 + $0x10] sm:$0xff]
    %v666 = vld [vmem:[%s662 + $0x18] sm:$0xff]
    %v667 = vld [vmem:[%s662 + $0x20] sm:$0xff]
    %v668 = vld [vmem:[%s662 + $0x28] sm:$0xff]
    %v669 = vld [vmem:[%s662 + $0x30] sm:$0xff]
    %v670 = vld [vmem:[%s662 + $0x38] sm:$0xff]
    %v671 = vld [vmem:[%s662 + $0x40] sm:$0xff]
    %v672 = vld [vmem:[%s662 + $0x48] sm:$0xff]
    %v673 = vld [vmem:[%s662 + $0x50] sm:$0xff]
    %v674 = vld [vmem:[%s662 + $0x58] sm:$0xff]
    %v675 = vld [vmem:[%s662 + $0x60] sm:$0xff]
    %v676 = vld [vmem:[%s662 + $0x68] sm:$0xff]
    %v677 = vld [vmem:[%s662 + $0x70] sm:$0xff]
    %v678 = vld [vmem:[%s662 + $0x78] sm:$0xff]
    %v679 = vmul.f32 %v89, %v663
    %v680 = vmul.f32 %v90, %v664
    %v681 = vmul.f32 %v91, %v665
    %v682 = vmul.f32 %v92, %v666
    %v683 = vmul.f32 %v93, %v667
    %v684 = vmul.f32 %v94, %v668
    %v685 = vmul.f32 %v95, %v669
    %v686 = vmul.f32 %v96, %v670
    %v687 = vmul.f32 %v97, %v671
    %v688 = vmul.f32 %v98, %v672
    %v689 = vmul.f32 %v99, %v673
    %v690 = vmul.f32 %v100, %v674
    %v691 = vmul.f32 %v101, %v675
    %v692 = vmul.f32 %v102, %v676
    %v693 = vmul.f32 %v103, %v677
    %v694 = vmul.f32 %v104, %v678
    %v695 = vadd.f32 %v646, %v679
    %v696 = vadd.f32 %v647, %v680
    %v697 = vadd.f32 %v648, %v681
    %v698 = vadd.f32 %v649, %v682
    %v699 = vadd.f32 %v650, %v683
    %v700 = vadd.f32 %v651, %v684
    %v701 = vadd.f32 %v652, %v685
    %v702 = vadd.f32 %v653, %v686
    %v703 = vadd.f32 %v654, %v687
    %v704 = vadd.f32 %v655, %v688
    %v705 = vadd.f32 %v656, %v689
    %v706 = vadd.f32 %v657, %v690
    %v707 = vadd.f32 %v658, %v691
    %v708 = vadd.f32 %v659, %v692
    %v709 = vadd.f32 %v660, %v693
    %v710 = vadd.f32 %v661, %v694
    %s711 = scalar_lea.vmem [#allocation5], 1024
    %v712 = vld [vmem:[%s711] sm:$0xff]
    %v713 = vld [vmem:[%s711 + $0x8] sm:$0xff]
    %v714 = vld [vmem:[%s711 + $0x10] sm:$0xff]
    %v715 = vld [vmem:[%s711 + $0x18] sm:$0xff]
    %v716 = vld [vmem:[%s711 + $0x20] sm:$0xff]
    %v717 = vld [vmem:[%s711 + $0x28] sm:$0xff]
    %v718 = vld [vmem:[%s711 + $0x30] sm:$0xff]
    %v719 = vld [vmem:[%s711 + $0x38] sm:$0xff]
    %v720 = vld [vmem:[%s711 + $0x40] sm:$0xff]
    %v721 = vld [vmem:[%s711 + $0x48] sm:$0xff]
    %v722 = vld [vmem:[%s711 + $0x50] sm:$0xff]
    %v723 = vld [vmem:[%s711 + $0x58] sm:$0xff]
    %v724 = vld [vmem:[%s711 + $0x60] sm:$0xff]
    %v725 = vld [vmem:[%s711 + $0x68] sm:$0xff]
    %v726 = vld [vmem:[%s711 + $0x70] sm:$0xff]
    %v727 = vld [vmem:[%s711 + $0x78] sm:$0xff]
    %v728 = vmul.f32 %v246, %v712
    %v729 = vmul.f32 %v242, %v713
    %v730 = vmul.f32 %v238, %v714
    %v731 = vmul.f32 %v250, %v715
    %v732 = vmul.f32 %v247, %v716
    %v733 = vmul.f32 %v243, %v717
    %v734 = vmul.f32 %v239, %v718
    %v735 = vmul.f32 %v251, %v719
    %v736 = vmul.f32 %v248, %v720
    %v737 = vmul.f32 %v244, %v721
    %v738 = vmul.f32 %v240, %v722
    %v739 = vmul.f32 %v252, %v723
    %v740 = vmul.f32 %v249, %v724
    %v741 = vmul.f32 %v245, %v725
    %v742 = vmul.f32 %v241, %v726
    %v743 = vmul.f32 %v253, %v727
    %v744 = vadd.f32 %v695, %v728
    %v745 = vadd.f32 %v696, %v729
    %v746 = vadd.f32 %v697, %v730
    %v747 = vadd.f32 %v698, %v731
    %v748 = vadd.f32 %v699, %v732
    %v749 = vadd.f32 %v700, %v733
    %v750 = vadd.f32 %v701, %v734
    %v751 = vadd.f32 %v702, %v735
    %v752 = vadd.f32 %v703, %v736
    %v753 = vadd.f32 %v704, %v737
    %v754 = vadd.f32 %v705, %v738
    %v755 = vadd.f32 %v706, %v739
    %v756 = vadd.f32 %v707, %v740
    %v757 = vadd.f32 %v708, %v741
    %v758 = vadd.f32 %v709, %v742
    %v759 = vadd.f32 %v710, %v743
    %s760 = scalar_lea.vmem [#allocation5], 1152
    %v761 = vld [vmem:[%s760] sm:$0xff]
    %v762 = vld [vmem:[%s760 + $0x8] sm:$0xff]
    %v763 = vld [vmem:[%s760 + $0x10] sm:$0xff]
    %v764 = vld [vmem:[%s760 + $0x18] sm:$0xff]
    %v765 = vld [vmem:[%s760 + $0x20] sm:$0xff]
    %v766 = vld [vmem:[%s760 + $0x28] sm:$0xff]
    %v767 = vld [vmem:[%s760 + $0x30] sm:$0xff]
    %v768 = vld [vmem:[%s760 + $0x38] sm:$0xff]
    %v769 = vld [vmem:[%s760 + $0x40] sm:$0xff]
    %v770 = vld [vmem:[%s760 + $0x48] sm:$0xff]
    %v771 = vld [vmem:[%s760 + $0x50] sm:$0xff]
    %v772 = vld [vmem:[%s760 + $0x58] sm:$0xff]
    %v773 = vld [vmem:[%s760 + $0x60] sm:$0xff]
    %v774 = vld [vmem:[%s760 + $0x68] sm:$0xff]
    %v775 = vld [vmem:[%s760 + $0x70] sm:$0xff]
    %v776 = vld [vmem:[%s760 + $0x78] sm:$0xff]
    %v777 = vmul.f32 %v295, %v761
    %v778 = vmul.f32 %v291, %v762
    %v779 = vmul.f32 %v287, %v763
    %v780 = vmul.f32 %v299, %v764
    %v781 = vmul.f32 %v296, %v765
    %v782 = vmul.f32 %v292, %v766
    %v783 = vmul.f32 %v288, %v767
    %v784 = vmul.f32 %v300, %v768
    %v785 = vmul.f32 %v297, %v769
    %v786 = vmul.f32 %v293, %v770
    %v787 = vmul.f32 %v289, %v771
    %v788 = vmul.f32 %v301, %v772
    %v789 = vmul.f32 %v298, %v773
    %v790 = vmul.f32 %v294, %v774
    %v791 = vmul.f32 %v290, %v775
    %v792 = vmul.f32 %v302, %v776
    %v793 = vadd.f32 %v744, %v777
    %v794 = vadd.f32 %v745, %v778
    %v795 = vadd.f32 %v746, %v779
    %v796 = vadd.f32 %v747, %v780
    %v797 = vadd.f32 %v748, %v781
    %v798 = vadd.f32 %v749, %v782
    %v799 = vadd.f32 %v750, %v783
    %v800 = vadd.f32 %v751, %v784
    %v801 = vadd.f32 %v752, %v785
    %v802 = vadd.f32 %v753, %v786
    %v803 = vadd.f32 %v754, %v787
    %v804 = vadd.f32 %v755, %v788
    %v805 = vadd.f32 %v756, %v789
    %v806 = vadd.f32 %v757, %v790
    %v807 = vadd.f32 %v758, %v791
    %v808 = vadd.f32 %v759, %v792
    %809 = vrot.lane.b32.xlu0 %v793, 16
    %v810 = vpop.permute.xlu0 %809
    %811 = vrot.lane.b32.xlu0 %v797, 16
    %v812 = vpop.permute.xlu0 %811
    %813 = vrot.lane.b32.xlu0 %v801, 16
    %v814 = vpop.permute.xlu0 %813
    %815 = vrot.lane.b32.xlu0 %v805, 16
    %v816 = vpop.permute.xlu0 %815
    %817 = vrot.lane.b32.xlu0 %v794, 16
    %v818 = vpop.permute.xlu0 %817
    %819 = vrot.lane.b32.xlu0 %v798, 16
    %v820 = vpop.permute.xlu0 %819
    %821 = vrot.lane.b32.xlu0 %v802, 16
    %v822 = vpop.permute.xlu0 %821
    %823 = vrot.lane.b32.xlu0 %v806, 16
    %v824 = vpop.permute.xlu0 %823
    %825 = vrot.lane.b32.xlu0 %v795, 16
    %v826 = vpop.permute.xlu0 %825
    %827 = vrot.lane.b32.xlu0 %v799, 16
    %v828 = vpop.permute.xlu0 %827
    %829 = vrot.lane.b32.xlu0 %v803, 16
    %v830 = vpop.permute.xlu0 %829
    %831 = vrot.lane.b32.xlu0 %v807, 16
    %v832 = vpop.permute.xlu0 %831
    %833 = vrot.lane.b32.xlu0 %v796, 16
    %v834 = vpop.permute.xlu0 %833
    %835 = vrot.lane.b32.xlu0 %v800, 16
    %v836 = vpop.permute.xlu0 %835
    %837 = vrot.lane.b32.xlu0 %v804, 16
    %v838 = vpop.permute.xlu0 %837
    %839 = vrot.lane.b32.xlu0 %v808, 16
    %v840 = vpop.permute.xlu0 %839
    %vm841 = vcmp.lt.s32.totalorder %v138, 16
    %v842 = vsel %vm841, %v826, %v834
    %v843 = vsel %vm841, %v828, %v836
    %v844 = vsel %vm841, %v830, %v838
    %v845 = vsel %vm841, %v832, %v840
    %v846 = vsel %vm841, %v818, %v826
    %v847 = vsel %vm841, %v820, %v828
    %v848 = vsel %vm841, %v822, %v830
    %v849 = vsel %vm841, %v824, %v832
    %v850 = vsel %vm841, %v810, %v818
    %v851 = vsel %vm841, %v812, %v820
    %v852 = vsel %vm841, %v814, %v822
    %v853 = vsel %vm841, %v816, %v824
    %v854 = vsel %vm841, %v834, %v810
    %v855 = vsel %vm841, %v836, %v812
    %v856 = vsel %vm841, %v838, %v814
    %v857 = vsel %vm841, %v840, %v816
    %v858 = vadd.f32 %v576, %v854
    %v859 = vadd.f32 %v572, %v850
    %v860 = vadd.f32 %v568, %v846
    %v861 = vadd.f32 %v564, %v842
    %v862 = vadd.f32 %v577, %v855
    %v863 = vadd.f32 %v573, %v851
    %v864 = vadd.f32 %v569, %v847
    %v865 = vadd.f32 %v565, %v843
    %v866 = vadd.f32 %v578, %v856
    %v867 = vadd.f32 %v574, %v852
    %v868 = vadd.f32 %v570, %v848
    %v869 = vadd.f32 %v566, %v844
    %v870 = vadd.f32 %v579, %v857
    %v871 = vadd.f32 %v575, %v853
    %v872 = vadd.f32 %v571, %v849
    %v873 = vadd.f32 %v567, %v845
    %s874 = scalar_lea.vmem [#allocation5], 1280
    %v875 = vld [vmem:[%s874] sm:$0xff]
    %v876 = vld [vmem:[%s874 + $0x8] sm:$0xff]
    %v877 = vld [vmem:[%s874 + $0x10] sm:$0xff]
    %v878 = vld [vmem:[%s874 + $0x18] sm:$0xff]
    %v879 = vld [vmem:[%s874 + $0x20] sm:$0xff]
    %v880 = vld [vmem:[%s874 + $0x28] sm:$0xff]
    %v881 = vld [vmem:[%s874 + $0x30] sm:$0xff]
    %v882 = vld [vmem:[%s874 + $0x38] sm:$0xff]
    %v883 = vld [vmem:[%s874 + $0x40] sm:$0xff]
    %v884 = vld [vmem:[%s874 + $0x48] sm:$0xff]
    %v885 = vld [vmem:[%s874 + $0x50] sm:$0xff]
    %v886 = vld [vmem:[%s874 + $0x58] sm:$0xff]
    %v887 = vld [vmem:[%s874 + $0x60] sm:$0xff]
    %v888 = vld [vmem:[%s874 + $0x68] sm:$0xff]
    %v889 = vld [vmem:[%s874 + $0x70] sm:$0xff]
    %v890 = vld [vmem:[%s874 + $0x78] sm:$0xff]
    %v891 = vmul.f32 %v152, %v875
    %v892 = vmul.f32 %v148, %v876
    %v893 = vmul.f32 %v144, %v877
    %v894 = vmul.f32 %v140, %v878
    %v895 = vmul.f32 %v153, %v879
    %v896 = vmul.f32 %v149, %v880
    %v897 = vmul.f32 %v145, %v881
    %v898 = vmul.f32 %v141, %v882
    %v899 = vmul.f32 %v154, %v883
    %v900 = vmul.f32 %v150, %v884
    %v901 = vmul.f32 %v146, %v885
    %v902 = vmul.f32 %v142, %v886
    %v903 = vmul.f32 %v155, %v887
    %v904 = vmul.f32 %v151, %v888
    %v905 = vmul.f32 %v147, %v889
    %v906 = vmul.f32 %v143, %v890
    %s907 = scalar_lea.vmem [#allocation5], 1408
    %v908 = vld [vmem:[%s907] sm:$0xff]
    %v909 = vld [vmem:[%s907 + $0x8] sm:$0xff]
    %v910 = vld [vmem:[%s907 + $0x10] sm:$0xff]
    %v911 = vld [vmem:[%s907 + $0x18] sm:$0xff]
    %v912 = vld [vmem:[%s907 + $0x20] sm:$0xff]
    %v913 = vld [vmem:[%s907 + $0x28] sm:$0xff]
    %v914 = vld [vmem:[%s907 + $0x30] sm:$0xff]
    %v915 = vld [vmem:[%s907 + $0x38] sm:$0xff]
    %v916 = vld [vmem:[%s907 + $0x40] sm:$0xff]
    %v917 = vld [vmem:[%s907 + $0x48] sm:$0xff]
    %v918 = vld [vmem:[%s907 + $0x50] sm:$0xff]
    %v919 = vld [vmem:[%s907 + $0x58] sm:$0xff]
    %v920 = vld [vmem:[%s907 + $0x60] sm:$0xff]
    %v921 = vld [vmem:[%s907 + $0x68] sm:$0xff]
    %v922 = vld [vmem:[%s907 + $0x70] sm:$0xff]
    %v923 = vld [vmem:[%s907 + $0x78] sm:$0xff]
    %v924 = vmul.f32 %v201, %v908
    %v925 = vmul.f32 %v197, %v909
    %v926 = vmul.f32 %v193, %v910
    %v927 = vmul.f32 %v189, %v911
    %v928 = vmul.f32 %v202, %v912
    %v929 = vmul.f32 %v198, %v913
    %v930 = vmul.f32 %v194, %v914
    %v931 = vmul.f32 %v190, %v915
    %v932 = vmul.f32 %v203, %v916
    %v933 = vmul.f32 %v199, %v917
    %v934 = vmul.f32 %v195, %v918
    %v935 = vmul.f32 %v191, %v919
    %v936 = vmul.f32 %v204, %v920
    %v937 = vmul.f32 %v200, %v921
    %v938 = vmul.f32 %v196, %v922
    %v939 = vmul.f32 %v192, %v923
    %v940 = vadd.f32 %v891, %v924
    %v941 = vadd.f32 %v892, %v925
    %v942 = vadd.f32 %v893, %v926
    %v943 = vadd.f32 %v894, %v927
    %v944 = vadd.f32 %v895, %v928
    %v945 = vadd.f32 %v896, %v929
    %v946 = vadd.f32 %v897, %v930
    %v947 = vadd.f32 %v898, %v931
    %v948 = vadd.f32 %v899, %v932
    %v949 = vadd.f32 %v900, %v933
    %v950 = vadd.f32 %v901, %v934
    %v951 = vadd.f32 %v902, %v935
    %v952 = vadd.f32 %v903, %v936
    %v953 = vadd.f32 %v904, %v937
    %v954 = vadd.f32 %v905, %v938
    %v955 = vadd.f32 %v906, %v939
    %s956 = scalar_lea.vmem [#allocation5], 1536
    %v957 = vld [vmem:[%s956] sm:$0xff]
    %v958 = vld [vmem:[%s956 + $0x8] sm:$0xff]
    %v959 = vld [vmem:[%s956 + $0x10] sm:$0xff]
    %v960 = vld [vmem:[%s956 + $0x18] sm:$0xff]
    %v961 = vld [vmem:[%s956 + $0x20] sm:$0xff]
    %v962 = vld [vmem:[%s956 + $0x28] sm:$0xff]
    %v963 = vld [vmem:[%s956 + $0x30] sm:$0xff]
    %v964 = vld [vmem:[%s956 + $0x38] sm:$0xff]
    %v965 = vld [vmem:[%s956 + $0x40] sm:$0xff]
    %v966 = vld [vmem:[%s956 + $0x48] sm:$0xff]
    %v967 = vld [vmem:[%s956 + $0x50] sm:$0xff]
    %v968 = vld [vmem:[%s956 + $0x58] sm:$0xff]
    %v969 = vld [vmem:[%s956 + $0x60] sm:$0xff]
    %v970 = vld [vmem:[%s956 + $0x68] sm:$0xff]
    %v971 = vld [vmem:[%s956 + $0x70] sm:$0xff]
    %v972 = vld [vmem:[%s956 + $0x78] sm:$0xff]
    %v973 = vmul.f32 %v89, %v957
    %v974 = vmul.f32 %v90, %v958
    %v975 = vmul.f32 %v91, %v959
    %v976 = vmul.f32 %v92, %v960
    %v977 = vmul.f32 %v93, %v961
    %v978 = vmul.f32 %v94, %v962
    %v979 = vmul.f32 %v95, %v963
    %v980 = vmul.f32 %v96, %v964
    %v981 = vmul.f32 %v97, %v965
    %v982 = vmul.f32 %v98, %v966
    %v983 = vmul.f32 %v99, %v967
    %v984 = vmul.f32 %v100, %v968
    %v985 = vmul.f32 %v101, %v969
    %v986 = vmul.f32 %v102, %v970
    %v987 = vmul.f32 %v103, %v971
    %v988 = vmul.f32 %v104, %v972
    %v989 = vadd.f32 %v940, %v973
    %v990 = vadd.f32 %v941, %v974
    %v991 = vadd.f32 %v942, %v975
    %v992 = vadd.f32 %v943, %v976
    %v993 = vadd.f32 %v944, %v977
    %v994 = vadd.f32 %v945, %v978
    %v995 = vadd.f32 %v946, %v979
    %v996 = vadd.f32 %v947, %v980
    %v997 = vadd.f32 %v948, %v981
    %v998 = vadd.f32 %v949, %v982
    %v999 = vadd.f32 %v950, %v983
    %v1000 = vadd.f32 %v951, %v984
    %v1001 = vadd.f32 %v952, %v985
    %v1002 = vadd.f32 %v953, %v986
    %v1003 = vadd.f32 %v954, %v987
    %v1004 = vadd.f32 %v955, %v988
    %s1005 = scalar_lea.vmem [#allocation5], 1664
    %v1006 = vld [vmem:[%s1005] sm:$0xff]
    %v1007 = vld [vmem:[%s1005 + $0x8] sm:$0xff]
    %v1008 = vld [vmem:[%s1005 + $0x10] sm:$0xff]
    %v1009 = vld [vmem:[%s1005 + $0x18] sm:$0xff]
    %v1010 = vld [vmem:[%s1005 + $0x20] sm:$0xff]
    %v1011 = vld [vmem:[%s1005 + $0x28] sm:$0xff]
    %v1012 = vld [vmem:[%s1005 + $0x30] sm:$0xff]
    %v1013 = vld [vmem:[%s1005 + $0x38] sm:$0xff]
    %v1014 = vld [vmem:[%s1005 + $0x40] sm:$0xff]
    %v1015 = vld [vmem:[%s1005 + $0x48] sm:$0xff]
    %v1016 = vld [vmem:[%s1005 + $0x50] sm:$0xff]
    %v1017 = vld [vmem:[%s1005 + $0x58] sm:$0xff]
    %v1018 = vld [vmem:[%s1005 + $0x60] sm:$0xff]
    %v1019 = vld [vmem:[%s1005 + $0x68] sm:$0xff]
    %v1020 = vld [vmem:[%s1005 + $0x70] sm:$0xff]
    %v1021 = vld [vmem:[%s1005 + $0x78] sm:$0xff]
    %v1022 = vmul.f32 %v246, %v1006
    %v1023 = vmul.f32 %v242, %v1007
    %v1024 = vmul.f32 %v238, %v1008
    %v1025 = vmul.f32 %v250, %v1009
    %v1026 = vmul.f32 %v247, %v1010
    %v1027 = vmul.f32 %v243, %v1011
    %v1028 = vmul.f32 %v239, %v1012
    %v1029 = vmul.f32 %v251, %v1013
    %v1030 = vmul.f32 %v248, %v1014
    %v1031 = vmul.f32 %v244, %v1015
    %v1032 = vmul.f32 %v240, %v1016
    %v1033 = vmul.f32 %v252, %v1017
    %v1034 = vmul.f32 %v249, %v1018
    %v1035 = vmul.f32 %v245, %v1019
    %v1036 = vmul.f32 %v241, %v1020
    %v1037 = vmul.f32 %v253, %v1021
    %v1038 = vadd.f32 %v989, %v1022
    %v1039 = vadd.f32 %v990, %v1023
    %v1040 = vadd.f32 %v991, %v1024
    %v1041 = vadd.f32 %v992, %v1025
    %v1042 = vadd.f32 %v993, %v1026
    %v1043 = vadd.f32 %v994, %v1027
    %v1044 = vadd.f32 %v995, %v1028
    %v1045 = vadd.f32 %v996, %v1029
    %v1046 = vadd.f32 %v997, %v1030
    %v1047 = vadd.f32 %v998, %v1031
    %v1048 = vadd.f32 %v999, %v1032
    %v1049 = vadd.f32 %v1000, %v1033
    %v1050 = vadd.f32 %v1001, %v1034
    %v1051 = vadd.f32 %v1002, %v1035
    %v1052 = vadd.f32 %v1003, %v1036
    %v1053 = vadd.f32 %v1004, %v1037
    %s1054 = scalar_lea.vmem [#allocation5], 1792
    %v1055 = vld [vmem:[%s1054] sm:$0xff]
    %v1056 = vld [vmem:[%s1054 + $0x8] sm:$0xff]
    %v1057 = vld [vmem:[%s1054 + $0x10] sm:$0xff]
    %v1058 = vld [vmem:[%s1054 + $0x18] sm:$0xff]
    %v1059 = vld [vmem:[%s1054 + $0x20] sm:$0xff]
    %v1060 = vld [vmem:[%s1054 + $0x28] sm:$0xff]
    %v1061 = vld [vmem:[%s1054 + $0x30] sm:$0xff]
    %v1062 = vld [vmem:[%s1054 + $0x38] sm:$0xff]
    %v1063 = vld [vmem:[%s1054 + $0x40] sm:$0xff]
    %v1064 = vld [vmem:[%s1054 + $0x48] sm:$0xff]
    %v1065 = vld [vmem:[%s1054 + $0x50] sm:$0xff]
    %v1066 = vld [vmem:[%s1054 + $0x58] sm:$0xff]
    %v1067 = vld [vmem:[%s1054 + $0x60] sm:$0xff]
    %v1068 = vld [vmem:[%s1054 + $0x68] sm:$0xff]
    %v1069 = vld [vmem:[%s1054 + $0x70] sm:$0xff]
    %v1070 = vld [vmem:[%s1054 + $0x78] sm:$0xff]
    %v1071 = vmul.f32 %v295, %v1055
    %v1072 = vmul.f32 %v291, %v1056
    %v1073 = vmul.f32 %v287, %v1057
    %v1074 = vmul.f32 %v299, %v1058
    %v1075 = vmul.f32 %v296, %v1059
    %v1076 = vmul.f32 %v292, %v1060
    %v1077 = vmul.f32 %v288, %v1061
    %v1078 = vmul.f32 %v300, %v1062
    %v1079 = vmul.f32 %v297, %v1063
    %v1080 = vmul.f32 %v293, %v1064
    %v1081 = vmul.f32 %v289, %v1065
    %v1082 = vmul.f32 %v301, %v1066
    %v1083 = vmul.f32 %v298, %v1067
    %v1084 = vmul.f32 %v294, %v1068
    %v1085 = vmul.f32 %v290, %v1069
    %v1086 = vmul.f32 %v302, %v1070
    %v1087 = vadd.f32 %v1038, %v1071
    %v1088 = vadd.f32 %v1039, %v1072
    %v1089 = vadd.f32 %v1040, %v1073
    %v1090 = vadd.f32 %v1041, %v1074
    %v1091 = vadd.f32 %v1042, %v1075
    %v1092 = vadd.f32 %v1043, %v1076
    %v1093 = vadd.f32 %v1044, %v1077
    %v1094 = vadd.f32 %v1045, %v1078
    %v1095 = vadd.f32 %v1046, %v1079
    %v1096 = vadd.f32 %v1047, %v1080
    %v1097 = vadd.f32 %v1048, %v1081
    %v1098 = vadd.f32 %v1049, %v1082
    %v1099 = vadd.f32 %v1050, %v1083
    %v1100 = vadd.f32 %v1051, %v1084
    %v1101 = vadd.f32 %v1052, %v1085
    %v1102 = vadd.f32 %v1053, %v1086
    %v1103 = vadd.f32 %v858, %v1087
    %v1104 = vadd.f32 %v859, %v1088
    %v1105 = vadd.f32 %v860, %v1089
    %v1106 = vadd.f32 %v861, %v1090
    %v1107 = vadd.f32 %v862, %v1091
    %v1108 = vadd.f32 %v863, %v1092
    %v1109 = vadd.f32 %v864, %v1093
    %v1110 = vadd.f32 %v865, %v1094
    %v1111 = vadd.f32 %v866, %v1095
    %v1112 = vadd.f32 %v867, %v1096
    %v1113 = vadd.f32 %v868, %v1097
    %v1114 = vadd.f32 %v869, %v1098
    %v1115 = vadd.f32 %v870, %v1099
    %v1116 = vadd.f32 %v871, %v1100
    %v1117 = vadd.f32 %v872, %v1101
    %v1118 = vadd.f32 %v873, %v1102
    %s1119 = scalar_lea.vmem [#allocation5], 1920
    %v1120 = vld [vmem:[%s1119] sm:$0xff]
    %v1121 = vld [vmem:[%s1119 + $0x8] sm:$0xff]
    %v1122 = vld [vmem:[%s1119 + $0x10] sm:$0xff]
    %v1123 = vld [vmem:[%s1119 + $0x18] sm:$0xff]
    %v1124 = vld [vmem:[%s1119 + $0x20] sm:$0xff]
    %v1125 = vld [vmem:[%s1119 + $0x28] sm:$0xff]
    %v1126 = vld [vmem:[%s1119 + $0x30] sm:$0xff]
    %v1127 = vld [vmem:[%s1119 + $0x38] sm:$0xff]
    %v1128 = vld [vmem:[%s1119 + $0x40] sm:$0xff]
    %v1129 = vld [vmem:[%s1119 + $0x48] sm:$0xff]
    %v1130 = vld [vmem:[%s1119 + $0x50] sm:$0xff]
    %v1131 = vld [vmem:[%s1119 + $0x58] sm:$0xff]
    %v1132 = vld [vmem:[%s1119 + $0x60] sm:$0xff]
    %v1133 = vld [vmem:[%s1119 + $0x68] sm:$0xff]
    %v1134 = vld [vmem:[%s1119 + $0x70] sm:$0xff]
    %v1135 = vld [vmem:[%s1119 + $0x78] sm:$0xff]
    %v1136 = vmul.f32 %v152, %v1120
    %v1137 = vmul.f32 %v148, %v1121
    %v1138 = vmul.f32 %v144, %v1122
    %v1139 = vmul.f32 %v140, %v1123
    %v1140 = vmul.f32 %v153, %v1124
    %v1141 = vmul.f32 %v149, %v1125
    %v1142 = vmul.f32 %v145, %v1126
    %v1143 = vmul.f32 %v141, %v1127
    %v1144 = vmul.f32 %v154, %v1128
    %v1145 = vmul.f32 %v150, %v1129
    %v1146 = vmul.f32 %v146, %v1130
    %v1147 = vmul.f32 %v142, %v1131
    %v1148 = vmul.f32 %v155, %v1132
    %v1149 = vmul.f32 %v151, %v1133
    %v1150 = vmul.f32 %v147, %v1134
    %v1151 = vmul.f32 %v143, %v1135
    %s1152 = scalar_lea.vmem [#allocation5], 2048
    %v1153 = vld [vmem:[%s1152] sm:$0xff]
    %v1154 = vld [vmem:[%s1152 + $0x8] sm:$0xff]
    %v1155 = vld [vmem:[%s1152 + $0x10] sm:$0xff]
    %v1156 = vld [vmem:[%s1152 + $0x18] sm:$0xff]
    %v1157 = vld [vmem:[%s1152 + $0x20] sm:$0xff]
    %v1158 = vld [vmem:[%s1152 + $0x28] sm:$0xff]
    %v1159 = vld [vmem:[%s1152 + $0x30] sm:$0xff]
    %v1160 = vld [vmem:[%s1152 + $0x38] sm:$0xff]
    %v1161 = vld [vmem:[%s1152 + $0x40] sm:$0xff]
    %v1162 = vld [vmem:[%s1152 + $0x48] sm:$0xff]
    %v1163 = vld [vmem:[%s1152 + $0x50] sm:$0xff]
    %v1164 = vld [vmem:[%s1152 + $0x58] sm:$0xff]
    %v1165 = vld [vmem:[%s1152 + $0x60] sm:$0xff]
    %v1166 = vld [vmem:[%s1152 + $0x68] sm:$0xff]
    %v1167 = vld [vmem:[%s1152 + $0x70] sm:$0xff]
    %v1168 = vld [vmem:[%s1152 + $0x78] sm:$0xff]
    %v1169 = vmul.f32 %v201, %v1153
    %v1170 = vmul.f32 %v197, %v1154
    %v1171 = vmul.f32 %v193, %v1155
    %v1172 = vmul.f32 %v189, %v1156
    %v1173 = vmul.f32 %v202, %v1157
    %v1174 = vmul.f32 %v198, %v1158
    %v1175 = vmul.f32 %v194, %v1159
    %v1176 = vmul.f32 %v190, %v1160
    %v1177 = vmul.f32 %v203, %v1161
    %v1178 = vmul.f32 %v199, %v1162
    %v1179 = vmul.f32 %v195, %v1163
    %v1180 = vmul.f32 %v191, %v1164
    %v1181 = vmul.f32 %v204, %v1165
    %v1182 = vmul.f32 %v200, %v1166
    %v1183 = vmul.f32 %v196, %v1167
    %v1184 = vmul.f32 %v192, %v1168
    %v1185 = vadd.f32 %v1136, %v1169
    %v1186 = vadd.f32 %v1137, %v1170
    %v1187 = vadd.f32 %v1138, %v1171
    %v1188 = vadd.f32 %v1139, %v1172
    %v1189 = vadd.f32 %v1140, %v1173
    %v1190 = vadd.f32 %v1141, %v1174
    %v1191 = vadd.f32 %v1142, %v1175
    %v1192 = vadd.f32 %v1143, %v1176
    %v1193 = vadd.f32 %v1144, %v1177
    %v1194 = vadd.f32 %v1145, %v1178
    %v1195 = vadd.f32 %v1146, %v1179
    %v1196 = vadd.f32 %v1147, %v1180
    %v1197 = vadd.f32 %v1148, %v1181
    %v1198 = vadd.f32 %v1149, %v1182
    %v1199 = vadd.f32 %v1150, %v1183
    %v1200 = vadd.f32 %v1151, %v1184
    %s1201 = scalar_lea.vmem [#allocation5], 2176
    %v1202 = vld [vmem:[%s1201] sm:$0xff]
    %v1203 = vld [vmem:[%s1201 + $0x8] sm:$0xff]
    %v1204 = vld [vmem:[%s1201 + $0x10] sm:$0xff]
    %v1205 = vld [vmem:[%s1201 + $0x18] sm:$0xff]
    %v1206 = vld [vmem:[%s1201 + $0x20] sm:$0xff]
    %v1207 = vld [vmem:[%s1201 + $0x28] sm:$0xff]
    %v1208 = vld [vmem:[%s1201 + $0x30] sm:$0xff]
    %v1209 = vld [vmem:[%s1201 + $0x38] sm:$0xff]
    %v1210 = vld [vmem:[%s1201 + $0x40] sm:$0xff]
    %v1211 = vld [vmem:[%s1201 + $0x48] sm:$0xff]
    %v1212 = vld [vmem:[%s1201 + $0x50] sm:$0xff]
    %v1213 = vld [vmem:[%s1201 + $0x58] sm:$0xff]
    %v1214 = vld [vmem:[%s1201 + $0x60] sm:$0xff]
    %v1215 = vld [vmem:[%s1201 + $0x68] sm:$0xff]
    %v1216 = vld [vmem:[%s1201 + $0x70] sm:$0xff]
    %v1217 = vld [vmem:[%s1201 + $0x78] sm:$0xff]
    %v1218 = vmul.f32 %v89, %v1202
    %v1219 = vmul.f32 %v90, %v1203
    %v1220 = vmul.f32 %v91, %v1204
    %v1221 = vmul.f32 %v92, %v1205
    %v1222 = vmul.f32 %v93, %v1206
    %v1223 = vmul.f32 %v94, %v1207
    %v1224 = vmul.f32 %v95, %v1208
    %v1225 = vmul.f32 %v96, %v1209
    %v1226 = vmul.f32 %v97, %v1210
    %v1227 = vmul.f32 %v98, %v1211
    %v1228 = vmul.f32 %v99, %v1212
    %v1229 = vmul.f32 %v100, %v1213
    %v1230 = vmul.f32 %v101, %v1214
    %v1231 = vmul.f32 %v102, %v1215
    %v1232 = vmul.f32 %v103, %v1216
    %v1233 = vmul.f32 %v104, %v1217
    %v1234 = vadd.f32 %v1185, %v1218
    %v1235 = vadd.f32 %v1186, %v1219
    %v1236 = vadd.f32 %v1187, %v1220
    %v1237 = vadd.f32 %v1188, %v1221
    %v1238 = vadd.f32 %v1189, %v1222
    %v1239 = vadd.f32 %v1190, %v1223
    %v1240 = vadd.f32 %v1191, %v1224
    %v1241 = vadd.f32 %v1192, %v1225
    %v1242 = vadd.f32 %v1193, %v1226
    %v1243 = vadd.f32 %v1194, %v1227
    %v1244 = vadd.f32 %v1195, %v1228
    %v1245 = vadd.f32 %v1196, %v1229
    %v1246 = vadd.f32 %v1197, %v1230
    %v1247 = vadd.f32 %v1198, %v1231
    %v1248 = vadd.f32 %v1199, %v1232
    %v1249 = vadd.f32 %v1200, %v1233
    %s1250 = scalar_lea.vmem [#allocation5], 2304
    %v1251 = vld [vmem:[%s1250] sm:$0xff]
    %v1252 = vld [vmem:[%s1250 + $0x8] sm:$0xff]
    %v1253 = vld [vmem:[%s1250 + $0x10] sm:$0xff]
    %v1254 = vld [vmem:[%s1250 + $0x18] sm:$0xff]
    %v1255 = vld [vmem:[%s1250 + $0x20] sm:$0xff]
    %v1256 = vld [vmem:[%s1250 + $0x28] sm:$0xff]
    %v1257 = vld [vmem:[%s1250 + $0x30] sm:$0xff]
    %v1258 = vld [vmem:[%s1250 + $0x38] sm:$0xff]
    %v1259 = vld [vmem:[%s1250 + $0x40] sm:$0xff]
    %v1260 = vld [vmem:[%s1250 + $0x48] sm:$0xff]
    %v1261 = vld [vmem:[%s1250 + $0x50] sm:$0xff]
    %v1262 = vld [vmem:[%s1250 + $0x58] sm:$0xff]
    %v1263 = vld [vmem:[%s1250 + $0x60] sm:$0xff]
    %v1264 = vld [vmem:[%s1250 + $0x68] sm:$0xff]
    %v1265 = vld [vmem:[%s1250 + $0x70] sm:$0xff]
    %v1266 = vld [vmem:[%s1250 + $0x78] sm:$0xff]
    %v1267 = vmul.f32 %v246, %v1251
    %v1268 = vmul.f32 %v242, %v1252
    %v1269 = vmul.f32 %v238, %v1253
    %v1270 = vmul.f32 %v250, %v1254
    %v1271 = vmul.f32 %v247, %v1255
    %v1272 = vmul.f32 %v243, %v1256
    %v1273 = vmul.f32 %v239, %v1257
    %v1274 = vmul.f32 %v251, %v1258
    %v1275 = vmul.f32 %v248, %v1259
    %v1276 = vmul.f32 %v244, %v1260
    %v1277 = vmul.f32 %v240, %v1261
    %v1278 = vmul.f32 %v252, %v1262
    %v1279 = vmul.f32 %v249, %v1263
    %v1280 = vmul.f32 %v245, %v1264
    %v1281 = vmul.f32 %v241, %v1265
    %v1282 = vmul.f32 %v253, %v1266
    %v1283 = vadd.f32 %v1234, %v1267
    %v1284 = vadd.f32 %v1235, %v1268
    %v1285 = vadd.f32 %v1236, %v1269
    %v1286 = vadd.f32 %v1237, %v1270
    %v1287 = vadd.f32 %v1238, %v1271
    %v1288 = vadd.f32 %v1239, %v1272
    %v1289 = vadd.f32 %v1240, %v1273
    %v1290 = vadd.f32 %v1241, %v1274
    %v1291 = vadd.f32 %v1242, %v1275
    %v1292 = vadd.f32 %v1243, %v1276
    %v1293 = vadd.f32 %v1244, %v1277
    %v1294 = vadd.f32 %v1245, %v1278
    %v1295 = vadd.f32 %v1246, %v1279
    %v1296 = vadd.f32 %v1247, %v1280
    %v1297 = vadd.f32 %v1248, %v1281
    %v1298 = vadd.f32 %v1249, %v1282
    %s1299 = scalar_lea.vmem [#allocation5], 2432
    %v1300 = vld [vmem:[%s1299] sm:$0xff]
    %v1301 = vld [vmem:[%s1299 + $0x8] sm:$0xff]
    %v1302 = vld [vmem:[%s1299 + $0x10] sm:$0xff]
    %v1303 = vld [vmem:[%s1299 + $0x18] sm:$0xff]
    %v1304 = vld [vmem:[%s1299 + $0x20] sm:$0xff]
    %v1305 = vld [vmem:[%s1299 + $0x28] sm:$0xff]
    %v1306 = vld [vmem:[%s1299 + $0x30] sm:$0xff]
    %v1307 = vld [vmem:[%s1299 + $0x38] sm:$0xff]
    %v1308 = vld [vmem:[%s1299 + $0x40] sm:$0xff]
    %v1309 = vld [vmem:[%s1299 + $0x48] sm:$0xff]
    %v1310 = vld [vmem:[%s1299 + $0x50] sm:$0xff]
    %v1311 = vld [vmem:[%s1299 + $0x58] sm:$0xff]
    %v1312 = vld [vmem:[%s1299 + $0x60] sm:$0xff]
    %v1313 = vld [vmem:[%s1299 + $0x68] sm:$0xff]
    %v1314 = vld [vmem:[%s1299 + $0x70] sm:$0xff]
    %v1315 = vld [vmem:[%s1299 + $0x78] sm:$0xff]
    %v1316 = vmul.f32 %v295, %v1300
    %v1317 = vmul.f32 %v291, %v1301
    %v1318 = vmul.f32 %v287, %v1302
    %v1319 = vmul.f32 %v299, %v1303
    %v1320 = vmul.f32 %v296, %v1304
    %v1321 = vmul.f32 %v292, %v1305
    %v1322 = vmul.f32 %v288, %v1306
    %v1323 = vmul.f32 %v300, %v1307
    %v1324 = vmul.f32 %v297, %v1308
    %v1325 = vmul.f32 %v293, %v1309
    %v1326 = vmul.f32 %v289, %v1310
    %v1327 = vmul.f32 %v301, %v1311
    %v1328 = vmul.f32 %v298, %v1312
    %v1329 = vmul.f32 %v294, %v1313
    %v1330 = vmul.f32 %v290, %v1314
    %v1331 = vmul.f32 %v302, %v1315
    %v1332 = vadd.f32 %v1283, %v1316
    %v1333 = vadd.f32 %v1284, %v1317
    %v1334 = vadd.f32 %v1285, %v1318
    %v1335 = vadd.f32 %v1286, %v1319
    %v1336 = vadd.f32 %v1287, %v1320
    %v1337 = vadd.f32 %v1288, %v1321
    %v1338 = vadd.f32 %v1289, %v1322
    %v1339 = vadd.f32 %v1290, %v1323
    %v1340 = vadd.f32 %v1291, %v1324
    %v1341 = vadd.f32 %v1292, %v1325
    %v1342 = vadd.f32 %v1293, %v1326
    %v1343 = vadd.f32 %v1294, %v1327
    %v1344 = vadd.f32 %v1295, %v1328
    %v1345 = vadd.f32 %v1296, %v1329
    %v1346 = vadd.f32 %v1297, %v1330
    %v1347 = vadd.f32 %v1298, %v1331
    %1348 = vrot.lane.b32.xlu0 %v1332, 112
    %v1349 = vpop.permute.xlu0 %1348
    %1350 = vrot.lane.b32.xlu0 %v1336, 112
    %v1351 = vpop.permute.xlu0 %1350
    %1352 = vrot.lane.b32.xlu0 %v1340, 112
    %v1353 = vpop.permute.xlu0 %1352
    %1354 = vrot.lane.b32.xlu0 %v1344, 112
    %v1355 = vpop.permute.xlu0 %1354
    %1356 = vrot.lane.b32.xlu0 %v1333, 112
    %v1357 = vpop.permute.xlu0 %1356
    %1358 = vrot.lane.b32.xlu0 %v1337, 112
    %v1359 = vpop.permute.xlu0 %1358
    %1360 = vrot.lane.b32.xlu0 %v1341, 112
    %v1361 = vpop.permute.xlu0 %1360
    %1362 = vrot.lane.b32.xlu0 %v1345, 112
    %v1363 = vpop.permute.xlu0 %1362
    %1364 = vrot.lane.b32.xlu0 %v1334, 112
    %v1365 = vpop.permute.xlu0 %1364
    %1366 = vrot.lane.b32.xlu0 %v1338, 112
    %v1367 = vpop.permute.xlu0 %1366
    %1368 = vrot.lane.b32.xlu0 %v1342, 112
    %v1369 = vpop.permute.xlu0 %1368
    %1370 = vrot.lane.b32.xlu0 %v1346, 112
    %v1371 = vpop.permute.xlu0 %1370
    %1372 = vrot.lane.b32.xlu0 %v1335, 112
    %v1373 = vpop.permute.xlu0 %1372
    %1374 = vrot.lane.b32.xlu0 %v1339, 112
    %v1375 = vpop.permute.xlu0 %1374
    %1376 = vrot.lane.b32.xlu0 %v1343, 112
    %v1377 = vpop.permute.xlu0 %1376
    %1378 = vrot.lane.b32.xlu0 %v1347, 112
    %v1379 = vpop.permute.xlu0 %1378
    %vm1380 = vcmp.lt.s32.totalorder %v138, 112
    %v1381 = vsel %vm1380, %v1365, %v1373
    %v1382 = vsel %vm1380, %v1367, %v1375
    %v1383 = vsel %vm1380, %v1369, %v1377
    %v1384 = vsel %vm1380, %v1371, %v1379
    %v1385 = vsel %vm1380, %v1357, %v1365
    %v1386 = vsel %vm1380, %v1359, %v1367
    %v1387 = vsel %vm1380, %v1361, %v1369
    %v1388 = vsel %vm1380, %v1363, %v1371
    %v1389 = vsel %vm1380, %v1349, %v1357
    %v1390 = vsel %vm1380, %v1351, %v1359
    %v1391 = vsel %vm1380, %v1353, %v1361
    %v1392 = vsel %vm1380, %v1355, %v1363
    %v1393 = vsel %vm1380, %v1373, %v1349
    %v1394 = vsel %vm1380, %v1375, %v1351
    %v1395 = vsel %vm1380, %v1377, %v1353
    %v1396 = vsel %vm1380, %v1379, %v1355
    %v1397 = vadd.f32 %v1103, %v1389
    %v1398 = vadd.f32 %v1104, %v1385
    %v1399 = vadd.f32 %v1105, %v1381
    %v1400 = vadd.f32 %v1106, %v1393
    %v1401 = vadd.f32 %v1107, %v1390
    %v1402 = vadd.f32 %v1108, %v1386
    %v1403 = vadd.f32 %v1109, %v1382
    %v1404 = vadd.f32 %v1110, %v1394
    %v1405 = vadd.f32 %v1111, %v1391
    %v1406 = vadd.f32 %v1112, %v1387
    %v1407 = vadd.f32 %v1113, %v1383
    %v1408 = vadd.f32 %v1114, %v1395
    %v1409 = vadd.f32 %v1115, %v1392
    %v1410 = vadd.f32 %v1116, %v1388
    %v1411 = vadd.f32 %v1117, %v1384
    %v1412 = vadd.f32 %v1118, %v1396
    %s1413 = scalar_lea.vmem [#allocation5], 2560
    %v1414 = vld [vmem:[%s1413] sm:$0xff]
    %v1415 = vld [vmem:[%s1413 + $0x8] sm:$0xff]
    %v1416 = vld [vmem:[%s1413 + $0x10] sm:$0xff]
    %v1417 = vld [vmem:[%s1413 + $0x18] sm:$0xff]
    %v1418 = vld [vmem:[%s1413 + $0x20] sm:$0xff]
    %v1419 = vld [vmem:[%s1413 + $0x28] sm:$0xff]
    %v1420 = vld [vmem:[%s1413 + $0x30] sm:$0xff]
    %v1421 = vld [vmem:[%s1413 + $0x38] sm:$0xff]
    %v1422 = vld [vmem:[%s1413 + $0x40] sm:$0xff]
    %v1423 = vld [vmem:[%s1413 + $0x48] sm:$0xff]
    %v1424 = vld [vmem:[%s1413 + $0x50] sm:$0xff]
    %v1425 = vld [vmem:[%s1413 + $0x58] sm:$0xff]
    %v1426 = vld [vmem:[%s1413 + $0x60] sm:$0xff]
    %v1427 = vld [vmem:[%s1413 + $0x68] sm:$0xff]
    %v1428 = vld [vmem:[%s1413 + $0x70] sm:$0xff]
    %v1429 = vld [vmem:[%s1413 + $0x78] sm:$0xff]
    %v1430 = vmul.f32 %v152, %v1414
    %v1431 = vmul.f32 %v148, %v1415
    %v1432 = vmul.f32 %v144, %v1416
    %v1433 = vmul.f32 %v140, %v1417
    %v1434 = vmul.f32 %v153, %v1418
    %v1435 = vmul.f32 %v149, %v1419
    %v1436 = vmul.f32 %v145, %v1420
    %v1437 = vmul.f32 %v141, %v1421
    %v1438 = vmul.f32 %v154, %v1422
    %v1439 = vmul.f32 %v150, %v1423
    %v1440 = vmul.f32 %v146, %v1424
    %v1441 = vmul.f32 %v142, %v1425
    %v1442 = vmul.f32 %v155, %v1426
    %v1443 = vmul.f32 %v151, %v1427
    %v1444 = vmul.f32 %v147, %v1428
    %v1445 = vmul.f32 %v143, %v1429
    %s1446 = scalar_lea.vmem [#allocation5], 2688
    %v1447 = vld [vmem:[%s1446] sm:$0xff]
    %v1448 = vld [vmem:[%s1446 + $0x8] sm:$0xff]
    %v1449 = vld [vmem:[%s1446 + $0x10] sm:$0xff]
    %v1450 = vld [vmem:[%s1446 + $0x18] sm:$0xff]
    %v1451 = vld [vmem:[%s1446 + $0x20] sm:$0xff]
    %v1452 = vld [vmem:[%s1446 + $0x28] sm:$0xff]
    %v1453 = vld [vmem:[%s1446 + $0x30] sm:$0xff]
    %v1454 = vld [vmem:[%s1446 + $0x38] sm:$0xff]
    %v1455 = vld [vmem:[%s1446 + $0x40] sm:$0xff]
    %v1456 = vld [vmem:[%s1446 + $0x48] sm:$0xff]
    %v1457 = vld [vmem:[%s1446 + $0x50] sm:$0xff]
    %v1458 = vld [vmem:[%s1446 + $0x58] sm:$0xff]
    %v1459 = vld [vmem:[%s1446 + $0x60] sm:$0xff]
    %v1460 = vld [vmem:[%s1446 + $0x68] sm:$0xff]
    %v1461 = vld [vmem:[%s1446 + $0x70] sm:$0xff]
    %v1462 = vld [vmem:[%s1446 + $0x78] sm:$0xff]
    %v1463 = vmul.f32 %v201, %v1447
    %v1464 = vmul.f32 %v197, %v1448
    %v1465 = vmul.f32 %v193, %v1449
    %v1466 = vmul.f32 %v189, %v1450
    %v1467 = vmul.f32 %v202, %v1451
    %v1468 = vmul.f32 %v198, %v1452
    %v1469 = vmul.f32 %v194, %v1453
    %v1470 = vmul.f32 %v190, %v1454
    %v1471 = vmul.f32 %v203, %v1455
    %v1472 = vmul.f32 %v199, %v1456
    %v1473 = vmul.f32 %v195, %v1457
    %v1474 = vmul.f32 %v191, %v1458
    %v1475 = vmul.f32 %v204, %v1459
    %v1476 = vmul.f32 %v200, %v1460
    %v1477 = vmul.f32 %v196, %v1461
    %v1478 = vmul.f32 %v192, %v1462
    %v1479 = vadd.f32 %v1430, %v1463
    %v1480 = vadd.f32 %v1431, %v1464
    %v1481 = vadd.f32 %v1432, %v1465
    %v1482 = vadd.f32 %v1433, %v1466
    %v1483 = vadd.f32 %v1434, %v1467
    %v1484 = vadd.f32 %v1435, %v1468
    %v1485 = vadd.f32 %v1436, %v1469
    %v1486 = vadd.f32 %v1437, %v1470
    %v1487 = vadd.f32 %v1438, %v1471
    %v1488 = vadd.f32 %v1439, %v1472
    %v1489 = vadd.f32 %v1440, %v1473
    %v1490 = vadd.f32 %v1441, %v1474
    %v1491 = vadd.f32 %v1442, %v1475
    %v1492 = vadd.f32 %v1443, %v1476
    %v1493 = vadd.f32 %v1444, %v1477
    %v1494 = vadd.f32 %v1445, %v1478
    %s1495 = scalar_lea.vmem [#allocation5], 2816
    %v1496 = vld [vmem:[%s1495] sm:$0xff]
    %v1497 = vld [vmem:[%s1495 + $0x8] sm:$0xff]
    %v1498 = vld [vmem:[%s1495 + $0x10] sm:$0xff]
    %v1499 = vld [vmem:[%s1495 + $0x18] sm:$0xff]
    %v1500 = vld [vmem:[%s1495 + $0x20] sm:$0xff]
    %v1501 = vld [vmem:[%s1495 + $0x28] sm:$0xff]
    %v1502 = vld [vmem:[%s1495 + $0x30] sm:$0xff]
    %v1503 = vld [vmem:[%s1495 + $0x38] sm:$0xff]
    %v1504 = vld [vmem:[%s1495 + $0x40] sm:$0xff]
    %v1505 = vld [vmem:[%s1495 + $0x48] sm:$0xff]
    %v1506 = vld [vmem:[%s1495 + $0x50] sm:$0xff]
    %v1507 = vld [vmem:[%s1495 + $0x58] sm:$0xff]
    %v1508 = vld [vmem:[%s1495 + $0x60] sm:$0xff]
    %v1509 = vld [vmem:[%s1495 + $0x68] sm:$0xff]
    %v1510 = vld [vmem:[%s1495 + $0x70] sm:$0xff]
    %v1511 = vld [vmem:[%s1495 + $0x78] sm:$0xff]
    %v1512 = vmul.f32 %v89, %v1496
    %v1513 = vmul.f32 %v90, %v1497
    %v1514 = vmul.f32 %v91, %v1498
    %v1515 = vmul.f32 %v92, %v1499
    %v1516 = vmul.f32 %v93, %v1500
    %v1517 = vmul.f32 %v94, %v1501
    %v1518 = vmul.f32 %v95, %v1502
    %v1519 = vmul.f32 %v96, %v1503
    %v1520 = vmul.f32 %v97, %v1504
    %v1521 = vmul.f32 %v98, %v1505
    %v1522 = vmul.f32 %v99, %v1506
    %v1523 = vmul.f32 %v100, %v1507
    %v1524 = vmul.f32 %v101, %v1508
    %v1525 = vmul.f32 %v102, %v1509
    %v1526 = vmul.f32 %v103, %v1510
    %v1527 = vmul.f32 %v104, %v1511
    %v1528 = vadd.f32 %v1479, %v1512
    %v1529 = vadd.f32 %v1480, %v1513
    %v1530 = vadd.f32 %v1481, %v1514
    %v1531 = vadd.f32 %v1482, %v1515
    %v1532 = vadd.f32 %v1483, %v1516
    %v1533 = vadd.f32 %v1484, %v1517
    %v1534 = vadd.f32 %v1485, %v1518
    %v1535 = vadd.f32 %v1486, %v1519
    %v1536 = vadd.f32 %v1487, %v1520
    %v1537 = vadd.f32 %v1488, %v1521
    %v1538 = vadd.f32 %v1489, %v1522
    %v1539 = vadd.f32 %v1490, %v1523
    %v1540 = vadd.f32 %v1491, %v1524
    %v1541 = vadd.f32 %v1492, %v1525
    %v1542 = vadd.f32 %v1493, %v1526
    %v1543 = vadd.f32 %v1494, %v1527
    %s1544 = scalar_lea.vmem [#allocation5], 2944
    %v1545 = vld [vmem:[%s1544] sm:$0xff]
    %v1546 = vld [vmem:[%s1544 + $0x8] sm:$0xff]
    %v1547 = vld [vmem:[%s1544 + $0x10] sm:$0xff]
    %v1548 = vld [vmem:[%s1544 + $0x18] sm:$0xff]
    %v1549 = vld [vmem:[%s1544 + $0x20] sm:$0xff]
    %v1550 = vld [vmem:[%s1544 + $0x28] sm:$0xff]
    %v1551 = vld [vmem:[%s1544 + $0x30] sm:$0xff]
    %v1552 = vld [vmem:[%s1544 + $0x38] sm:$0xff]
    %v1553 = vld [vmem:[%s1544 + $0x40] sm:$0xff]
    %v1554 = vld [vmem:[%s1544 + $0x48] sm:$0xff]
    %v1555 = vld [vmem:[%s1544 + $0x50] sm:$0xff]
    %v1556 = vld [vmem:[%s1544 + $0x58] sm:$0xff]
    %v1557 = vld [vmem:[%s1544 + $0x60] sm:$0xff]
    %v1558 = vld [vmem:[%s1544 + $0x68] sm:$0xff]
    %v1559 = vld [vmem:[%s1544 + $0x70] sm:$0xff]
    %v1560 = vld [vmem:[%s1544 + $0x78] sm:$0xff]
    %v1561 = vmul.f32 %v246, %v1545
    %v1562 = vmul.f32 %v242, %v1546
    %v1563 = vmul.f32 %v238, %v1547
    %v1564 = vmul.f32 %v250, %v1548
    %v1565 = vmul.f32 %v247, %v1549
    %v1566 = vmul.f32 %v243, %v1550
    %v1567 = vmul.f32 %v239, %v1551
    %v1568 = vmul.f32 %v251, %v1552
    %v1569 = vmul.f32 %v248, %v1553
    %v1570 = vmul.f32 %v244, %v1554
    %v1571 = vmul.f32 %v240, %v1555
    %v1572 = vmul.f32 %v252, %v1556
    %v1573 = vmul.f32 %v249, %v1557
    %v1574 = vmul.f32 %v245, %v1558
    %v1575 = vmul.f32 %v241, %v1559
    %v1576 = vmul.f32 %v253, %v1560
    %v1577 = vadd.f32 %v1528, %v1561
    %v1578 = vadd.f32 %v1529, %v1562
    %v1579 = vadd.f32 %v1530, %v1563
    %v1580 = vadd.f32 %v1531, %v1564
    %v1581 = vadd.f32 %v1532, %v1565
    %v1582 = vadd.f32 %v1533, %v1566
    %v1583 = vadd.f32 %v1534, %v1567
    %v1584 = vadd.f32 %v1535, %v1568
    %v1585 = vadd.f32 %v1536, %v1569
    %v1586 = vadd.f32 %v1537, %v1570
    %v1587 = vadd.f32 %v1538, %v1571
    %v1588 = vadd.f32 %v1539, %v1572
    %v1589 = vadd.f32 %v1540, %v1573
    %v1590 = vadd.f32 %v1541, %v1574
    %v1591 = vadd.f32 %v1542, %v1575
    %v1592 = vadd.f32 %v1543, %v1576
    %s1593 = scalar_lea.vmem [#allocation5], 3072
    %v1594 = vld [vmem:[%s1593] sm:$0xff]
    %v1595 = vld [vmem:[%s1593 + $0x8] sm:$0xff]
    %v1596 = vld [vmem:[%s1593 + $0x10] sm:$0xff]
    %v1597 = vld [vmem:[%s1593 + $0x18] sm:$0xff]
    %v1598 = vld [vmem:[%s1593 + $0x20] sm:$0xff]
    %v1599 = vld [vmem:[%s1593 + $0x28] sm:$0xff]
    %v1600 = vld [vmem:[%s1593 + $0x30] sm:$0xff]
    %v1601 = vld [vmem:[%s1593 + $0x38] sm:$0xff]
    %v1602 = vld [vmem:[%s1593 + $0x40] sm:$0xff]
    %v1603 = vld [vmem:[%s1593 + $0x48] sm:$0xff]
    %v1604 = vld [vmem:[%s1593 + $0x50] sm:$0xff]
    %v1605 = vld [vmem:[%s1593 + $0x58] sm:$0xff]
    %v1606 = vld [vmem:[%s1593 + $0x60] sm:$0xff]
    %v1607 = vld [vmem:[%s1593 + $0x68] sm:$0xff]
    %v1608 = vld [vmem:[%s1593 + $0x70] sm:$0xff]
    %v1609 = vld [vmem:[%s1593 + $0x78] sm:$0xff]
    %v1610 = vmul.f32 %v295, %v1594
    %v1611 = vmul.f32 %v291, %v1595
    %v1612 = vmul.f32 %v287, %v1596
    %v1613 = vmul.f32 %v299, %v1597
    %v1614 = vmul.f32 %v296, %v1598
    %v1615 = vmul.f32 %v292, %v1599
    %v1616 = vmul.f32 %v288, %v1600
    %v1617 = vmul.f32 %v300, %v1601
    %v1618 = vmul.f32 %v297, %v1602
    %v1619 = vmul.f32 %v293, %v1603
    %v1620 = vmul.f32 %v289, %v1604
    %v1621 = vmul.f32 %v301, %v1605
    %v1622 = vmul.f32 %v298, %v1606
    %v1623 = vmul.f32 %v294, %v1607
    %v1624 = vmul.f32 %v290, %v1608
    %v1625 = vmul.f32 %v302, %v1609
    %v1626 = vadd.f32 %v1577, %v1610
    %v1627 = vadd.f32 %v1578, %v1611
    %v1628 = vadd.f32 %v1579, %v1612
    %v1629 = vadd.f32 %v1580, %v1613
    %v1630 = vadd.f32 %v1581, %v1614
    %v1631 = vadd.f32 %v1582, %v1615
    %v1632 = vadd.f32 %v1583, %v1616
    %v1633 = vadd.f32 %v1584, %v1617
    %v1634 = vadd.f32 %v1585, %v1618
    %v1635 = vadd.f32 %v1586, %v1619
    %v1636 = vadd.f32 %v1587, %v1620
    %v1637 = vadd.f32 %v1588, %v1621
    %v1638 = vadd.f32 %v1589, %v1622
    %v1639 = vadd.f32 %v1590, %v1623
    %v1640 = vadd.f32 %v1591, %v1624
    %v1641 = vadd.f32 %v1592, %v1625
    %1642 = vrot.lane.b32.xlu0 %v1626, 96
    %v1643 = vpop.permute.xlu0 %1642
    %1644 = vrot.lane.b32.xlu0 %v1630, 96
    %v1645 = vpop.permute.xlu0 %1644
    %1646 = vrot.lane.b32.xlu0 %v1634, 96
    %v1647 = vpop.permute.xlu0 %1646
    %1648 = vrot.lane.b32.xlu0 %v1638, 96
    %v1649 = vpop.permute.xlu0 %1648
    %1650 = vrot.lane.b32.xlu0 %v1627, 96
    %v1651 = vpop.permute.xlu0 %1650
    %1652 = vrot.lane.b32.xlu0 %v1631, 96
    %v1653 = vpop.permute.xlu0 %1652
    %1654 = vrot.lane.b32.xlu0 %v1635, 96
    %v1655 = vpop.permute.xlu0 %1654
    %1656 = vrot.lane.b32.xlu0 %v1639, 96
    %v1657 = vpop.permute.xlu0 %1656
    %1658 = vrot.lane.b32.xlu0 %v1628, 96
    %v1659 = vpop.permute.xlu0 %1658
    %1660 = vrot.lane.b32.xlu0 %v1632, 96
    %v1661 = vpop.permute.xlu0 %1660
    %1662 = vrot.lane.b32.xlu0 %v1636, 96
    %v1663 = vpop.permute.xlu0 %1662
    %1664 = vrot.lane.b32.xlu0 %v1640, 96
    %v1665 = vpop.permute.xlu0 %1664
    %1666 = vrot.lane.b32.xlu0 %v1629, 96
    %v1667 = vpop.permute.xlu0 %1666
    %1668 = vrot.lane.b32.xlu0 %v1633, 96
    %v1669 = vpop.permute.xlu0 %1668
    %1670 = vrot.lane.b32.xlu0 %v1637, 96
    %v1671 = vpop.permute.xlu0 %1670
    %1672 = vrot.lane.b32.xlu0 %v1641, 96
    %v1673 = vpop.permute.xlu0 %1672
    %vm1674 = vcmp.lt.s32.totalorder %v138, 96
    %v1675 = vsel %vm1674, %v1659, %v1667
    %v1676 = vsel %vm1674, %v1661, %v1669
    %v1677 = vsel %vm1674, %v1663, %v1671
    %v1678 = vsel %vm1674, %v1665, %v1673
    %v1679 = vsel %vm1674, %v1651, %v1659
    %v1680 = vsel %vm1674, %v1653, %v1661
    %v1681 = vsel %vm1674, %v1655, %v1663
    %v1682 = vsel %vm1674, %v1657, %v1665
    %v1683 = vsel %vm1674, %v1643, %v1651
    %v1684 = vsel %vm1674, %v1645, %v1653
    %v1685 = vsel %vm1674, %v1647, %v1655
    %v1686 = vsel %vm1674, %v1649, %v1657
    %v1687 = vsel %vm1674, %v1667, %v1643
    %v1688 = vsel %vm1674, %v1669, %v1645
    %v1689 = vsel %vm1674, %v1671, %v1647
    %v1690 = vsel %vm1674, %v1673, %v1649
    %v1691 = vadd.f32 %v1397, %v1683
    %v1692 = vadd.f32 %v1398, %v1679
    %v1693 = vadd.f32 %v1399, %v1675
    %v1694 = vadd.f32 %v1400, %v1687
    %v1695 = vadd.f32 %v1401, %v1684
    %v1696 = vadd.f32 %v1402, %v1680
    %v1697 = vadd.f32 %v1403, %v1676
    %v1698 = vadd.f32 %v1404, %v1688
    %v1699 = vadd.f32 %v1405, %v1685
    %v1700 = vadd.f32 %v1406, %v1681
    %v1701 = vadd.f32 %v1407, %v1677
    %v1702 = vadd.f32 %v1408, %v1689
    %v1703 = vadd.f32 %v1409, %v1686
    %v1704 = vadd.f32 %v1410, %v1682
    %v1705 = vadd.f32 %v1411, %v1678
    %v1706 = vadd.f32 %v1412, %v1690
    %v1707 = vld [vmem:[%s2] sm:$0xff]
    %v1708 = vld [vmem:[%s2 + $0x8] sm:$0xff]
    %v1709 = vld [vmem:[%s2 + $0x10] sm:$0xff]
    %v1710 = vld [vmem:[%s2 + $0x18] sm:$0xff]
    %1712 = vset.pattern.permute.xlu0 0
    %1713 = vperm.xlu0 %1712, %v1707
    %v1714 = vpop.permute.xlu0 %1713
    %1717 = vset.pattern.permute.xlu0 0
    %1718 = vperm.xlu0 %1717, %v1708
    %v1719 = vpop.permute.xlu0 %1718
    %1722 = vset.pattern.permute.xlu0 0
    %1723 = vperm.xlu0 %1722, %v1709
    %v1724 = vpop.permute.xlu0 %1723
    %1727 = vset.pattern.permute.xlu0 0
    %1728 = vperm.xlu0 %1727, %v1710
    %v1729 = vpop.permute.xlu0 %1728
    %v1731 = vadd.f32 %v1691, %v1714
    %v1732 = vadd.f32 %v1692, %v1714
    %v1733 = vadd.f32 %v1693, %v1714
    %v1734 = vadd.f32 %v1694, %v1714
    %v1735 = vadd.f32 %v1695, %v1719
    %v1736 = vadd.f32 %v1696, %v1719
    %v1737 = vadd.f32 %v1697, %v1719
    %v1738 = vadd.f32 %v1698, %v1719
    %v1739 = vadd.f32 %v1699, %v1724
    %v1740 = vadd.f32 %v1700, %v1724
    %v1741 = vadd.f32 %v1701, %v1724
    %v1742 = vadd.f32 %v1702, %v1724
    %v1743 = vadd.f32 %v1703, %v1729
    %v1744 = vadd.f32 %v1704, %v1729
    %v1745 = vadd.f32 %v1705, %v1729
    %v1746 = vadd.f32 %v1706, %v1729
    %v1747 = vmax.f32 %v1731, 0.0
    %v1748 = vmax.f32 %v1732, 0.0
    %v1749 = vmax.f32 %v1733, 0.0
    %v1750 = vmax.f32 %v1734, 0.0
    %v1751 = vmax.f32 %v1735, 0.0
    %v1752 = vmax.f32 %v1736, 0.0
    %v1753 = vmax.f32 %v1737, 0.0
    %v1754 = vmax.f32 %v1738, 0.0
    %v1755 = vmax.f32 %v1739, 0.0
    %v1756 = vmax.f32 %v1740, 0.0
    %v1757 = vmax.f32 %v1741, 0.0
    %v1758 = vmax.f32 %v1742, 0.0
    %v1759 = vmax.f32 %v1743, 0.0
    %v1760 = vmax.f32 %v1744, 0.0
    %v1761 = vmax.f32 %v1745, 0.0
    %v1762 = vmax.f32 %v1746, 0.0
    %1763 = vrot.lane.b32.xlu0 %v1747, 1
    %v1764 = vpop.permute.xlu0 %1763
    %1765 = vrot.lane.b32.xlu0 %v1751, 1
    %v1766 = vpop.permute.xlu0 %1765
    %1767 = vrot.lane.b32.xlu0 %v1755, 1
    %v1768 = vpop.permute.xlu0 %1767
    %1769 = vrot.lane.b32.xlu0 %v1759, 1
    %v1770 = vpop.permute.xlu0 %1769
    %1771 = vrot.lane.b32.xlu0 %v1748, 1
    %v1772 = vpop.permute.xlu0 %1771
    %1773 = vrot.lane.b32.xlu0 %v1752, 1
    %v1774 = vpop.permute.xlu0 %1773
    %1775 = vrot.lane.b32.xlu0 %v1756, 1
    %v1776 = vpop.permute.xlu0 %1775
    %1777 = vrot.lane.b32.xlu0 %v1760, 1
    %v1778 = vpop.permute.xlu0 %1777
    %1779 = vrot.lane.b32.xlu0 %v1749, 1
    %v1780 = vpop.permute.xlu0 %1779
    %1781 = vrot.lane.b32.xlu0 %v1753, 1
    %v1782 = vpop.permute.xlu0 %1781
    %1783 = vrot.lane.b32.xlu0 %v1757, 1
    %v1784 = vpop.permute.xlu0 %1783
    %1785 = vrot.lane.b32.xlu0 %v1761, 1
    %v1786 = vpop.permute.xlu0 %1785
    %1787 = vrot.lane.b32.xlu0 %v1750, 1
    %v1788 = vpop.permute.xlu0 %1787
    %1789 = vrot.lane.b32.xlu0 %v1754, 1
    %v1790 = vpop.permute.xlu0 %1789
    %1791 = vrot.lane.b32.xlu0 %v1758, 1
    %v1792 = vpop.permute.xlu0 %1791
    %1793 = vrot.lane.b32.xlu0 %v1762, 1
    %v1794 = vpop.permute.xlu0 %1793
    %v1795 = vsel %vm188, %v1780, %v1788
    %v1796 = vsel %vm188, %v1782, %v1790
    %v1797 = vsel %vm188, %v1784, %v1792
    %v1798 = vsel %vm188, %v1786, %v1794
    %v1799 = vsel %vm188, %v1772, %v1780
    %v1800 = vsel %vm188, %v1774, %v1782
    %v1801 = vsel %vm188, %v1776, %v1784
    %v1802 = vsel %vm188, %v1778, %v1786
    %v1803 = vsel %vm188, %v1764, %v1772
    %v1804 = vsel %vm188, %v1766, %v1774
    %v1805 = vsel %vm188, %v1768, %v1776
    %v1806 = vsel %vm188, %v1770, %v1778
    %v1807 = vsel %vm188, %v1788, %v1764
    %v1808 = vsel %vm188, %v1790, %v1766
    %v1809 = vsel %vm188, %v1792, %v1768
    %v1810 = vsel %vm188, %v1794, %v1770
    %1811 = vrot.lane.b32.xlu0 %v1747, 127
    %v1812 = vpop.permute.xlu0 %1811
    %1813 = vrot.lane.b32.xlu0 %v1751, 127
    %v1814 = vpop.permute.xlu0 %1813
    %1815 = vrot.lane.b32.xlu0 %v1755, 127
    %v1816 = vpop.permute.xlu0 %1815
    %1817 = vrot.lane.b32.xlu0 %v1759, 127
    %v1818 = vpop.permute.xlu0 %1817
    %1819 = vrot.lane.b32.xlu0 %v1748, 127
    %v1820 = vpop.permute.xlu0 %1819
    %1821 = vrot.lane.b32.xlu0 %v1752, 127
    %v1822 = vpop.permute.xlu0 %1821
    %1823 = vrot.lane.b32.xlu0 %v1756, 127
    %v1824 = vpop.permute.xlu0 %1823
    %1825 = vrot.lane.b32.xlu0 %v1760, 127
    %v1826 = vpop.permute.xlu0 %1825
    %1827 = vrot.lane.b32.xlu0 %v1749, 127
    %v1828 = vpop.permute.xlu0 %1827
    %1829 = vrot.lane.b32.xlu0 %v1753, 127
    %v1830 = vpop.permute.xlu0 %1829
    %1831 = vrot.lane.b32.xlu0 %v1757, 127
    %v1832 = vpop.permute.xlu0 %1831
    %1833 = vrot.lane.b32.xlu0 %v1761, 127
    %v1834 = vpop.permute.xlu0 %1833
    %1835 = vrot.lane.b32.xlu0 %v1750, 127
    %v1836 = vpop.permute.xlu0 %1835
    %1837 = vrot.lane.b32.xlu0 %v1754, 127
    %v1838 = vpop.permute.xlu0 %1837
    %1839 = vrot.lane.b32.xlu0 %v1758, 127
    %v1840 = vpop.permute.xlu0 %1839
    %1841 = vrot.lane.b32.xlu0 %v1762, 127
    %v1842 = vpop.permute.xlu0 %1841
    %v1843 = vsel %vm237, %v1828, %v1836
    %v1844 = vsel %vm237, %v1830, %v1838
    %v1845 = vsel %vm237, %v1832, %v1840
    %v1846 = vsel %vm237, %v1834, %v1842
    %v1847 = vsel %vm237, %v1820, %v1828
    %v1848 = vsel %vm237, %v1822, %v1830
    %v1849 = vsel %vm237, %v1824, %v1832
    %v1850 = vsel %vm237, %v1826, %v1834
    %v1851 = vsel %vm237, %v1812, %v1820
    %v1852 = vsel %vm237, %v1814, %v1822
    %v1853 = vsel %vm237, %v1816, %v1824
    %v1854 = vsel %vm237, %v1818, %v1826
    %v1855 = vsel %vm237, %v1836, %v1812
    %v1856 = vsel %vm237, %v1838, %v1814
    %v1857 = vsel %vm237, %v1840, %v1816
    %v1858 = vsel %vm237, %v1842, %v1818
    %v1859 = vld [vmem:[#allocation7] sm:$0xff]
    %v1860 = vld [vmem:[#allocation7 + $0x8] sm:$0xff]
    %v1861 = vld [vmem:[#allocation7 + $0x10] sm:$0xff]
    %v1862 = vld [vmem:[#allocation7 + $0x18] sm:$0xff]
    %v1863 = vld [vmem:[#allocation7 + $0x20] sm:$0xff]
    %v1864 = vld [vmem:[#allocation7 + $0x28] sm:$0xff]
    %v1865 = vld [vmem:[#allocation7 + $0x30] sm:$0xff]
    %v1866 = vld [vmem:[#allocation7 + $0x38] sm:$0xff]
    %v1867 = vld [vmem:[#allocation7 + $0x40] sm:$0xff]
    %v1868 = vld [vmem:[#allocation7 + $0x48] sm:$0xff]
    %v1869 = vld [vmem:[#allocation7 + $0x50] sm:$0xff]
    %v1870 = vld [vmem:[#allocation7 + $0x58] sm:$0xff]
    %v1871 = vld [vmem:[#allocation7 + $0x60] sm:$0xff]
    %v1872 = vld [vmem:[#allocation7 + $0x68] sm:$0xff]
    %v1873 = vld [vmem:[#allocation7 + $0x70] sm:$0xff]
    %v1874 = vld [vmem:[#allocation7 + $0x78] sm:$0xff]
    %v1875 = vmul.f32 %v1807, %v1859
    %v1876 = vmul.f32 %v1803, %v1860
    %v1877 = vmul.f32 %v1799, %v1861
    %v1878 = vmul.f32 %v1795, %v1862
    %v1879 = vmul.f32 %v1808, %v1863
    %v1880 = vmul.f32 %v1804, %v1864
    %v1881 = vmul.f32 %v1800, %v1865
    %v1882 = vmul.f32 %v1796, %v1866
    %v1883 = vmul.f32 %v1809, %v1867
    %v1884 = vmul.f32 %v1805, %v1868
    %v1885 = vmul.f32 %v1801, %v1869
    %v1886 = vmul.f32 %v1797, %v1870
    %v1887 = vmul.f32 %v1810, %v1871
    %v1888 = vmul.f32 %v1806, %v1872
    %v1889 = vmul.f32 %v1802, %v1873
    %v1890 = vmul.f32 %v1798, %v1874
    %s1891 = scalar_lea.vmem [#allocation7], 128
    %v1892 = vld [vmem:[%s1891] sm:$0xff]
    %v1893 = vld [vmem:[%s1891 + $0x8] sm:$0xff]
    %v1894 = vld [vmem:[%s1891 + $0x10] sm:$0xff]
    %v1895 = vld [vmem:[%s1891 + $0x18] sm:$0xff]
    %v1896 = vld [vmem:[%s1891 + $0x20] sm:$0xff]
    %v1897 = vld [vmem:[%s1891 + $0x28] sm:$0xff]
    %v1898 = vld [vmem:[%s1891 + $0x30] sm:$0xff]
    %v1899 = vld [vmem:[%s1891 + $0x38] sm:$0xff]
    %v1900 = vld [vmem:[%s1891 + $0x40] sm:$0xff]
    %v1901 = vld [vmem:[%s1891 + $0x48] sm:$0xff]
    %v1902 = vld [vmem:[%s1891 + $0x50] sm:$0xff]
    %v1903 = vld [vmem:[%s1891 + $0x58] sm:$0xff]
    %v1904 = vld [vmem:[%s1891 + $0x60] sm:$0xff]
    %v1905 = vld [vmem:[%s1891 + $0x68] sm:$0xff]
    %v1906 = vld [vmem:[%s1891 + $0x70] sm:$0xff]
    %v1907 = vld [vmem:[%s1891 + $0x78] sm:$0xff]
    %v1908 = vmul.f32 %v1747, %v1892
    %v1909 = vmul.f32 %v1748, %v1893
    %v1910 = vmul.f32 %v1749, %v1894
    %v1911 = vmul.f32 %v1750, %v1895
    %v1912 = vmul.f32 %v1751, %v1896
    %v1913 = vmul.f32 %v1752, %v1897
    %v1914 = vmul.f32 %v1753, %v1898
    %v1915 = vmul.f32 %v1754, %v1899
    %v1916 = vmul.f32 %v1755, %v1900
    %v1917 = vmul.f32 %v1756, %v1901
    %v1918 = vmul.f32 %v1757, %v1902
    %v1919 = vmul.f32 %v1758, %v1903
    %v1920 = vmul.f32 %v1759, %v1904
    %v1921 = vmul.f32 %v1760, %v1905
    %v1922 = vmul.f32 %v1761, %v1906
    %v1923 = vmul.f32 %v1762, %v1907
    %v1924 = vadd.f32 %v1875, %v1908
    %v1925 = vadd.f32 %v1876, %v1909
    %v1926 = vadd.f32 %v1877, %v1910
    %v1927 = vadd.f32 %v1878, %v1911
    %v1928 = vadd.f32 %v1879, %v1912
    %v1929 = vadd.f32 %v1880, %v1913
    %v1930 = vadd.f32 %v1881, %v1914
    %v1931 = vadd.f32 %v1882, %v1915
    %v1932 = vadd.f32 %v1883, %v1916
    %v1933 = vadd.f32 %v1884, %v1917
    %v1934 = vadd.f32 %v1885, %v1918
    %v1935 = vadd.f32 %v1886, %v1919
    %v1936 = vadd.f32 %v1887, %v1920
    %v1937 = vadd.f32 %v1888, %v1921
    %v1938 = vadd.f32 %v1889, %v1922
    %v1939 = vadd.f32 %v1890, %v1923
    %s1940 = scalar_lea.vmem [#allocation7], 256
    %v1941 = vld [vmem:[%s1940] sm:$0xff]
    %v1942 = vld [vmem:[%s1940 + $0x8] sm:$0xff]
    %v1943 = vld [vmem:[%s1940 + $0x10] sm:$0xff]
    %v1944 = vld [vmem:[%s1940 + $0x18] sm:$0xff]
    %v1945 = vld [vmem:[%s1940 + $0x20] sm:$0xff]
    %v1946 = vld [vmem:[%s1940 + $0x28] sm:$0xff]
    %v1947 = vld [vmem:[%s1940 + $0x30] sm:$0xff]
    %v1948 = vld [vmem:[%s1940 + $0x38] sm:$0xff]
    %v1949 = vld [vmem:[%s1940 + $0x40] sm:$0xff]
    %v1950 = vld [vmem:[%s1940 + $0x48] sm:$0xff]
    %v1951 = vld [vmem:[%s1940 + $0x50] sm:$0xff]
    %v1952 = vld [vmem:[%s1940 + $0x58] sm:$0xff]
    %v1953 = vld [vmem:[%s1940 + $0x60] sm:$0xff]
    %v1954 = vld [vmem:[%s1940 + $0x68] sm:$0xff]
    %v1955 = vld [vmem:[%s1940 + $0x70] sm:$0xff]
    %v1956 = vld [vmem:[%s1940 + $0x78] sm:$0xff]
    %v1957 = vmul.f32 %v1851, %v1941
    %v1958 = vmul.f32 %v1847, %v1942
    %v1959 = vmul.f32 %v1843, %v1943
    %v1960 = vmul.f32 %v1855, %v1944
    %v1961 = vmul.f32 %v1852, %v1945
    %v1962 = vmul.f32 %v1848, %v1946
    %v1963 = vmul.f32 %v1844, %v1947
    %v1964 = vmul.f32 %v1856, %v1948
    %v1965 = vmul.f32 %v1853, %v1949
    %v1966 = vmul.f32 %v1849, %v1950
    %v1967 = vmul.f32 %v1845, %v1951
    %v1968 = vmul.f32 %v1857, %v1952
    %v1969 = vmul.f32 %v1854, %v1953
    %v1970 = vmul.f32 %v1850, %v1954
    %v1971 = vmul.f32 %v1846, %v1955
    %v1972 = vmul.f32 %v1858, %v1956
    %v1973 = vadd.f32 %v1924, %v1957
    %v1974 = vadd.f32 %v1925, %v1958
    %v1975 = vadd.f32 %v1926, %v1959
    %v1976 = vadd.f32 %v1927, %v1960
    %v1977 = vadd.f32 %v1928, %v1961
    %v1978 = vadd.f32 %v1929, %v1962
    %v1979 = vadd.f32 %v1930, %v1963
    %v1980 = vadd.f32 %v1931, %v1964
    %v1981 = vadd.f32 %v1932, %v1965
    %v1982 = vadd.f32 %v1933, %v1966
    %v1983 = vadd.f32 %v1934, %v1967
    %v1984 = vadd.f32 %v1935, %v1968
    %v1985 = vadd.f32 %v1936, %v1969
    %v1986 = vadd.f32 %v1937, %v1970
    %v1987 = vadd.f32 %v1938, %v1971
    %v1988 = vadd.f32 %v1939, %v1972
    %1989 = vrot.lane.b32.xlu0 %v1973, 16
    %v1990 = vpop.permute.xlu0 %1989
    %1991 = vrot.lane.b32.xlu0 %v1977, 16
    %v1992 = vpop.permute.xlu0 %1991
    %1993 = vrot.lane.b32.xlu0 %v1981, 16
    %v1994 = vpop.permute.xlu0 %1993
    %1995 = vrot.lane.b32.xlu0 %v1985, 16
    %v1996 = vpop.permute.xlu0 %1995
    %1997 = vrot.lane.b32.xlu0 %v1974, 16
    %v1998 = vpop.permute.xlu0 %1997
    %1999 = vrot.lane.b32.xlu0 %v1978, 16
    %v2000 = vpop.permute.xlu0 %1999
    %2001 = vrot.lane.b32.xlu0 %v1982, 16
    %v2002 = vpop.permute.xlu0 %2001
    %2003 = vrot.lane.b32.xlu0 %v1986, 16
    %v2004 = vpop.permute.xlu0 %2003
    %2005 = vrot.lane.b32.xlu0 %v1975, 16
    %v2006 = vpop.permute.xlu0 %2005
    %2007 = vrot.lane.b32.xlu0 %v1979, 16
    %v2008 = vpop.permute.xlu0 %2007
    %2009 = vrot.lane.b32.xlu0 %v1983, 16
    %v2010 = vpop.permute.xlu0 %2009
    %2011 = vrot.lane.b32.xlu0 %v1987, 16
    %v2012 = vpop.permute.xlu0 %2011
    %2013 = vrot.lane.b32.xlu0 %v1976, 16
    %v2014 = vpop.permute.xlu0 %2013
    %2015 = vrot.lane.b32.xlu0 %v1980, 16
    %v2016 = vpop.permute.xlu0 %2015
    %2017 = vrot.lane.b32.xlu0 %v1984, 16
    %v2018 = vpop.permute.xlu0 %2017
    %2019 = vrot.lane.b32.xlu0 %v1988, 16
    %v2020 = vpop.permute.xlu0 %2019
    %v2021 = vsel %vm841, %v2006, %v2014
    %v2022 = vsel %vm841, %v2008, %v2016
    %v2023 = vsel %vm841, %v2010, %v2018
    %v2024 = vsel %vm841, %v2012, %v2020
    %v2025 = vsel %vm841, %v1998, %v2006
    %v2026 = vsel %vm841, %v2000, %v2008
    %v2027 = vsel %vm841, %v2002, %v2010
    %v2028 = vsel %vm841, %v2004, %v2012
    %v2029 = vsel %vm841, %v1990, %v1998
    %v2030 = vsel %vm841, %v1992, %v2000
    %v2031 = vsel %vm841, %v1994, %v2002
    %v2032 = vsel %vm841, %v1996, %v2004
    %v2033 = vsel %vm841, %v2014, %v1990
    %v2034 = vsel %vm841, %v2016, %v1992
    %v2035 = vsel %vm841, %v2018, %v1994
    %v2036 = vsel %vm841, %v2020, %v1996
    %s2037 = scalar_lea.vmem [#allocation7], 384
    %v2038 = vld [vmem:[%s2037] sm:$0xff]
    %v2039 = vld [vmem:[%s2037 + $0x8] sm:$0xff]
    %v2040 = vld [vmem:[%s2037 + $0x10] sm:$0xff]
    %v2041 = vld [vmem:[%s2037 + $0x18] sm:$0xff]
    %v2042 = vld [vmem:[%s2037 + $0x20] sm:$0xff]
    %v2043 = vld [vmem:[%s2037 + $0x28] sm:$0xff]
    %v2044 = vld [vmem:[%s2037 + $0x30] sm:$0xff]
    %v2045 = vld [vmem:[%s2037 + $0x38] sm:$0xff]
    %v2046 = vld [vmem:[%s2037 + $0x40] sm:$0xff]
    %v2047 = vld [vmem:[%s2037 + $0x48] sm:$0xff]
    %v2048 = vld [vmem:[%s2037 + $0x50] sm:$0xff]
    %v2049 = vld [vmem:[%s2037 + $0x58] sm:$0xff]
    %v2050 = vld [vmem:[%s2037 + $0x60] sm:$0xff]
    %v2051 = vld [vmem:[%s2037 + $0x68] sm:$0xff]
    %v2052 = vld [vmem:[%s2037 + $0x70] sm:$0xff]
    %v2053 = vld [vmem:[%s2037 + $0x78] sm:$0xff]
    %v2054 = vmul.f32 %v1807, %v2038
    %v2055 = vmul.f32 %v1803, %v2039
    %v2056 = vmul.f32 %v1799, %v2040
    %v2057 = vmul.f32 %v1795, %v2041
    %v2058 = vmul.f32 %v1808, %v2042
    %v2059 = vmul.f32 %v1804, %v2043
    %v2060 = vmul.f32 %v1800, %v2044
    %v2061 = vmul.f32 %v1796, %v2045
    %v2062 = vmul.f32 %v1809, %v2046
    %v2063 = vmul.f32 %v1805, %v2047
    %v2064 = vmul.f32 %v1801, %v2048
    %v2065 = vmul.f32 %v1797, %v2049
    %v2066 = vmul.f32 %v1810, %v2050
    %v2067 = vmul.f32 %v1806, %v2051
    %v2068 = vmul.f32 %v1802, %v2052
    %v2069 = vmul.f32 %v1798, %v2053
    %s2070 = scalar_lea.vmem [#allocation7], 512
    %v2071 = vld [vmem:[%s2070] sm:$0xff]
    %v2072 = vld [vmem:[%s2070 + $0x8] sm:$0xff]
    %v2073 = vld [vmem:[%s2070 + $0x10] sm:$0xff]
    %v2074 = vld [vmem:[%s2070 + $0x18] sm:$0xff]
    %v2075 = vld [vmem:[%s2070 + $0x20] sm:$0xff]
    %v2076 = vld [vmem:[%s2070 + $0x28] sm:$0xff]
    %v2077 = vld [vmem:[%s2070 + $0x30] sm:$0xff]
    %v2078 = vld [vmem:[%s2070 + $0x38] sm:$0xff]
    %v2079 = vld [vmem:[%s2070 + $0x40] sm:$0xff]
    %v2080 = vld [vmem:[%s2070 + $0x48] sm:$0xff]
    %v2081 = vld [vmem:[%s2070 + $0x50] sm:$0xff]
    %v2082 = vld [vmem:[%s2070 + $0x58] sm:$0xff]
    %v2083 = vld [vmem:[%s2070 + $0x60] sm:$0xff]
    %v2084 = vld [vmem:[%s2070 + $0x68] sm:$0xff]
    %v2085 = vld [vmem:[%s2070 + $0x70] sm:$0xff]
    %v2086 = vld [vmem:[%s2070 + $0x78] sm:$0xff]
    %v2087 = vmul.f32 %v1747, %v2071
    %v2088 = vmul.f32 %v1748, %v2072
    %v2089 = vmul.f32 %v1749, %v2073
    %v2090 = vmul.f32 %v1750, %v2074
    %v2091 = vmul.f32 %v1751, %v2075
    %v2092 = vmul.f32 %v1752, %v2076
    %v2093 = vmul.f32 %v1753, %v2077
    %v2094 = vmul.f32 %v1754, %v2078
    %v2095 = vmul.f32 %v1755, %v2079
    %v2096 = vmul.f32 %v1756, %v2080
    %v2097 = vmul.f32 %v1757, %v2081
    %v2098 = vmul.f32 %v1758, %v2082
    %v2099 = vmul.f32 %v1759, %v2083
    %v2100 = vmul.f32 %v1760, %v2084
    %v2101 = vmul.f32 %v1761, %v2085
    %v2102 = vmul.f32 %v1762, %v2086
    %v2103 = vadd.f32 %v2054, %v2087
    %v2104 = vadd.f32 %v2055, %v2088
    %v2105 = vadd.f32 %v2056, %v2089
    %v2106 = vadd.f32 %v2057, %v2090
    %v2107 = vadd.f32 %v2058, %v2091
    %v2108 = vadd.f32 %v2059, %v2092
    %v2109 = vadd.f32 %v2060, %v2093
    %v2110 = vadd.f32 %v2061, %v2094
    %v2111 = vadd.f32 %v2062, %v2095
    %v2112 = vadd.f32 %v2063, %v2096
    %v2113 = vadd.f32 %v2064, %v2097
    %v2114 = vadd.f32 %v2065, %v2098
    %v2115 = vadd.f32 %v2066, %v2099
    %v2116 = vadd.f32 %v2067, %v2100
    %v2117 = vadd.f32 %v2068, %v2101
    %v2118 = vadd.f32 %v2069, %v2102
    %s2119 = scalar_lea.vmem [#allocation7], 640
    %v2120 = vld [vmem:[%s2119] sm:$0xff]
    %v2121 = vld [vmem:[%s2119 + $0x8] sm:$0xff]
    %v2122 = vld [vmem:[%s2119 + $0x10] sm:$0xff]
    %v2123 = vld [vmem:[%s2119 + $0x18] sm:$0xff]
    %v2124 = vld [vmem:[%s2119 + $0x20] sm:$0xff]
    %v2125 = vld [vmem:[%s2119 + $0x28] sm:$0xff]
    %v2126 = vld [vmem:[%s2119 + $0x30] sm:$0xff]
    %v2127 = vld [vmem:[%s2119 + $0x38] sm:$0xff]
    %v2128 = vld [vmem:[%s2119 + $0x40] sm:$0xff]
    %v2129 = vld [vmem:[%s2119 + $0x48] sm:$0xff]
    %v2130 = vld [vmem:[%s2119 + $0x50] sm:$0xff]
    %v2131 = vld [vmem:[%s2119 + $0x58] sm:$0xff]
    %v2132 = vld [vmem:[%s2119 + $0x60] sm:$0xff]
    %v2133 = vld [vmem:[%s2119 + $0x68] sm:$0xff]
    %v2134 = vld [vmem:[%s2119 + $0x70] sm:$0xff]
    %v2135 = vld [vmem:[%s2119 + $0x78] sm:$0xff]
    %v2136 = vmul.f32 %v1851, %v2120
    %v2137 = vmul.f32 %v1847, %v2121
    %v2138 = vmul.f32 %v1843, %v2122
    %v2139 = vmul.f32 %v1855, %v2123
    %v2140 = vmul.f32 %v1852, %v2124
    %v2141 = vmul.f32 %v1848, %v2125
    %v2142 = vmul.f32 %v1844, %v2126
    %v2143 = vmul.f32 %v1856, %v2127
    %v2144 = vmul.f32 %v1853, %v2128
    %v2145 = vmul.f32 %v1849, %v2129
    %v2146 = vmul.f32 %v1845, %v2130
    %v2147 = vmul.f32 %v1857, %v2131
    %v2148 = vmul.f32 %v1854, %v2132
    %v2149 = vmul.f32 %v1850, %v2133
    %v2150 = vmul.f32 %v1846, %v2134
    %v2151 = vmul.f32 %v1858, %v2135
    %v2152 = vadd.f32 %v2103, %v2136
    %v2153 = vadd.f32 %v2104, %v2137
    %v2154 = vadd.f32 %v2105, %v2138
    %v2155 = vadd.f32 %v2106, %v2139
    %v2156 = vadd.f32 %v2107, %v2140
    %v2157 = vadd.f32 %v2108, %v2141
    %v2158 = vadd.f32 %v2109, %v2142
    %v2159 = vadd.f32 %v2110, %v2143
    %v2160 = vadd.f32 %v2111, %v2144
    %v2161 = vadd.f32 %v2112, %v2145
    %v2162 = vadd.f32 %v2113, %v2146
    %v2163 = vadd.f32 %v2114, %v2147
    %v2164 = vadd.f32 %v2115, %v2148
    %v2165 = vadd.f32 %v2116, %v2149
    %v2166 = vadd.f32 %v2117, %v2150
    %v2167 = vadd.f32 %v2118, %v2151
    %v2168 = vadd.f32 %v2033, %v2152
    %v2169 = vadd.f32 %v2029, %v2153
    %v2170 = vadd.f32 %v2025, %v2154
    %v2171 = vadd.f32 %v2021, %v2155
    %v2172 = vadd.f32 %v2034, %v2156
    %v2173 = vadd.f32 %v2030, %v2157
    %v2174 = vadd.f32 %v2026, %v2158
    %v2175 = vadd.f32 %v2022, %v2159
    %v2176 = vadd.f32 %v2035, %v2160
    %v2177 = vadd.f32 %v2031, %v2161
    %v2178 = vadd.f32 %v2027, %v2162
    %v2179 = vadd.f32 %v2023, %v2163
    %v2180 = vadd.f32 %v2036, %v2164
    %v2181 = vadd.f32 %v2032, %v2165
    %v2182 = vadd.f32 %v2028, %v2166
    %v2183 = vadd.f32 %v2024, %v2167
    %s2184 = scalar_lea.vmem [#allocation7], 768
    %v2185 = vld [vmem:[%s2184] sm:$0xff]
    %v2186 = vld [vmem:[%s2184 + $0x8] sm:$0xff]
    %v2187 = vld [vmem:[%s2184 + $0x10] sm:$0xff]
    %v2188 = vld [vmem:[%s2184 + $0x18] sm:$0xff]
    %v2189 = vld [vmem:[%s2184 + $0x20] sm:$0xff]
    %v2190 = vld [vmem:[%s2184 + $0x28] sm:$0xff]
    %v2191 = vld [vmem:[%s2184 + $0x30] sm:$0xff]
    %v2192 = vld [vmem:[%s2184 + $0x38] sm:$0xff]
    %v2193 = vld [vmem:[%s2184 + $0x40] sm:$0xff]
    %v2194 = vld [vmem:[%s2184 + $0x48] sm:$0xff]
    %v2195 = vld [vmem:[%s2184 + $0x50] sm:$0xff]
    %v2196 = vld [vmem:[%s2184 + $0x58] sm:$0xff]
    %v2197 = vld [vmem:[%s2184 + $0x60] sm:$0xff]
    %v2198 = vld [vmem:[%s2184 + $0x68] sm:$0xff]
    %v2199 = vld [vmem:[%s2184 + $0x70] sm:$0xff]
    %v2200 = vld [vmem:[%s2184 + $0x78] sm:$0xff]
    %v2201 = vmul.f32 %v1807, %v2185
    %v2202 = vmul.f32 %v1803, %v2186
    %v2203 = vmul.f32 %v1799, %v2187
    %v2204 = vmul.f32 %v1795, %v2188
    %v2205 = vmul.f32 %v1808, %v2189
    %v2206 = vmul.f32 %v1804, %v2190
    %v2207 = vmul.f32 %v1800, %v2191
    %v2208 = vmul.f32 %v1796, %v2192
    %v2209 = vmul.f32 %v1809, %v2193
    %v2210 = vmul.f32 %v1805, %v2194
    %v2211 = vmul.f32 %v1801, %v2195
    %v2212 = vmul.f32 %v1797, %v2196
    %v2213 = vmul.f32 %v1810, %v2197
    %v2214 = vmul.f32 %v1806, %v2198
    %v2215 = vmul.f32 %v1802, %v2199
    %v2216 = vmul.f32 %v1798, %v2200
    %s2217 = scalar_lea.vmem [#allocation7], 896
    %v2218 = vld [vmem:[%s2217] sm:$0xff]
    %v2219 = vld [vmem:[%s2217 + $0x8] sm:$0xff]
    %v2220 = vld [vmem:[%s2217 + $0x10] sm:$0xff]
    %v2221 = vld [vmem:[%s2217 + $0x18] sm:$0xff]
    %v2222 = vld [vmem:[%s2217 + $0x20] sm:$0xff]
    %v2223 = vld [vmem:[%s2217 + $0x28] sm:$0xff]
    %v2224 = vld [vmem:[%s2217 + $0x30] sm:$0xff]
    %v2225 = vld [vmem:[%s2217 + $0x38] sm:$0xff]
    %v2226 = vld [vmem:[%s2217 + $0x40] sm:$0xff]
    %v2227 = vld [vmem:[%s2217 + $0x48] sm:$0xff]
    %v2228 = vld [vmem:[%s2217 + $0x50] sm:$0xff]
    %v2229 = vld [vmem:[%s2217 + $0x58] sm:$0xff]
    %v2230 = vld [vmem:[%s2217 + $0x60] sm:$0xff]
    %v2231 = vld [vmem:[%s2217 + $0x68] sm:$0xff]
    %v2232 = vld [vmem:[%s2217 + $0x70] sm:$0xff]
    %v2233 = vld [vmem:[%s2217 + $0x78] sm:$0xff]
    %v2234 = vmul.f32 %v1747, %v2218
    %v2235 = vmul.f32 %v1748, %v2219
    %v2236 = vmul.f32 %v1749, %v2220
    %v2237 = vmul.f32 %v1750, %v2221
    %v2238 = vmul.f32 %v1751, %v2222
    %v2239 = vmul.f32 %v1752, %v2223
    %v2240 = vmul.f32 %v1753, %v2224
    %v2241 = vmul.f32 %v1754, %v2225
    %v2242 = vmul.f32 %v1755, %v2226
    %v2243 = vmul.f32 %v1756, %v2227
    %v2244 = vmul.f32 %v1757, %v2228
    %v2245 = vmul.f32 %v1758, %v2229
    %v2246 = vmul.f32 %v1759, %v2230
    %v2247 = vmul.f32 %v1760, %v2231
    %v2248 = vmul.f32 %v1761, %v2232
    %v2249 = vmul.f32 %v1762, %v2233
    %v2250 = vadd.f32 %v2201, %v2234
    %v2251 = vadd.f32 %v2202, %v2235
    %v2252 = vadd.f32 %v2203, %v2236
    %v2253 = vadd.f32 %v2204, %v2237
    %v2254 = vadd.f32 %v2205, %v2238
    %v2255 = vadd.f32 %v2206, %v2239
    %v2256 = vadd.f32 %v2207, %v2240
    %v2257 = vadd.f32 %v2208, %v2241
    %v2258 = vadd.f32 %v2209, %v2242
    %v2259 = vadd.f32 %v2210, %v2243
    %v2260 = vadd.f32 %v2211, %v2244
    %v2261 = vadd.f32 %v2212, %v2245
    %v2262 = vadd.f32 %v2213, %v2246
    %v2263 = vadd.f32 %v2214, %v2247
    %v2264 = vadd.f32 %v2215, %v2248
    %v2265 = vadd.f32 %v2216, %v2249
    %s2266 = scalar_lea.vmem [#allocation7], 1024
    %v2267 = vld [vmem:[%s2266] sm:$0xff]
    %v2268 = vld [vmem:[%s2266 + $0x8] sm:$0xff]
    %v2269 = vld [vmem:[%s2266 + $0x10] sm:$0xff]
    %v2270 = vld [vmem:[%s2266 + $0x18] sm:$0xff]
    %v2271 = vld [vmem:[%s2266 + $0x20] sm:$0xff]
    %v2272 = vld [vmem:[%s2266 + $0x28] sm:$0xff]
    %v2273 = vld [vmem:[%s2266 + $0x30] sm:$0xff]
    %v2274 = vld [vmem:[%s2266 + $0x38] sm:$0xff]
    %v2275 = vld [vmem:[%s2266 + $0x40] sm:$0xff]
    %v2276 = vld [vmem:[%s2266 + $0x48] sm:$0xff]
    %v2277 = vld [vmem:[%s2266 + $0x50] sm:$0xff]
    %v2278 = vld [vmem:[%s2266 + $0x58] sm:$0xff]
    %v2279 = vld [vmem:[%s2266 + $0x60] sm:$0xff]
    %v2280 = vld [vmem:[%s2266 + $0x68] sm:$0xff]
    %v2281 = vld [vmem:[%s2266 + $0x70] sm:$0xff]
    %v2282 = vld [vmem:[%s2266 + $0x78] sm:$0xff]
    %v2283 = vmul.f32 %v1851, %v2267
    %v2284 = vmul.f32 %v1847, %v2268
    %v2285 = vmul.f32 %v1843, %v2269
    %v2286 = vmul.f32 %v1855, %v2270
    %v2287 = vmul.f32 %v1852, %v2271
    %v2288 = vmul.f32 %v1848, %v2272
    %v2289 = vmul.f32 %v1844, %v2273
    %v2290 = vmul.f32 %v1856, %v2274
    %v2291 = vmul.f32 %v1853, %v2275
    %v2292 = vmul.f32 %v1849, %v2276
    %v2293 = vmul.f32 %v1845, %v2277
    %v2294 = vmul.f32 %v1857, %v2278
    %v2295 = vmul.f32 %v1854, %v2279
    %v2296 = vmul.f32 %v1850, %v2280
    %v2297 = vmul.f32 %v1846, %v2281
    %v2298 = vmul.f32 %v1858, %v2282
    %v2299 = vadd.f32 %v2250, %v2283
    %v2300 = vadd.f32 %v2251, %v2284
    %v2301 = vadd.f32 %v2252, %v2285
    %v2302 = vadd.f32 %v2253, %v2286
    %v2303 = vadd.f32 %v2254, %v2287
    %v2304 = vadd.f32 %v2255, %v2288
    %v2305 = vadd.f32 %v2256, %v2289
    %v2306 = vadd.f32 %v2257, %v2290
    %v2307 = vadd.f32 %v2258, %v2291
    %v2308 = vadd.f32 %v2259, %v2292
    %v2309 = vadd.f32 %v2260, %v2293
    %v2310 = vadd.f32 %v2261, %v2294
    %v2311 = vadd.f32 %v2262, %v2295
    %v2312 = vadd.f32 %v2263, %v2296
    %v2313 = vadd.f32 %v2264, %v2297
    %v2314 = vadd.f32 %v2265, %v2298
    %2315 = vrot.lane.b32.xlu0 %v2299, 112
    %v2316 = vpop.permute.xlu0 %2315
    %2317 = vrot.lane.b32.xlu0 %v2303, 112
    %v2318 = vpop.permute.xlu0 %2317
    %2319 = vrot.lane.b32.xlu0 %v2307, 112
    %v2320 = vpop.permute.xlu0 %2319
    %2321 = vrot.lane.b32.xlu0 %v2311, 112
    %v2322 = vpop.permute.xlu0 %2321
    %2323 = vrot.lane.b32.xlu0 %v2300, 112
    %v2324 = vpop.permute.xlu0 %2323
    %2325 = vrot.lane.b32.xlu0 %v2304, 112
    %v2326 = vpop.permute.xlu0 %2325
    %2327 = vrot.lane.b32.xlu0 %v2308, 112
    %v2328 = vpop.permute.xlu0 %2327
    %2329 = vrot.lane.b32.xlu0 %v2312, 112
    %v2330 = vpop.permute.xlu0 %2329
    %2331 = vrot.lane.b32.xlu0 %v2301, 112
    %v2332 = vpop.permute.xlu0 %2331
    %2333 = vrot.lane.b32.xlu0 %v2305, 112
    %v2334 = vpop.permute.xlu0 %2333
    %2335 = vrot.lane.b32.xlu0 %v2309, 112
    %v2336 = vpop.permute.xlu0 %2335
    %2337 = vrot.lane.b32.xlu0 %v2313, 112
    %v2338 = vpop.permute.xlu0 %2337
    %2339 = vrot.lane.b32.xlu0 %v2302, 112
    %v2340 = vpop.permute.xlu0 %2339
    %2341 = vrot.lane.b32.xlu0 %v2306, 112
    %v2342 = vpop.permute.xlu0 %2341
    %2343 = vrot.lane.b32.xlu0 %v2310, 112
    %v2344 = vpop.permute.xlu0 %2343
    %2345 = vrot.lane.b32.xlu0 %v2314, 112
    %v2346 = vpop.permute.xlu0 %2345
    %v2347 = vsel %vm1380, %v2332, %v2340
    %v2348 = vsel %vm1380, %v2334, %v2342
    %v2349 = vsel %vm1380, %v2336, %v2344
    %v2350 = vsel %vm1380, %v2338, %v2346
    %v2351 = vsel %vm1380, %v2324, %v2332
    %v2352 = vsel %vm1380, %v2326, %v2334
    %v2353 = vsel %vm1380, %v2328, %v2336
    %v2354 = vsel %vm1380, %v2330, %v2338
    %v2355 = vsel %vm1380, %v2316, %v2324
    %v2356 = vsel %vm1380, %v2318, %v2326
    %v2357 = vsel %vm1380, %v2320, %v2328
    %v2358 = vsel %vm1380, %v2322, %v2330
    %v2359 = vsel %vm1380, %v2340, %v2316
    %v2360 = vsel %vm1380, %v2342, %v2318
    %v2361 = vsel %vm1380, %v2344, %v2320
    %v2362 = vsel %vm1380, %v2346, %v2322
    %v2363 = vadd.f32 %v2168, %v2355
    %v2364 = vadd.f32 %v2169, %v2351
    %v2365 = vadd.f32 %v2170, %v2347
    %v2366 = vadd.f32 %v2171, %v2359
    %v2367 = vadd.f32 %v2172, %v2356
    %v2368 = vadd.f32 %v2173, %v2352
    %v2369 = vadd.f32 %v2174, %v2348
    %v2370 = vadd.f32 %v2175, %v2360
    %v2371 = vadd.f32 %v2176, %v2357
    %v2372 = vadd.f32 %v2177, %v2353
    %v2373 = vadd.f32 %v2178, %v2349
    %v2374 = vadd.f32 %v2179, %v2361
    %v2375 = vadd.f32 %v2180, %v2358
    %v2376 = vadd.f32 %v2181, %v2354
    %v2377 = vadd.f32 %v2182, %v2350
    %v2378 = vadd.f32 %v2183, %v2362
    %v2379 = vld [vmem:[%s4] sm:$0xff]
    %v2380 = vld [vmem:[%s4 + $0x8] sm:$0xff]
    %v2381 = vld [vmem:[%s4 + $0x10] sm:$0xff]
    %v2382 = vld [vmem:[%s4 + $0x18] sm:$0xff]
    %2384 = vset.pattern.permute.xlu0 0
    %2385 = vperm.xlu0 %2384, %v2379
    %v2386 = vpop.permute.xlu0 %2385
    %2389 = vset.pattern.permute.xlu0 0
    %2390 = vperm.xlu0 %2389, %v2380
    %v2391 = vpop.permute.xlu0 %2390
    %2394 = vset.pattern.permute.xlu0 0
    %2395 = vperm.xlu0 %2394, %v2381
    %v2396 = vpop.permute.xlu0 %2395
    %2399 = vset.pattern.permute.xlu0 0
    %2400 = vperm.xlu0 %2399, %v2382
    %v2401 = vpop.permute.xlu0 %2400
    %v2403 = vadd.f32 %v2363, %v2386
    %v2404 = vadd.f32 %v2364, %v2386
    %v2405 = vadd.f32 %v2365, %v2386
    %v2406 = vadd.f32 %v2366, %v2386
    %v2407 = vadd.f32 %v2367, %v2391
    %v2408 = vadd.f32 %v2368, %v2391
    %v2409 = vadd.f32 %v2369, %v2391
    %v2410 = vadd.f32 %v2370, %v2391
    %v2411 = vadd.f32 %v2371, %v2396
    %v2412 = vadd.f32 %v2372, %v2396
    %v2413 = vadd.f32 %v2373, %v2396
    %v2414 = vadd.f32 %v2374, %v2396
    %v2415 = vadd.f32 %v2375, %v2401
    %v2416 = vadd.f32 %v2376, %v2401
    %v2417 = vadd.f32 %v2377, %v2401
    %v2418 = vadd.f32 %v2378, %v2401
    %v2419 = vmax.f32 %v2403, 0.0
    %v2420 = vmax.f32 %v2404, 0.0
    %v2421 = vmax.f32 %v2405, 0.0
    %v2422 = vmax.f32 %v2406, 0.0
    %v2423 = vmax.f32 %v2407, 0.0
    %v2424 = vmax.f32 %v2408, 0.0
    %v2425 = vmax.f32 %v2409, 0.0
    %v2426 = vmax.f32 %v2410, 0.0
    %v2427 = vmax.f32 %v2411, 0.0
    %v2428 = vmax.f32 %v2412, 0.0
    %v2429 = vmax.f32 %v2413, 0.0
    %v2430 = vmax.f32 %v2414, 0.0
    %v2431 = vmax.f32 %v2415, 0.0
    %v2432 = vmax.f32 %v2416, 0.0
    %v2433 = vmax.f32 %v2417, 0.0
    %v2434 = vmax.f32 %v2418, 0.0
    %v2435 = vld [vmem:[%s5] sm:$0xf]
    %v2436 = vld [vmem:[%s5 + $0x4] sm:$0xf]
    %v2437 = vld [vmem:[%s5 + $0x8] sm:$0xf]
    %v2438 = vld [vmem:[%s5 + $0xc] sm:$0xf]
    %v2439 = vld [vmem:[%s5 + $0x10] sm:$0xf]
    %v2440 = vld [vmem:[%s5 + $0x14] sm:$0xf]
    %v2441 = vld [vmem:[%s5 + $0x18] sm:$0xf]
    %v2442 = vld [vmem:[%s5 + $0x1c] sm:$0xf]
    %v2443 = vld [vmem:[%s5 + $0x20] sm:$0xf]
    %v2444 = vld [vmem:[%s5 + $0x24] sm:$0xf]
    %v2445 = vld [vmem:[%s5 + $0x28] sm:$0xf]
    %v2446 = vld [vmem:[%s5 + $0x2c] sm:$0xf]
    %v2447 = vld [vmem:[%s5 + $0x30] sm:$0xf]
    %v2448 = vld [vmem:[%s5 + $0x34] sm:$0xf]
    %v2449 = vld [vmem:[%s5 + $0x38] sm:$0xf]
    %v2450 = vld [vmem:[%s5 + $0x3c] sm:$0xf]
    %v2451 = vpack.c.bf16 %v2423, %v2419
    %v2452 = vpack.c.bf16 %v2424, %v2420
    %v2453 = vpack.c.bf16 %v2425, %v2421
    %v2454 = vpack.c.bf16 %v2426, %v2422
    %v2455 = vpack.c.bf16 %v2431, %v2427
    %v2456 = vpack.c.bf16 %v2432, %v2428
    %v2457 = vpack.c.bf16 %v2433, %v2429
    %v2458 = vpack.c.bf16 %v2434, %v2430
    %v2459 = vld [vmem:[%s6] sm:$0xff]
    %v2460 = vld [vmem:[%s6 + $0x8] sm:$0xff]
    %v2461 = vld [vmem:[%s6 + $0x10] sm:$0xff]
    %v2462 = vld [vmem:[%s6 + $0x18] sm:$0xff]
    %v2463 = vld [vmem:[%s6 + $0x20] sm:$0xff]
    %v2464 = vld [vmem:[%s6 + $0x28] sm:$0xff]
    %v2465 = vld [vmem:[%s6 + $0x30] sm:$0xff]
    %v2466 = vld [vmem:[%s6 + $0x38] sm:$0xff]
    %v2467 = vld [vmem:[%s6 + $0x40] sm:$0xff]
    %v2468 = vld [vmem:[%s6 + $0x48] sm:$0xff]
    %v2469 = vld [vmem:[%s6 + $0x50] sm:$0xff]
    %v2470 = vld [vmem:[%s6 + $0x58] sm:$0xff]
    %v2471 = vld [vmem:[%s6 + $0x60] sm:$0xff]
    %v2472 = vld [vmem:[%s6 + $0x68] sm:$0xff]
    %v2473 = vld [vmem:[%s6 + $0x70] sm:$0xff]
    %v2474 = vld [vmem:[%s6 + $0x78] sm:$0xff]
    %2476 = vset.pattern.permute.xlu0 0
    %2477 = vperm.xlu0 %2476, %v2459
    %v2478 = vpop.permute.xlu0 %2477
    %2481 = vset.pattern.permute.xlu0 0
    %2482 = vperm.xlu0 %2481, %v2460
    %v2483 = vpop.permute.xlu0 %2482
    %2486 = vset.pattern.permute.xlu0 0
    %2487 = vperm.xlu0 %2486, %v2461
    %v2488 = vpop.permute.xlu0 %2487
    %2491 = vset.pattern.permute.xlu0 0
    %2492 = vperm.xlu0 %2491, %v2462
    %v2493 = vpop.permute.xlu0 %2492
    %2496 = vset.pattern.permute.xlu0 0
    %2497 = vperm.xlu0 %2496, %v2463
    %v2498 = vpop.permute.xlu0 %2497
    %2501 = vset.pattern.permute.xlu0 0
    %2502 = vperm.xlu0 %2501, %v2464
    %v2503 = vpop.permute.xlu0 %2502
    %2506 = vset.pattern.permute.xlu0 0
    %2507 = vperm.xlu0 %2506, %v2465
    %v2508 = vpop.permute.xlu0 %2507
    %2511 = vset.pattern.permute.xlu0 0
    %2512 = vperm.xlu0 %2511, %v2466
    %v2513 = vpop.permute.xlu0 %2512
    %2516 = vset.pattern.permute.xlu0 0
    %2517 = vperm.xlu0 %2516, %v2467
    %v2518 = vpop.permute.xlu0 %2517
    %2521 = vset.pattern.permute.xlu0 0
    %2522 = vperm.xlu0 %2521, %v2468
    %v2523 = vpop.permute.xlu0 %2522
    %2526 = vset.pattern.permute.xlu0 0
    %2527 = vperm.xlu0 %2526, %v2469
    %v2528 = vpop.permute.xlu0 %2527
    %2531 = vset.pattern.permute.xlu0 0
    %2532 = vperm.xlu0 %2531, %v2470
    %v2533 = vpop.permute.xlu0 %2532
    %2536 = vset.pattern.permute.xlu0 0
    %2537 = vperm.xlu0 %2536, %v2471
    %v2538 = vpop.permute.xlu0 %2537
    %2541 = vset.pattern.permute.xlu0 0
    %2542 = vperm.xlu0 %2541, %v2472
    %v2543 = vpop.permute.xlu0 %2542
    %2546 = vset.pattern.permute.xlu0 0
    %2547 = vperm.xlu0 %2546, %v2473
    %v2548 = vpop.permute.xlu0 %2547
    %2551 = vset.pattern.permute.xlu0 0
    %2552 = vperm.xlu0 %2551, %v2474
    %v2553 = vpop.permute.xlu0 %2552
    %v2571 = vunpack.c.l.b16 %v2435
    %v2572 = vunpack.c.l.b16 %v2436
    %v2573 = vunpack.c.l.b16 %v2437
    %v2574 = vunpack.c.l.b16 %v2438
    %v2575 = vunpack.c.l.b16 %v2439
    %v2576 = vunpack.c.l.b16 %v2440
    %v2577 = vunpack.c.l.b16 %v2441
    %v2578 = vunpack.c.l.b16 %v2442
    %v2579 = vunpack.c.l.b16 %v2443
    %v2580 = vunpack.c.l.b16 %v2444
    %v2581 = vunpack.c.l.b16 %v2445
    %v2582 = vunpack.c.l.b16 %v2446
    %v2583 = vunpack.c.l.b16 %v2447
    %v2584 = vunpack.c.l.b16 %v2448
    %v2585 = vunpack.c.l.b16 %v2449
    %v2586 = vunpack.c.l.b16 %v2450
    %v2587 = vpack.c.b16 %v2572, %v2571
    %v2588 = vpack.c.b16 %v2574, %v2573
    %v2589 = vpack.c.b16 %v2576, %v2575
    %v2590 = vpack.c.b16 %v2578, %v2577
    %v2591 = vpack.c.b16 %v2580, %v2579
    %v2592 = vpack.c.b16 %v2582, %v2581
    %v2593 = vpack.c.b16 %v2584, %v2583
    %v2594 = vpack.c.b16 %v2586, %v2585
    %vm2595 = vcmask 261120
    %v2597 = vsel %vm2595, %v2587, 0
    %v2600 = vsel %vm2595, %v2588, 0
    %v2603 = vsel %vm2595, %v2589, 0
    %v2606 = vsel %vm2595, %v2590, 0
    %v2609 = vsel %vm2595, %v2591, 0
    %v2612 = vsel %vm2595, %v2592, 0
    %v2615 = vsel %vm2595, %v2593, 0
    %v2618 = vsel %vm2595, %v2594, 0
    %2620 = vmatprep.subr.bf16.mxu0 %v2452
    %2621 = vmatpush1.bf16.msra.mxu0 %v2451
    %2622 = vmatprep.subr.bf16.mxu0 %v2456
    %2623 = vmatpush1.bf16.msra.mxu0 %v2455
    %2624 = vmatprep.subr.bf16.mxu0 0
    %2625 = vmatpush1.bf16.msra.mxu0 0
    %2626 = vmatprep.subr.bf16.mxu0 0
    %2627 = vmatpush1.bf16.msra.mxu0 0
    %2628 = vmatprep.subr.bf16.mxu0 0
    %2629 = vmatpush1.bf16.msra.mxu0 0
    %2630 = vmatprep.subr.bf16.mxu0 0
    %2631 = vmatpush1.bf16.msra.mxu0 0
    %2632 = vmatprep.subr.bf16.mxu0 0
    %2633 = vmatpush1.bf16.msra.mxu0 0
    %2634 = vmatprep.subr.bf16.mxu0 0
    %2635 = vmatpush1.bf16.msra.mxu0 0
    %2636 = vmatprep.subr.bf16.mxu0 0
    %2637 = vmatpush1.bf16.msra.mxu0 0
    %2638 = vmatprep.subr.bf16.mxu0 0
    %2639 = vmatpush1.bf16.msra.mxu0 0
    %2640 = vmatprep.subr.bf16.mxu0 0
    %2641 = vmatpush1.bf16.msra.mxu0 0
    %2642 = vmatprep.subr.bf16.mxu0 0
    %2643 = vmatpush1.bf16.msra.mxu0 0
    %2644 = vmatprep.subr.bf16.mxu0 0
    %2645 = vmatpush1.bf16.msra.mxu0 0
    %2646 = vmatprep.subr.bf16.mxu0 0
    %2647 = vmatpush1.bf16.msra.mxu0 0
    %2648 = vmatprep.subr.bf16.mxu0 0
    %2649 = vmatpush1.bf16.msra.mxu0 0
    %2650 = vmatprep.subr.bf16.mxu0 0
    %2651 = vmatpush1.bf16.msra.mxu0 0
    %2652 = vmatprep.mubr.bf16.mxu0 0
    %2653 = vmatmul.mubr.bf16.gmra.mrb[0].mxu0 %v2597
    %v2654 = vpop.f32.mrb[0].mxu0
    %v2655 = vadd.f32 %v2478, %v2654
    %v2656 = vpop.f32.mrb[0].mxu0
    %v2657 = vadd.f32 %v2478, %v2656
    %v2658 = vpop.f32.mrb[0].mxu0
    %v2659 = vadd.f32 %v2483, %v2658
    %v2660 = vpop.f32.mrb[0].mxu0
    %v2661 = vadd.f32 %v2483, %v2660
    %2662 = vmatprep.mubr.bf16.mxu0 0
    %2663 = vmatmul.mubr.bf16.gmra.mrb[0].mxu0 %v2600
    %v2664 = vpop.f32.mrb[0].mxu0
    %v2665 = vadd.f32 %v2488, %v2664
    %v2666 = vpop.f32.mrb[0].mxu0
    %v2667 = vadd.f32 %v2488, %v2666
    %v2668 = vpop.f32.mrb[0].mxu0
    %v2669 = vadd.f32 %v2493, %v2668
    %v2670 = vpop.f32.mrb[0].mxu0
    %v2671 = vadd.f32 %v2493, %v2670
    %2672 = vmatprep.mubr.bf16.mxu0 0
    %2673 = vmatmul.mubr.bf16.gmra.mrb[0].mxu0 %v2603
    %v2674 = vpop.f32.mrb[0].mxu0
    %v2675 = vadd.f32 %v2498, %v2674
    %v2676 = vpop.f32.mrb[0].mxu0
    %v2677 = vadd.f32 %v2498, %v2676
    %v2678 = vpop.f32.mrb[0].mxu0
    %v2679 = vadd.f32 %v2503, %v2678
    %v2680 = vpop.f32.mrb[0].mxu0
    %v2681 = vadd.f32 %v2503, %v2680
    %2682 = vmatprep.mubr.bf16.mxu0 0
    %2683 = vmatmul.mubr.bf16.gmra.mrb[0].mxu0 %v2606
    %v2684 = vpop.f32.mrb[0].mxu0
    %v2685 = vadd.f32 %v2508, %v2684
    %v2686 = vpop.f32.mrb[0].mxu0
    %v2687 = vadd.f32 %v2508, %v2686
    %v2688 = vpop.f32.mrb[0].mxu0
    %v2689 = vadd.f32 %v2513, %v2688
    %v2690 = vpop.f32.mrb[0].mxu0
    %v2691 = vadd.f32 %v2513, %v2690
    %2692 = vmatprep.mubr.bf16.mxu0 0
    %2693 = vmatmul.mubr.bf16.gmra.mrb[0].mxu0 %v2609
    %v2694 = vpop.f32.mrb[0].mxu0
    %v2695 = vadd.f32 %v2518, %v2694
    %v2696 = vpop.f32.mrb[0].mxu0
    %v2697 = vadd.f32 %v2518, %v2696
    %v2698 = vpop.f32.mrb[0].mxu0
    %v2699 = vadd.f32 %v2523, %v2698
    %v2700 = vpop.f32.mrb[0].mxu0
    %v2701 = vadd.f32 %v2523, %v2700
    %2702 = vmatprep.mubr.bf16.mxu0 0
    %2703 = vmatmul.mubr.bf16.gmra.mrb[0].mxu0 %v2612
    %v2704 = vpop.f32.mrb[0].mxu0
    %v2705 = vadd.f32 %v2528, %v2704
    %v2706 = vpop.f32.mrb[0].mxu0
    %v2707 = vadd.f32 %v2528, %v2706
    %v2708 = vpop.f32.mrb[0].mxu0
    %v2709 = vadd.f32 %v2533, %v2708
    %v2710 = vpop.f32.mrb[0].mxu0
    %v2711 = vadd.f32 %v2533, %v2710
    %2712 = vmatprep.mubr.bf16.mxu0 0
    %2713 = vmatmul.mubr.bf16.gmra.mrb[0].mxu0 %v2615
    %v2714 = vpop.f32.mrb[0].mxu0
    %v2715 = vadd.f32 %v2538, %v2714
    %v2716 = vpop.f32.mrb[0].mxu0
    %v2717 = vadd.f32 %v2538, %v2716
    %v2718 = vpop.f32.mrb[0].mxu0
    %v2719 = vadd.f32 %v2543, %v2718
    %v2720 = vpop.f32.mrb[0].mxu0
    %v2721 = vadd.f32 %v2543, %v2720
    %2722 = vmatprep.mubr.bf16.mxu0 0
    %2723 = vmatmul.mubr.bf16.gmra.mrb[0].mxu0 %v2618
    %v2724 = vpop.f32.mrb[0].mxu0
    %v2725 = vadd.f32 %v2548, %v2724
    %v2726 = vpop.f32.mrb[0].mxu0
    %v2727 = vadd.f32 %v2548, %v2726
    %v2728 = vpop.f32.mrb[0].mxu0
    %v2729 = vadd.f32 %v2553, %v2728
    %v2730 = vpop.f32.mrb[0].mxu0
    %v2731 = vadd.f32 %v2553, %v2730
    %2732 = vdwg.mxu0
    %2733 = vmatprep.subr.bf16.mxu0 %v2454
    %2734 = vmatpush1.bf16.msra.mxu0 %v2453
    %2735 = vmatprep.subr.bf16.mxu0 %v2458
    %2736 = vmatpush1.bf16.msra.mxu0 %v2457
    %2737 = vmatprep.subr.bf16.mxu0 0
    %2738 = vmatpush1.bf16.msra.mxu0 0
    %2739 = vmatprep.subr.bf16.mxu0 0
    %2740 = vmatpush1.bf16.msra.mxu0 0
    %2741 = vmatprep.subr.bf16.mxu0 0
    %2742 = vmatpush1.bf16.msra.mxu0 0
    %2743 = vmatprep.subr.bf16.mxu0 0
    %2744 = vmatpush1.bf16.msra.mxu0 0
    %2745 = vmatprep.subr.bf16.mxu0 0
    %2746 = vmatpush1.bf16.msra.mxu0 0
    %2747 = vmatprep.subr.bf16.mxu0 0
    %2748 = vmatpush1.bf16.msra.mxu0 0
    %2749 = vmatprep.subr.bf16.mxu0 0
    %2750 = vmatpush1.bf16.msra.mxu0 0
    %2751 = vmatprep.subr.bf16.mxu0 0
    %2752 = vmatpush1.bf16.msra.mxu0 0
    %2753 = vmatprep.subr.bf16.mxu0 0
    %2754 = vmatpush1.bf16.msra.mxu0 0
    %2755 = vmatprep.subr.bf16.mxu0 0
    %2756 = vmatpush1.bf16.msra.mxu0 0
    %2757 = vmatprep.subr.bf16.mxu0 0
    %2758 = vmatpush1.bf16.msra.mxu0 0
    %2759 = vmatprep.subr.bf16.mxu0 0
    %2760 = vmatpush1.bf16.msra.mxu0 0
    %2761 = vmatprep.subr.bf16.mxu0 0
    %2762 = vmatpush1.bf16.msra.mxu0 0
    %2763 = vmatprep.subr.bf16.mxu0 0
    %2764 = vmatpush1.bf16.msra.mxu0 0
    %2765 = vmatprep.mubr.bf16.mxu0 0
    %2766 = vmatmul.mubr.bf16.gmra.mrb[0].mxu0 %v2597
    %v2767 = vpop.f32.mrb[0].mxu0
    %v2768 = vadd.f32 %v2478, %v2767
    %v2769 = vpop.f32.mrb[0].mxu0
    %v2770 = vadd.f32 %v2478, %v2769
    %v2771 = vpop.f32.mrb[0].mxu0
    %v2772 = vadd.f32 %v2483, %v2771
    %v2773 = vpop.f32.mrb[0].mxu0
    %v2774 = vadd.f32 %v2483, %v2773
    %2775 = vmatprep.mubr.bf16.mxu0 0
    %2776 = vmatmul.mubr.bf16.gmra.mrb[0].mxu0 %v2600
    %v2777 = vpop.f32.mrb[0].mxu0
    %v2778 = vadd.f32 %v2488, %v2777
    %v2779 = vpop.f32.mrb[0].mxu0
    %v2780 = vadd.f32 %v2488, %v2779
    %v2781 = vpop.f32.mrb[0].mxu0
    %v2782 = vadd.f32 %v2493, %v2781
    %v2783 = vpop.f32.mrb[0].mxu0
    %v2784 = vadd.f32 %v2493, %v2783
    %2785 = vmatprep.mubr.bf16.mxu0 0
    %2786 = vmatmul.mubr.bf16.gmra.mrb[0].mxu0 %v2603
    %v2787 = vpop.f32.mrb[0].mxu0
    %v2788 = vadd.f32 %v2498, %v2787
    %v2789 = vpop.f32.mrb[0].mxu0
    %v2790 = vadd.f32 %v2498, %v2789
    %v2791 = vpop.f32.mrb[0].mxu0
    %v2792 = vadd.f32 %v2503, %v2791
    %v2793 = vpop.f32.mrb[0].mxu0
    %v2794 = vadd.f32 %v2503, %v2793
    %2795 = vmatprep.mubr.bf16.mxu0 0
    %2796 = vmatmul.mubr.bf16.gmra.mrb[0].mxu0 %v2606
    %v2797 = vpop.f32.mrb[0].mxu0
    %v2798 = vadd.f32 %v2508, %v2797
    %v2799 = vpop.f32.mrb[0].mxu0
    %v2800 = vadd.f32 %v2508, %v2799
    %v2801 = vpop.f32.mrb[0].mxu0
    %v2802 = vadd.f32 %v2513, %v2801
    %v2803 = vpop.f32.mrb[0].mxu0
    %v2804 = vadd.f32 %v2513, %v2803
    %2805 = vmatprep.mubr.bf16.mxu0 0
    %2806 = vmatmul.mubr.bf16.gmra.mrb[0].mxu0 %v2609
    %v2807 = vpop.f32.mrb[0].mxu0
    %v2808 = vadd.f32 %v2518, %v2807
    %v2809 = vpop.f32.mrb[0].mxu0
    %v2810 = vadd.f32 %v2518, %v2809
    %v2811 = vpop.f32.mrb[0].mxu0
    %v2812 = vadd.f32 %v2523, %v2811
    %v2813 = vpop.f32.mrb[0].mxu0
    %v2814 = vadd.f32 %v2523, %v2813
    %2815 = vmatprep.mubr.bf16.mxu0 0
    %2816 = vmatmul.mubr.bf16.gmra.mrb[0].mxu0 %v2612
    %v2817 = vpop.f32.mrb[0].mxu0
    %v2818 = vadd.f32 %v2528, %v2817
    %v2819 = vpop.f32.mrb[0].mxu0
    %v2820 = vadd.f32 %v2528, %v2819
    %v2821 = vpop.f32.mrb[0].mxu0
    %v2822 = vadd.f32 %v2533, %v2821
    %v2823 = vpop.f32.mrb[0].mxu0
    %v2824 = vadd.f32 %v2533, %v2823
    %2825 = vmatprep.mubr.bf16.mxu0 0
    %2826 = vmatmul.mubr.bf16.gmra.mrb[0].mxu0 %v2615
    %v2827 = vpop.f32.mrb[0].mxu0
    %v2828 = vadd.f32 %v2538, %v2827
    %v2829 = vpop.f32.mrb[0].mxu0
    %v2830 = vadd.f32 %v2538, %v2829
    %v2831 = vpop.f32.mrb[0].mxu0
    %v2832 = vadd.f32 %v2543, %v2831
    %v2833 = vpop.f32.mrb[0].mxu0
    %v2834 = vadd.f32 %v2543, %v2833
    %2835 = vmatprep.mubr.bf16.mxu0 0
    %2836 = vmatmul.mubr.bf16.gmra.mrb[0].mxu0 %v2618
    %v2837 = vpop.f32.mrb[0].mxu0
    %v2838 = vadd.f32 %v2548, %v2837
    %v2839 = vpop.f32.mrb[0].mxu0
    %v2840 = vadd.f32 %v2548, %v2839
    %v2841 = vpop.f32.mrb[0].mxu0
    %v2842 = vadd.f32 %v2553, %v2841
    %v2843 = vpop.f32.mrb[0].mxu0
    %v2844 = vadd.f32 %v2553, %v2843
    %2845 = vdwg.mxu0
    %v2846 = vmax.f32 %v2655, 0.0
    %v2847 = vmax.f32 %v2657, 0.0
    %v2848 = vmax.f32 %v2768, 0.0
    %v2849 = vmax.f32 %v2770, 0.0
    %v2850 = vmax.f32 %v2659, 0.0
    %v2851 = vmax.f32 %v2661, 0.0
    %v2852 = vmax.f32 %v2772, 0.0
    %v2853 = vmax.f32 %v2774, 0.0
    %v2854 = vmax.f32 %v2665, 0.0
    %v2855 = vmax.f32 %v2667, 0.0
    %v2856 = vmax.f32 %v2778, 0.0
    %v2857 = vmax.f32 %v2780, 0.0
    %v2858 = vmax.f32 %v2669, 0.0
    %v2859 = vmax.f32 %v2671, 0.0
    %v2860 = vmax.f32 %v2782, 0.0
    %v2861 = vmax.f32 %v2784, 0.0
    %v2862 = vmax.f32 %v2675, 0.0
    %v2863 = vmax.f32 %v2677, 0.0
    %v2864 = vmax.f32 %v2788, 0.0
    %v2865 = vmax.f32 %v2790, 0.0
    %v2866 = vmax.f32 %v2679, 0.0
    %v2867 = vmax.f32 %v2681, 0.0
    %v2868 = vmax.f32 %v2792, 0.0
    %v2869 = vmax.f32 %v2794, 0.0
    %v2870 = vmax.f32 %v2685, 0.0
    %v2871 = vmax.f32 %v2687, 0.0
    %v2872 = vmax.f32 %v2798, 0.0
    %v2873 = vmax.f32 %v2800, 0.0
    %v2874 = vmax.f32 %v2689, 0.0
    %v2875 = vmax.f32 %v2691, 0.0
    %v2876 = vmax.f32 %v2802, 0.0
    %v2877 = vmax.f32 %v2804, 0.0
    %v2878 = vmax.f32 %v2695, 0.0
    %v2879 = vmax.f32 %v2697, 0.0
    %v2880 = vmax.f32 %v2808, 0.0
    %v2881 = vmax.f32 %v2810, 0.0
    %v2882 = vmax.f32 %v2699, 0.0
    %v2883 = vmax.f32 %v2701, 0.0
    %v2884 = vmax.f32 %v2812, 0.0
    %v2885 = vmax.f32 %v2814, 0.0
    %v2886 = vmax.f32 %v2705, 0.0
    %v2887 = vmax.f32 %v2707, 0.0
    %v2888 = vmax.f32 %v2818, 0.0
    %v2889 = vmax.f32 %v2820, 0.0
    %v2890 = vmax.f32 %v2709, 0.0
    %v2891 = vmax.f32 %v2711, 0.0
    %v2892 = vmax.f32 %v2822, 0.0
    %v2893 = vmax.f32 %v2824, 0.0
    %v2894 = vmax.f32 %v2715, 0.0
    %v2895 = vmax.f32 %v2717, 0.0
    %v2896 = vmax.f32 %v2828, 0.0
    %v2897 = vmax.f32 %v2830, 0.0
    %v2898 = vmax.f32 %v2719, 0.0
    %v2899 = vmax.f32 %v2721, 0.0
    %v2900 = vmax.f32 %v2832, 0.0
    %v2901 = vmax.f32 %v2834, 0.0
    %v2902 = vmax.f32 %v2725, 0.0
    %v2903 = vmax.f32 %v2727, 0.0
    %v2904 = vmax.f32 %v2838, 0.0
    %v2905 = vmax.f32 %v2840, 0.0
    %v2906 = vmax.f32 %v2729, 0.0
    %v2907 = vmax.f32 %v2731, 0.0
    %v2908 = vmax.f32 %v2842, 0.0
    %v2909 = vmax.f32 %v2844, 0.0
    %v2910 = vld [vmem:[#allocation8] sm:$0xf]
    %v2911 = vld [vmem:[#allocation8 + $0x4] sm:$0xf]
    %v2912 = vld [vmem:[#allocation8 + $0x8] sm:$0xf]
    %v2913 = vld [vmem:[#allocation8 + $0xc] sm:$0xf]
    %v2914 = vpack.c.bf16 %v2850, %v2846
    %v2915 = vpack.c.bf16 %v2851, %v2847
    %v2916 = vpack.c.bf16 %v2852, %v2848
    %v2917 = vpack.c.bf16 %v2853, %v2849
    %v2918 = vpack.c.bf16 %v2858, %v2854
    %v2919 = vpack.c.bf16 %v2859, %v2855
    %v2920 = vpack.c.bf16 %v2860, %v2856
    %v2921 = vpack.c.bf16 %v2861, %v2857
    %v2922 = vpack.c.bf16 %v2866, %v2862
    %v2923 = vpack.c.bf16 %v2867, %v2863
    %v2924 = vpack.c.bf16 %v2868, %v2864
    %v2925 = vpack.c.bf16 %v2869, %v2865
    %v2926 = vpack.c.bf16 %v2874, %v2870
    %v2927 = vpack.c.bf16 %v2875, %v2871
    %v2928 = vpack.c.bf16 %v2876, %v2872
    %v2929 = vpack.c.bf16 %v2877, %v2873
    %v2930 = vpack.c.bf16 %v2882, %v2878
    %v2931 = vpack.c.bf16 %v2883, %v2879
    %v2932 = vpack.c.bf16 %v2884, %v2880
    %v2933 = vpack.c.bf16 %v2885, %v2881
    %v2934 = vpack.c.bf16 %v2890, %v2886
    %v2935 = vpack.c.bf16 %v2891, %v2887
    %v2936 = vpack.c.bf16 %v2892, %v2888
    %v2937 = vpack.c.bf16 %v2893, %v2889
    %v2938 = vpack.c.bf16 %v2898, %v2894
    %v2939 = vpack.c.bf16 %v2899, %v2895
    %v2940 = vpack.c.bf16 %v2900, %v2896
    %v2941 = vpack.c.bf16 %v2901, %v2897
    %v2942 = vpack.c.bf16 %v2906, %v2902
    %v2943 = vpack.c.bf16 %v2907, %v2903
    %v2944 = vpack.c.bf16 %v2908, %v2904
    %v2945 = vpack.c.bf16 %v2909, %v2905
    %v2946 = vld [vmem:[%s8] sm:$0xff]
    %v2947 = vld [vmem:[%s8 + $0x8] sm:$0xff]
    %v2948 = vld [vmem:[%s8 + $0x10] sm:$0xff]
    %v2949 = vld [vmem:[%s8 + $0x18] sm:$0xff]
    %2951 = vset.pattern.permute.xlu0 0
    %2952 = vperm.xlu0 %2951, %v2946
    %v2953 = vpop.permute.xlu0 %2952
    %2956 = vset.pattern.permute.xlu0 0
    %2957 = vperm.xlu0 %2956, %v2947
    %v2958 = vpop.permute.xlu0 %2957
    %2961 = vset.pattern.permute.xlu0 0
    %2962 = vperm.xlu0 %2961, %v2948
    %v2963 = vpop.permute.xlu0 %2962
    %2966 = vset.pattern.permute.xlu0 0
    %2967 = vperm.xlu0 %2966, %v2949
    %v2968 = vpop.permute.xlu0 %2967
    %v2974 = vunpack.c.l.b16 %v2910
    %v2975 = vunpack.c.l.b16 %v2911
    %v2976 = vunpack.c.l.b16 %v2912
    %v2977 = vunpack.c.l.b16 %v2913
    %v2978 = vpack.c.b16 %v2975, %v2974
    %v2979 = vpack.c.b16 %v2977, %v2976
    %2982 = vmatprep.subr.bf16.mxu0 %v2915
    %2983 = vmatpush1.bf16.msra.mxu0 %v2914
    %2984 = vmatprep.subr.bf16.mxu0 %v2919
    %2985 = vmatpush1.bf16.msra.mxu0 %v2918
    %2986 = vmatprep.subr.bf16.mxu0 %v2923
    %2987 = vmatpush1.bf16.msra.mxu0 %v2922
    %2988 = vmatprep.subr.bf16.mxu0 %v2927
    %2989 = vmatpush1.bf16.msra.mxu0 %v2926
    %2990 = vmatprep.subr.bf16.mxu0 %v2931
    %2991 = vmatpush1.bf16.msra.mxu0 %v2930
    %2992 = vmatprep.subr.bf16.mxu0 %v2935
    %2993 = vmatpush1.bf16.msra.mxu0 %v2934
    %2994 = vmatprep.subr.bf16.mxu0 %v2939
    %2995 = vmatpush1.bf16.msra.mxu0 %v2938
    %2996 = vmatprep.subr.bf16.mxu0 %v2943
    %2997 = vmatpush1.bf16.msra.mxu0 %v2942
    %2998 = vmatprep.subr.bf16.mxu0 0
    %2999 = vmatpush1.bf16.msra.mxu0 0
    %3000 = vmatprep.subr.bf16.mxu0 0
    %3001 = vmatpush1.bf16.msra.mxu0 0
    %3002 = vmatprep.subr.bf16.mxu0 0
    %3003 = vmatpush1.bf16.msra.mxu0 0
    %3004 = vmatprep.subr.bf16.mxu0 0
    %3005 = vmatpush1.bf16.msra.mxu0 0
    %3006 = vmatprep.subr.bf16.mxu0 0
    %3007 = vmatpush1.bf16.msra.mxu0 0
    %3008 = vmatprep.subr.bf16.mxu0 0
    %3009 = vmatpush1.bf16.msra.mxu0 0
    %3010 = vmatprep.subr.bf16.mxu0 0
    %3011 = vmatpush1.bf16.msra.mxu0 0
    %3012 = vmatprep.subr.bf16.mxu0 0
    %3013 = vmatpush1.bf16.msra.mxu0 0
    %3014 = vmatprep.mubr.bf16.mxu0 0
    %3015 = vmatmul.mubr.bf16.gmra.mrb[0].mxu0 %v2978
    %v3016 = vpop.f32.mrb[0].mxu0
    %v3017 = vadd.f32 %v2953, %v3016
    %v3018 = vpop.f32.mrb[0].mxu0
    %v3019 = vadd.f32 %v2953, %v3018
    %v3020 = vpop.f32.mrb[0].mxu0
    %v3021 = vadd.f32 %v2958, %v3020
    %v3022 = vpop.f32.mrb[0].mxu0
    %v3023 = vadd.f32 %v2958, %v3022
    %3024 = vmatprep.mubr.bf16.mxu0 0
    %3025 = vmatmul.mubr.bf16.gmra.mrb[0].mxu0 %v2979
    %v3026 = vpop.f32.mrb[0].mxu0
    %v3027 = vadd.f32 %v2963, %v3026
    %v3028 = vpop.f32.mrb[0].mxu0
    %v3029 = vadd.f32 %v2963, %v3028
    %v3030 = vpop.f32.mrb[0].mxu0
    %v3031 = vadd.f32 %v2968, %v3030
    %v3032 = vpop.f32.mrb[0].mxu0
    %v3033 = vadd.f32 %v2968, %v3032
    %3034 = vdwg.mxu0
    %3035 = vmatprep.subr.bf16.mxu0 %v2917
    %3036 = vmatpush1.bf16.msra.mxu0 %v2916
    %3037 = vmatprep.subr.bf16.mxu0 %v2921
    %3038 = vmatpush1.bf16.msra.mxu0 %v2920
    %3039 = vmatprep.subr.bf16.mxu0 %v2925
    %3040 = vmatpush1.bf16.msra.mxu0 %v2924
    %3041 = vmatprep.subr.bf16.mxu0 %v2929
    %3042 = vmatpush1.bf16.msra.mxu0 %v2928
    %3043 = vmatprep.subr.bf16.mxu0 %v2933
    %3044 = vmatpush1.bf16.msra.mxu0 %v2932
    %3045 = vmatprep.subr.bf16.mxu0 %v2937
    %3046 = vmatpush1.bf16.msra.mxu0 %v2936
    %3047 = vmatprep.subr.bf16.mxu0 %v2941
    %3048 = vmatpush1.bf16.msra.mxu0 %v2940
    %3049 = vmatprep.subr.bf16.mxu0 %v2945
    %3050 = vmatpush1.bf16.msra.mxu0 %v2944
    %3051 = vmatprep.subr.bf16.mxu0 0
    %3052 = vmatpush1.bf16.msra.mxu0 0
    %3053 = vmatprep.subr.bf16.mxu0 0
    %3054 = vmatpush1.bf16.msra.mxu0 0
    %3055 = vmatprep.subr.bf16.mxu0 0
    %3056 = vmatpush1.bf16.msra.mxu0 0
    %3057 = vmatprep.subr.bf16.mxu0 0
    %3058 = vmatpush1.bf16.msra.mxu0 0
    %3059 = vmatprep.subr.bf16.mxu0 0
    %3060 = vmatpush1.bf16.msra.mxu0 0
    %3061 = vmatprep.subr.bf16.mxu0 0
    %3062 = vmatpush1.bf16.msra.mxu0 0
    %3063 = vmatprep.subr.bf16.mxu0 0
    %3064 = vmatpush1.bf16.msra.mxu0 0
    %3065 = vmatprep.subr.bf16.mxu0 0
    %3066 = vmatpush1.bf16.msra.mxu0 0
    %3067 = vmatprep.mubr.bf16.mxu0 0
    %3068 = vmatmul.mubr.bf16.gmra.mrb[0].mxu0 %v2978
    %v3069 = vpop.f32.mrb[0].mxu0
    %v3070 = vadd.f32 %v2953, %v3069
    %v3071 = vpop.f32.mrb[0].mxu0
    %v3072 = vadd.f32 %v2953, %v3071
    %v3073 = vpop.f32.mrb[0].mxu0
    %v3074 = vadd.f32 %v2958, %v3073
    %v3075 = vpop.f32.mrb[0].mxu0
    %v3076 = vadd.f32 %v2958, %v3075
    %3077 = vmatprep.mubr.bf16.mxu0 0
    %3078 = vmatmul.mubr.bf16.gmra.mrb[0].mxu0 %v2979
    %v3079 = vpop.f32.mrb[0].mxu0
    %v3080 = vadd.f32 %v2963, %v3079
    %v3081 = vpop.f32.mrb[0].mxu0
    %v3082 = vadd.f32 %v2963, %v3081
    %v3083 = vpop.f32.mrb[0].mxu0
    %v3084 = vadd.f32 %v2968, %v3083
    %v3085 = vpop.f32.mrb[0].mxu0
    %v3086 = vadd.f32 %v2968, %v3085
    %3087 = vdwg.mxu0
    %v3088 = vadd.f32 %v3017, %v89
    %v3089 = vadd.f32 %v3019, %v90
    %v3090 = vadd.f32 %v3070, %v91
    %v3091 = vadd.f32 %v3072, %v92
    %v3092 = vadd.f32 %v3021, %v93
    %v3093 = vadd.f32 %v3023, %v94
    %v3094 = vadd.f32 %v3074, %v95
    %v3095 = vadd.f32 %v3076, %v96
    %v3096 = vadd.f32 %v3027, %v97
    %v3097 = vadd.f32 %v3029, %v98
    %v3098 = vadd.f32 %v3080, %v99
    %v3099 = vadd.f32 %v3082, %v100
    %v3100 = vadd.f32 %v3031, %v101
    %v3101 = vadd.f32 %v3033, %v102
    %v3102 = vadd.f32 %v3084, %v103
    %v3103 = vadd.f32 %v3086, %v104
    %3104 = vst [vmem:[#allocation10] sm:$0xff] %v3088
    %3105 = vst [vmem:[#allocation10 + $0x8] sm:$0xff] %v3089
    %3106 = vst [vmem:[#allocation10 + $0x10] sm:$0xff] %v3090
    %3107 = vst [vmem:[#allocation10 + $0x18] sm:$0xff] %v3091
    %3108 = vst [vmem:[#allocation10 + $0x20] sm:$0xff] %v3092
    %3109 = vst [vmem:[#allocation10 + $0x28] sm:$0xff] %v3093
    %3110 = vst [vmem:[#allocation10 + $0x30] sm:$0xff] %v3094
    %3111 = vst [vmem:[#allocation10 + $0x38] sm:$0xff] %v3095
    %3112 = vst [vmem:[#allocation10 + $0x40] sm:$0xff] %v3096
    %3113 = vst [vmem:[#allocation10 + $0x48] sm:$0xff] %v3097
    %3114 = vst [vmem:[#allocation10 + $0x50] sm:$0xff] %v3098
    %3115 = vst [vmem:[#allocation10 + $0x58] sm:$0xff] %v3099
    %3116 = vst [vmem:[#allocation10 + $0x60] sm:$0xff] %v3100
    %3117 = vst [vmem:[#allocation10 + $0x68] sm:$0xff] %v3101
    %3118 = vst [vmem:[#allocation10 + $0x70] sm:$0xff] %v3102
    %3119 = vst [vmem:[#allocation10 + $0x78] sm:$0xff] %v3103
    // Predicated region
    $region54: #{tpu_custom_call.1} parent=1 // pred_check
      _
    $region55: #{tpu_custom_call.1} parent=1 // pred_check_branch
      %3121 = sbr.rel (0) target = $region57
    $region56: #{tpu_custom_call.1} parent=1 // pred_region
      %s3123 = ssub.s32 2048, 2048
      %3124 = vsyncadd [#allocation4], %s3123
      %s3125 = sshll.u32 [#allocation10], 4
      %s3126 = int_to_ptr.vmem [resolvable:$true] %s3125
      %3131 = dma.vmem_to_hbm [thread:$0]  %s3126, 2048, %s9, [#allocation4], 512, 512, 32
    $region57: #{tpu_custom_call.1} parent=1 // pred_fallthru
      _
    // Predicated region
    $region58: #{tpu_custom_call.1} parent=1 // pred_check
      _
    $region59: #{tpu_custom_call.1} parent=1 // pred_check_branch
      %3133 = sbr.rel (0) target = $region61
    $region60: #{tpu_custom_call.1} parent=1 // pred_region
      %3134 = dma.done [#allocation4], 2048
    $region61: #{tpu_custom_call.1} parent=1 // pred_fallthru
      _
    %3135 = vsyncpa [#allocation3], 1
    %3136 = vsyncpa [#allocation6], 1
    %3137 = vsyncpa [#allocation9], 1
    %3138 = vsyncpa [#allocation4], 1

</llo_original>
